<compile_context>
chip_gen: v7x
topology: tpu7x:2x2x1
jax: 0.10.0
libtpu: 0.0.40
codegen_flags: <defaults>
</compile_context>

<pallas_src>
import functools

import jax
import jax.numpy as jnp
from jax import lax
from jax.experimental import pallas as pl
from jax.experimental.pallas import tpu as pltpu


def _round_up(x, m):
    return (x + m - 1) // m * m


def _vmem_budget_bytes():
    """Per-generation scoped-VMEM budget with headroom.

    v5e/v6e (128 MiB physical) -> ~112 MiB; v7x (64 MiB) -> ~52 MiB; unknown
    chip falls back to the smallest (v7x-like) assumption.
    """
    try:
        cap = int(pltpu.get_tpu_info().vmem_capacity_bytes)
    except Exception:
        cap = 64 * 1024 * 1024
    headroom = max(cap // 8, 12 * 1024 * 1024)
    return max(cap - headroom, 16 * 1024 * 1024)


# ----------------------------------------------------------------------------
# Path 1: fully VMEM-resident fused kernel (adj stays in VMEM across all K).
# ----------------------------------------------------------------------------
def _lp_resident_kernel(x0_ref, adj_ref, o_ref, *, K, alpha):
    x0 = x0_ref[...]                           # (n_pad, c_pad) f32, lane-dense
    adj = adj_ref[...]                         # (n_pad, n_pad) pre-cast matmul dtype
    ax0 = jnp.float32(alpha) * x0              # hoisted teleport term
    oma = jnp.float32(1.0 - alpha)

    def step(x):
        # MXU matmul with f32 accumulate; blend stays f32 on the VPU.
        p = jnp.dot(adj, x.astype(adj.dtype), preferred_element_type=jnp.float32)
        return oma * p + ax0

    n_pad, c_pad = x0_ref.shape
    x = x0
    if K <= 16 and n_pad * c_pad <= (1 << 19):
        # Small activations: static unroll gives the LLO scheduler visibility
        # (overlap MXU push of step k with VPU blend of step k-1).
        for _ in range(K):
            x = step(x)
    else:
        # Large activations: bound live ranges with a real loop, modest unroll.
        x = lax.fori_loop(0, K, lambda _, xx: step(xx), x, unroll=2)

    o_ref[...] = x.astype(o_ref.dtype)         # lane-dense (c_pad % 128 == 0) store


# ----------------------------------------------------------------------------
# Path 2: streaming (K, row-tile) grid for large graphs.
#   adj row blocks are re-streamed each step k (double-buffered by Pallas);
#   x_k / x_{k+1} ping-pong between two persistent VMEM scratch buffers.
# ----------------------------------------------------------------------------
def _lp_stream_kernel(x0_ref, adj_ref, o_ref, xa_ref, xb_ref, *, alpha, tm):
    k = pl.program_id(0)
    r = pl.program_id(1)
    row0 = pl.multiple_of(r * tm, tm)
    oma = jnp.float32(1.0 - alpha)
    al = jnp.float32(alpha)

    @pl.when((k == 0) & (r == 0))
    def _():
        xa_ref[...] = x0_ref[...]              # seed x_0 into the even-parity buffer

    adj_tile = adj_ref[...]                    # (tm, n_pad), pre-cast matmul dtype
    tele = al * x0_ref[pl.ds(row0, tm), :]     # teleport term for this row tile

    def step(src_ref, dst_ref):
        p = jnp.dot(adj_tile, src_ref[...].astype(adj_tile.dtype),
                    preferred_element_type=jnp.float32)
        new = oma * p + tele
        dst_ref[pl.ds(row0, tm), :] = new      # write x_{k+1} row tile
        o_ref[...] = new.astype(o_ref.dtype)   # last k's writes land last -> final result

    @pl.when(k % 2 == 0)
    def _():
        step(xa_ref, xb_ref)

    @pl.when(k % 2 == 1)
    def _():
        step(xb_ref, xa_ref)

    # TODO(synk): v7x megacore — mark the row-tile axis 'parallel' and exchange
    # x_{k+1} between the two TensorCores via CMEM/VMEM_SHARED; kept single-core
    # ('arbitrary') here because per-core scratch would break the cross-k dep.


# ----------------------------------------------------------------------------
# Wrapper
# ----------------------------------------------------------------------------
def lp_forward(y, train_mask, adj, *, num_classes, K, alpha,
               matmul_dtype=jnp.bfloat16, force_streaming=False, row_tile=256):
    """LP forward: one-hot train labels + K-step propagation.

    matmul_dtype=bf16 (default) halves adj's HBM traffic / VMEM footprint and
    runs the MXU at native rate on v6e/v7x; accumulation stays f32. Pass
    jnp.float32 for exact parity with the f32 reference.
    """
    n = adj.shape[0]
    n_pad = _round_up(n, 128)
    c_pad = _round_up(max(int(num_classes), 1), 128)
    mm_size = jnp.dtype(matmul_dtype).itemsize

    # Lane-dense one-hot x0 built in the wrapper (no in-kernel relayout).
    x0 = jnp.zeros((n, num_classes), jnp.float32).at[
        jnp.arange(n), y.astype(jnp.int32)].set(train_mask.astype(jnp.float32))
    x0 = jnp.pad(x0, ((0, n_pad - n), (0, c_pad - num_classes)))
    # Pad AND pre-cast adj in HBM: the kernel never holds an extra f32 copy.
    adj_p = jnp.pad(adj.astype(jnp.float32),
                    ((0, n_pad - n), (0, n_pad - n))).astype(matmul_dtype)

    budget = _vmem_budget_bytes()
    flops = int(2 * K * n_pad * n_pad * c_pad)
    resident_need = n_pad * n_pad * mm_size + 8 * n_pad * c_pad * 4 + (1 << 20)
    use_resident = (not force_streaming) and resident_need <= budget

    if use_resident:
        vmem = pl.BlockSpec(memory_space=pltpu.MemorySpace.VMEM)
        cost = pl.CostEstimate(
            flops=flops, transcendentals=0,
            bytes_accessed=int(n_pad * n_pad * mm_size + 2 * n_pad * c_pad * 4))
        out = pl.pallas_call(
            functools.partial(_lp_resident_kernel, K=K, alpha=alpha),
            out_shape=jax.ShapeDtypeStruct((n_pad, c_pad), jnp.float32),
            in_specs=[vmem, vmem],
            out_specs=vmem,
            compiler_params=pltpu.CompilerParams(vmem_limit_bytes=int(budget)),
            cost_estimate=cost,
        )(x0, adj_p)
    else:
        tm = min(row_tile, n_pad)
        while n_pad % tm:
            tm -= 128
        cost = pl.CostEstimate(
            flops=flops, transcendentals=0,
            bytes_accessed=int(K * n_pad * n_pad * mm_size      # adj re-read per step
                               + n_pad * c_pad * 4              # x0 once
                               + K * n_pad * c_pad * 4))        # out per step
        out = pl.pallas_call(
            functools.partial(_lp_stream_kernel, alpha=alpha, tm=tm),
            out_shape=jax.ShapeDtypeStruct((n_pad, c_pad), jnp.float32),
            grid_spec=pltpu.PrefetchScalarGridSpec(
                num_scalar_prefetch=0,
                grid=(K, n_pad // tm),
                in_specs=[
                    pl.BlockSpec((n_pad, c_pad), lambda k, r: (0, 0)),  # x0 resident
                    pl.BlockSpec((tm, n_pad), lambda k, r: (r, 0)),     # adj row stream
                ],
                out_specs=pl.BlockSpec((tm, c_pad), lambda k, r: (r, 0)),
                scratch_shapes=[pltpu.VMEM((n_pad, c_pad), jnp.float32),
                                pltpu.VMEM((n_pad, c_pad), jnp.float32)],
            ),
            compiler_params=pltpu.CompilerParams(
                dimension_semantics=("arbitrary", "arbitrary"),
                vmem_limit_bytes=int(budget)),
            cost_estimate=cost,
        )(x0, adj_p)

    return out[:n, :num_classes]


def make_normalized_adj(key, n):
    """Random symmetric graph with self-loops, D^{-1/2} A D^{-1/2} normalized."""
    a = (jax.random.uniform(key, (n, n)) < 0.1).astype(jnp.float32)
    a = jnp.maximum(a, a.T)                              # symmetric
    a = jnp.maximum(a, jnp.eye(n, dtype=jnp.float32))    # self-loops
    deg = jnp.sum(a, axis=1)
    d = 1.0 / jnp.sqrt(deg)
    return a * d[:, None] * d[None, :]


# ----------------------------------------------------------------------------
if __name__ == "__main__":
    N = 256          # graph nodes
    C = 10           # number of classes   (data.y.max() + 1)
    K = 10           # propagation steps   (args.K)
    ALPHA = 0.1      # teleport probability (args.alpha)

    root = jax.random.PRNGKey(0)
    k_adj, k_y, k_mask = jax.random.split(root, 3)

    adj = make_normalized_adj(k_adj, N)
    y = jax.random.randint(k_y, (N,), 0, C, dtype=jnp.int32)
    train_mask = jax.random.uniform(k_mask, (N,)) < 0.3

    # Pure-JAX reference of the same math (init_label + APPNP propagation).
    label = jnp.zeros((N, C), jnp.float32).at[jnp.arange(N), y].set(
        train_mask.astype(jnp.float32))
    ref = label
    for _ in range(K):
        ref = (1.0 - ALPHA) * (adj @ ref) + ALPHA * label

    # 1) VMEM-resident path, f32 operands (parity check).
    out_f32 = jax.block_until_ready(
        lp_forward(y, train_mask, adj, num_classes=C, K=K, alpha=ALPHA,
                   matmul_dtype=jnp.float32))
    assert out_f32.shape == (N, C)
    assert not bool(jnp.any(jnp.isnan(out_f32)))
    err = float(jnp.max(jnp.abs(out_f32 - ref)))
    assert err < 1e-2, f"f32 resident max |err| = {err}"

    # 2) Default path: bf16 MXU operands, f32 accumulate, VMEM-resident.
    out_bf16 = jax.block_until_ready(
        lp_forward(y, train_mask, adj, num_classes=C, K=K, alpha=ALPHA))
    err = float(jnp.max(jnp.abs(out_bf16 - ref)))
    assert err < 3e-2, f"bf16 resident max |err| = {err}"

    # 3) Streaming (K, row-tile) grid path, forced at small shape (2 row tiles).
    out_stream = jax.block_until_ready(
        lp_forward(y, train_mask, adj, num_classes=C, K=K, alpha=ALPHA,
                   force_streaming=True, row_tile=128))
    err = float(jnp.max(jnp.abs(out_stream - ref)))
    assert err < 3e-2, f"bf16 streaming max |err| = {err}"

    print("KERNEL_OK")
</pallas_src>

<mosaic_0001>
module attributes {stable_mosaic.version = 11 : i64} {
  func.func @_lp_resident_kernel(%arg0: memref<256x128xf32, #tpu.memory_space<vmem>>, %arg1: memref<256x256xf32, #tpu.memory_space<vmem>>, %arg2: memref<256x128xf32, #tpu.memory_space<vmem>>) attributes {dimension_semantics = [], scalar_prefetch = 0 : i64, scratch_operands = 0 : i64, tpu.core_type = #tpu.core_type<tc>} {
    %c0 = arith.constant 0 : index
    %c0_0 = arith.constant 0 : index
    %0 = vector.load %arg0[%c0, %c0_0] : memref<256x128xf32, #tpu.memory_space<vmem>>, vector<256x128xf32>
    %c0_1 = arith.constant 0 : index
    %c0_2 = arith.constant 0 : index
    %1 = vector.load %arg1[%c0_1, %c0_2] : memref<256x256xf32, #tpu.memory_space<vmem>>, vector<256x256xf32>
    %cst = arith.constant 1.000000e-01 : f32
    %2 = vector.broadcast %cst : f32 to vector<256x128xf32>
    %3 = arith.mulf %2, %0 : vector<256x128xf32>
    %cst_3 = arith.constant dense<0.000000e+00> : vector<256x128xf32>
    %4 = tpu.matmul %1, %0, %cst_3 {dimension_numbers = #tpu.dot_dimension_numbers<[1], [0], [0], [1], [0, 0, 1, 1], [], []>} : vector<256x256xf32>, vector<256x128xf32>, vector<256x128xf32> -> vector<256x128xf32>
    %cst_4 = arith.constant 0.899999976 : f32
    %5 = vector.broadcast %cst_4 : f32 to vector<256x128xf32>
    %6 = arith.mulf %5, %4 : vector<256x128xf32>
    %7 = arith.addf %6, %3 : vector<256x128xf32>
    %cst_5 = arith.constant dense<0.000000e+00> : vector<256x128xf32>
    %8 = tpu.matmul %1, %7, %cst_5 {dimension_numbers = #tpu.dot_dimension_numbers<[1], [0], [0], [1], [0, 0, 1, 1], [], []>} : vector<256x256xf32>, vector<256x128xf32>, vector<256x128xf32> -> vector<256x128xf32>
    %cst_6 = arith.constant 0.899999976 : f32
    %9 = vector.broadcast %cst_6 : f32 to vector<256x128xf32>
    %10 = arith.mulf %9, %8 : vector<256x128xf32>
    %11 = arith.addf %10, %3 : vector<256x128xf32>
    %cst_7 = arith.constant dense<0.000000e+00> : vector<256x128xf32>
    %12 = tpu.matmul %1, %11, %cst_7 {dimension_numbers = #tpu.dot_dimension_numbers<[1], [0], [0], [1], [0, 0, 1, 1], [], []>} : vector<256x256xf32>, vector<256x128xf32>, vector<256x128xf32> -> vector<256x128xf32>
    %cst_8 = arith.constant 0.899999976 : f32
    %13 = vector.broadcast %cst_8 : f32 to vector<256x128xf32>
    %14 = arith.mulf %13, %12 : vector<256x128xf32>
    %15 = arith.addf %14, %3 : vector<256x128xf32>
    %cst_9 = arith.constant dense<0.000000e+00> : vector<256x128xf32>
    %16 = tpu.matmul %1, %15, %cst_9 {dimension_numbers = #tpu.dot_dimension_numbers<[1], [0], [0], [1], [0, 0, 1, 1], [], []>} : vector<256x256xf32>, vector<256x128xf32>, vector<256x128xf32> -> vector<256x128xf32>
    %cst_10 = arith.constant 0.899999976 : f32
    %17 = vector.broadcast %cst_10 : f32 to vector<256x128xf32>
    %18 = arith.mulf %17, %16 : vector<256x128xf32>
    %19 = arith.addf %18, %3 : vector<256x128xf32>
    %cst_11 = arith.constant dense<0.000000e+00> : vector<256x128xf32>
    %20 = tpu.matmul %1, %19, %cst_11 {dimension_numbers = #tpu.dot_dimension_numbers<[1], [0], [0], [1], [0, 0, 1, 1], [], []>} : vector<256x256xf32>, vector<256x128xf32>, vector<256x128xf32> -> vector<256x128xf32>
    %cst_12 = arith.constant 0.899999976 : f32
    %21 = vector.broadcast %cst_12 : f32 to vector<256x128xf32>
    %22 = arith.mulf %21, %20 : vector<256x128xf32>
    %23 = arith.addf %22, %3 : vector<256x128xf32>
    %cst_13 = arith.constant dense<0.000000e+00> : vector<256x128xf32>
    %24 = tpu.matmul %1, %23, %cst_13 {dimension_numbers = #tpu.dot_dimension_numbers<[1], [0], [0], [1], [0, 0, 1, 1], [], []>} : vector<256x256xf32>, vector<256x128xf32>, vector<256x128xf32> -> vector<256x128xf32>
    %cst_14 = arith.constant 0.899999976 : f32
    %25 = vector.broadcast %cst_14 : f32 to vector<256x128xf32>
    %26 = arith.mulf %25, %24 : vector<256x128xf32>
    %27 = arith.addf %26, %3 : vector<256x128xf32>
    %cst_15 = arith.constant dense<0.000000e+00> : vector<256x128xf32>
    %28 = tpu.matmul %1, %27, %cst_15 {dimension_numbers = #tpu.dot_dimension_numbers<[1], [0], [0], [1], [0, 0, 1, 1], [], []>} : vector<256x256xf32>, vector<256x128xf32>, vector<256x128xf32> -> vector<256x128xf32>
    %cst_16 = arith.constant 0.899999976 : f32
    %29 = vector.broadcast %cst_16 : f32 to vector<256x128xf32>
    %30 = arith.mulf %29, %28 : vector<256x128xf32>
    %31 = arith.addf %30, %3 : vector<256x128xf32>
    %cst_17 = arith.constant dense<0.000000e+00> : vector<256x128xf32>
    %32 = tpu.matmul %1, %31, %cst_17 {dimension_numbers = #tpu.dot_dimension_numbers<[1], [0], [0], [1], [0, 0, 1, 1], [], []>} : vector<256x256xf32>, vector<256x128xf32>, vector<256x128xf32> -> vector<256x128xf32>
    %cst_18 = arith.constant 0.899999976 : f32
    %33 = vector.broadcast %cst_18 : f32 to vector<256x128xf32>
    %34 = arith.mulf %33, %32 : vector<256x128xf32>
    %35 = arith.addf %34, %3 : vector<256x128xf32>
    %cst_19 = arith.constant dense<0.000000e+00> : vector<256x128xf32>
    %36 = tpu.matmul %1, %35, %cst_19 {dimension_numbers = #tpu.dot_dimension_numbers<[1], [0], [0], [1], [0, 0, 1, 1], [], []>} : vector<256x256xf32>, vector<256x128xf32>, vector<256x128xf32> -> vector<256x128xf32>
    %cst_20 = arith.constant 0.899999976 : f32
    %37 = vector.broadcast %cst_20 : f32 to vector<256x128xf32>
    %38 = arith.mulf %37, %36 : vector<256x128xf32>
    %39 = arith.addf %38, %3 : vector<256x128xf32>
    %cst_21 = arith.constant dense<0.000000e+00> : vector<256x128xf32>
    %40 = tpu.matmul %1, %39, %cst_21 {dimension_numbers = #tpu.dot_dimension_numbers<[1], [0], [0], [1], [0, 0, 1, 1], [], []>} : vector<256x256xf32>, vector<256x128xf32>, vector<256x128xf32> -> vector<256x128xf32>
    %cst_22 = arith.constant 0.899999976 : f32
    %41 = vector.broadcast %cst_22 : f32 to vector<256x128xf32>
    %42 = arith.mulf %41, %40 : vector<256x128xf32>
    %43 = arith.addf %42, %3 : vector<256x128xf32>
    %c0_23 = arith.constant 0 : index
    %c0_24 = arith.constant 0 : index
    %44 = vector.load %arg2[%c0_23, %c0_24] : memref<256x128xf32, #tpu.memory_space<vmem>>, vector<256x128xf32>
    tpu.vector_store %arg2[%c0_23, %c0_24], %43 {strides = array<i32>} : memref<256x128xf32, #tpu.memory_space<vmem>>, vector<256x128xf32>,
    return
  }
}

</mosaic_0001>

<llo_original>
// kernel: tpu_custom_call.1
$region0: #{tpu_custom_call.1}
  #allocation0 [shape = 'u32[]', space=smem, size = 0x4, offset = 0x4, fixed_abs, tag = 'smem constant byte address 0x4 - core index']
  #allocation1 [shape = 'u32[144,128]{1,0:T(1,128)}', space=vmem, size = 0x12000, scoped, tag = 'internal scratch']
  %s0 = inlined_call_operand.hbm [shape: f32[256,128], index: 0, kind: input, shape index: {}]
  %s1 = inlined_call_operand.hbm [shape: f32[256,256], index: 1, kind: input, shape index: {}]
  %s2 = inlined_call_operand.hbm [shape: f32[256,128], index: 2, kind: output, shape index: {}]
  %s3 = sld [smem:[#allocation0]]
  $region26: #{tpu_custom_call.1} parent=0
    _
  %s5 = ssub.s32 1, %s3
  %s6 = scalar_select 0, %s5, %s3
  $region1: #{tpu_custom_call.1} parent=0
    #allocation2 [shape = 'u8[131072]{0}', space=vmem, size = 0x20000, scoped, tag = 'input window, operand 0, single buffered']
    #allocation3 [shape = 's32[1]{0}', space=sflag, size = 0x4, scoped, tag = 'scoped memory for tpu_custom_call.1']
    #allocation4 [shape = 's32[1]{0}', space=sflag, size = 0x4, scoped, tag = 'scoped memory for tpu_custom_call.1']
    #allocation5 [shape = 'u8[262144]{0}', space=vmem, size = 0x40000, scoped, tag = 'input window, operand 1, single buffered']
    #allocation6 [shape = 's32[1]{0}', space=sflag, size = 0x4, scoped, tag = 'scoped memory for tpu_custom_call.1']
    #allocation7 [shape = 'u8[131072]{0}', space=vmem, size = 0x20000, scoped, tag = 'output window, operand 0, single buffered']
    %7 = vsyncpa [#allocation3], 0
    %8 = vsyncpa [#allocation6], 0
    %9 = vsyncpa [#allocation4], 0
    // Predicated region
    $region2: #{tpu_custom_call.1} parent=1 // pred_check
      _
    $region3: #{tpu_custom_call.1} parent=1 // pred_check_branch
      %11 = sbr.rel (0) target = $region5
    $region4: #{tpu_custom_call.1} parent=1 // pred_region
      %s13 = ssub.s32 4096, 4096
      %14 = vsyncadd [#allocation3], %s13
      %s15 = sshll.u32 [#allocation2], 4
      %s16 = int_to_ptr.vmem [resolvable:$true] %s15
      %21 = dma.hbm_to_vmem [thread:$0]  %s0, 4096, %s16, [#allocation3], 128, 128, 8
    $region5: #{tpu_custom_call.1} parent=1 // pred_fallthru
      _
    // Predicated region
    $region6: #{tpu_custom_call.1} parent=1 // pred_check
      _
    $region7: #{tpu_custom_call.1} parent=1 // pred_check_branch
      %23 = sbr.rel (0) target = $region9
    $region8: #{tpu_custom_call.1} parent=1 // pred_region
      %s25 = ssub.s32 8192, 8192
      %26 = vsyncadd [#allocation6], %s25
      %s27 = sshll.u32 [#allocation5], 4
      %s28 = int_to_ptr.vmem [resolvable:$true] %s27
      %33 = dma.hbm_to_vmem [thread:$0]  %s1, 8192, %s28, [#allocation6], 256, 256, 16
    $region9: #{tpu_custom_call.1} parent=1 // pred_fallthru
      _
    // Predicated region
    $region10: #{tpu_custom_call.1} parent=1 // pred_check
      _
    $region11: #{tpu_custom_call.1} parent=1 // pred_check_branch
      %35 = sbr.rel (0) target = $region13
    $region12: #{tpu_custom_call.1} parent=1 // pred_region
      %36 = dma.done [#allocation3], 4096
    $region13: #{tpu_custom_call.1} parent=1 // pred_fallthru
      _
    // Predicated region
    $region14: #{tpu_custom_call.1} parent=1 // pred_check
      _
    $region15: #{tpu_custom_call.1} parent=1 // pred_check_branch
      %38 = sbr.rel (0) target = $region17
    $region16: #{tpu_custom_call.1} parent=1 // pred_region
      %39 = dma.done [#allocation6], 8192
    $region17: #{tpu_custom_call.1} parent=1 // pred_fallthru
      _
    %v40 = vld [vmem:[#allocation2] sm:$0xff]
    %v41 = vld [vmem:[#allocation2 + $0x8] sm:$0xff]
    %v42 = vld [vmem:[#allocation2 + $0x10] sm:$0xff]
    %v43 = vld [vmem:[#allocation2 + $0x18] sm:$0xff]
    %v44 = vld [vmem:[#allocation2 + $0x20] sm:$0xff]
    %v45 = vld [vmem:[#allocation2 + $0x28] sm:$0xff]
    %v46 = vld [vmem:[#allocation2 + $0x30] sm:$0xff]
    %v47 = vld [vmem:[#allocation2 + $0x38] sm:$0xff]
    %v48 = vld [vmem:[#allocation2 + $0x40] sm:$0xff]
    %v49 = vld [vmem:[#allocation2 + $0x48] sm:$0xff]
    %v50 = vld [vmem:[#allocation2 + $0x50] sm:$0xff]
    %v51 = vld [vmem:[#allocation2 + $0x58] sm:$0xff]
    %v52 = vld [vmem:[#allocation2 + $0x60] sm:$0xff]
    %v53 = vld [vmem:[#allocation2 + $0x68] sm:$0xff]
    %v54 = vld [vmem:[#allocation2 + $0x70] sm:$0xff]
    %v55 = vld [vmem:[#allocation2 + $0x78] sm:$0xff]
    %v56 = vld [vmem:[#allocation2 + $0x80] sm:$0xff]
    %v57 = vld [vmem:[#allocation2 + $0x88] sm:$0xff]
    %v58 = vld [vmem:[#allocation2 + $0x90] sm:$0xff]
    %v59 = vld [vmem:[#allocation2 + $0x98] sm:$0xff]
    %v60 = vld [vmem:[#allocation2 + $0xa0] sm:$0xff]
    %v61 = vld [vmem:[#allocation2 + $0xa8] sm:$0xff]
    %v62 = vld [vmem:[#allocation2 + $0xb0] sm:$0xff]
    %v63 = vld [vmem:[#allocation2 + $0xb8] sm:$0xff]
    %v64 = vld [vmem:[#allocation2 + $0xc0] sm:$0xff]
    %v65 = vld [vmem:[#allocation2 + $0xc8] sm:$0xff]
    %v66 = vld [vmem:[#allocation2 + $0xd0] sm:$0xff]
    %v67 = vld [vmem:[#allocation2 + $0xd8] sm:$0xff]
    %v68 = vld [vmem:[#allocation2 + $0xe0] sm:$0xff]
    %v69 = vld [vmem:[#allocation2 + $0xe8] sm:$0xff]
    %v70 = vld [vmem:[#allocation2 + $0xf0] sm:$0xff]
    %v71 = vld [vmem:[#allocation2 + $0xf8] sm:$0xff]
    %v72 = vld [vmem:[#allocation5] sm:$0xff]
    %v73 = vld [vmem:[#allocation5 + $0x8] sm:$0xff]
    %v74 = vld [vmem:[#allocation5 + $0x10] sm:$0xff]
    %v75 = vld [vmem:[#allocation5 + $0x18] sm:$0xff]
    %v76 = vld [vmem:[#allocation5 + $0x20] sm:$0xff]
    %v77 = vld [vmem:[#allocation5 + $0x28] sm:$0xff]
    %v78 = vld [vmem:[#allocation5 + $0x30] sm:$0xff]
    %v79 = vld [vmem:[#allocation5 + $0x38] sm:$0xff]
    %v80 = vld [vmem:[#allocation5 + $0x40] sm:$0xff]
    %v81 = vld [vmem:[#allocation5 + $0x48] sm:$0xff]
    %v82 = vld [vmem:[#allocation5 + $0x50] sm:$0xff]
    %v83 = vld [vmem:[#allocation5 + $0x58] sm:$0xff]
    %v84 = vld [vmem:[#allocation5 + $0x60] sm:$0xff]
    %v85 = vld [vmem:[#allocation5 + $0x68] sm:$0xff]
    %v86 = vld [vmem:[#allocation5 + $0x70] sm:$0xff]
    %v87 = vld [vmem:[#allocation5 + $0x78] sm:$0xff]
    %v88 = vld [vmem:[#allocation5 + $0x80] sm:$0xff]
    %v89 = vld [vmem:[#allocation5 + $0x88] sm:$0xff]
    %v90 = vld [vmem:[#allocation5 + $0x90] sm:$0xff]
    %v91 = vld [vmem:[#allocation5 + $0x98] sm:$0xff]
    %v92 = vld [vmem:[#allocation5 + $0xa0] sm:$0xff]
    %v93 = vld [vmem:[#allocation5 + $0xa8] sm:$0xff]
    %v94 = vld [vmem:[#allocation5 + $0xb0] sm:$0xff]
    %v95 = vld [vmem:[#allocation5 + $0xb8] sm:$0xff]
    %v96 = vld [vmem:[#allocation5 + $0xc0] sm:$0xff]
    %v97 = vld [vmem:[#allocation5 + $0xc8] sm:$0xff]
    %v98 = vld [vmem:[#allocation5 + $0xd0] sm:$0xff]
    %v99 = vld [vmem:[#allocation5 + $0xd8] sm:$0xff]
    %v100 = vld [vmem:[#allocation5 + $0xe0] sm:$0xff]
    %v101 = vld [vmem:[#allocation5 + $0xe8] sm:$0xff]
    %v102 = vld [vmem:[#allocation5 + $0xf0] sm:$0xff]
    %v103 = vld [vmem:[#allocation5 + $0xf8] sm:$0xff]
    %v104 = vld [vmem:[#allocation5 + $0x100] sm:$0xff]
    %v105 = vld [vmem:[#allocation5 + $0x108] sm:$0xff]
    %v106 = vld [vmem:[#allocation5 + $0x110] sm:$0xff]
    %v107 = vld [vmem:[#allocation5 + $0x118] sm:$0xff]
    %v108 = vld [vmem:[#allocation5 + $0x120] sm:$0xff]
    %v109 = vld [vmem:[#allocation5 + $0x128] sm:$0xff]
    %v110 = vld [vmem:[#allocation5 + $0x130] sm:$0xff]
    %v111 = vld [vmem:[#allocation5 + $0x138] sm:$0xff]
    %v112 = vld [vmem:[#allocation5 + $0x140] sm:$0xff]
    %v113 = vld [vmem:[#allocation5 + $0x148] sm:$0xff]
    %v114 = vld [vmem:[#allocation5 + $0x150] sm:$0xff]
    %v115 = vld [vmem:[#allocation5 + $0x158] sm:$0xff]
    %v116 = vld [vmem:[#allocation5 + $0x160] sm:$0xff]
    %v117 = vld [vmem:[#allocation5 + $0x168] sm:$0xff]
    %v118 = vld [vmem:[#allocation5 + $0x170] sm:$0xff]
    %v119 = vld [vmem:[#allocation5 + $0x178] sm:$0xff]
    %v120 = vld [vmem:[#allocation5 + $0x180] sm:$0xff]
    %v121 = vld [vmem:[#allocation5 + $0x188] sm:$0xff]
    %v122 = vld [vmem:[#allocation5 + $0x190] sm:$0xff]
    %v123 = vld [vmem:[#allocation5 + $0x198] sm:$0xff]
    %v124 = vld [vmem:[#allocation5 + $0x1a0] sm:$0xff]
    %v125 = vld [vmem:[#allocation5 + $0x1a8] sm:$0xff]
    %v126 = vld [vmem:[#allocation5 + $0x1b0] sm:$0xff]
    %v127 = vld [vmem:[#allocation5 + $0x1b8] sm:$0xff]
    %v128 = vld [vmem:[#allocation5 + $0x1c0] sm:$0xff]
    %v129 = vld [vmem:[#allocation5 + $0x1c8] sm:$0xff]
    %v130 = vld [vmem:[#allocation5 + $0x1d0] sm:$0xff]
    %v131 = vld [vmem:[#allocation5 + $0x1d8] sm:$0xff]
    %v132 = vld [vmem:[#allocation5 + $0x1e0] sm:$0xff]
    %v133 = vld [vmem:[#allocation5 + $0x1e8] sm:$0xff]
    %v134 = vld [vmem:[#allocation5 + $0x1f0] sm:$0xff]
    %v135 = vld [vmem:[#allocation5 + $0x1f8] sm:$0xff]
    %v136 = vmul.f32 %v40, 0.1
    %v137 = vmul.f32 %v41, 0.1
    %v138 = vmul.f32 %v42, 0.1
    %v139 = vmul.f32 %v43, 0.1
    %v140 = vmul.f32 %v44, 0.1
    %v141 = vmul.f32 %v45, 0.1
    %v142 = vmul.f32 %v46, 0.1
    %v143 = vmul.f32 %v47, 0.1
    %v144 = vmul.f32 %v48, 0.1
    %v145 = vmul.f32 %v49, 0.1
    %v146 = vmul.f32 %v50, 0.1
    %v147 = vmul.f32 %v51, 0.1
    %v148 = vmul.f32 %v52, 0.1
    %v149 = vmul.f32 %v53, 0.1
    %v150 = vmul.f32 %v54, 0.1
    %v151 = vmul.f32 %v55, 0.1
    %v152 = vmul.f32 %v56, 0.1
    %v153 = vmul.f32 %v57, 0.1
    %v154 = vmul.f32 %v58, 0.1
    %v155 = vmul.f32 %v59, 0.1
    %v156 = vmul.f32 %v60, 0.1
    %v157 = vmul.f32 %v61, 0.1
    %v158 = vmul.f32 %v62, 0.1
    %v159 = vmul.f32 %v63, 0.1
    %v160 = vmul.f32 %v64, 0.1
    %v161 = vmul.f32 %v65, 0.1
    %v162 = vmul.f32 %v66, 0.1
    %v163 = vmul.f32 %v67, 0.1
    %v164 = vmul.f32 %v68, 0.1
    %v165 = vmul.f32 %v69, 0.1
    %v166 = vmul.f32 %v70, 0.1
    %v167 = vmul.f32 %v71, 0.1
    %168 = vmatprep.subr.mxu0 0.0
    %169 = vmatpush1.msra.mxu0 %v40
    %170 = vmatprep.subr.mxu0 0.0
    %171 = vmatpush1.msra.mxu0 %v41
    %172 = vmatprep.subr.mxu0 0.0
    %173 = vmatpush1.msra.mxu0 %v42
    %174 = vmatprep.subr.mxu0 0.0
    %175 = vmatpush1.msra.mxu0 %v43
    %176 = vmatprep.subr.mxu0 0.0
    %177 = vmatpush1.msra.mxu0 %v44
    %178 = vmatprep.subr.mxu0 0.0
    %179 = vmatpush1.msra.mxu0 %v45
    %180 = vmatprep.subr.mxu0 0.0
    %181 = vmatpush1.msra.mxu0 %v46
    %182 = vmatprep.subr.mxu0 0.0
    %183 = vmatpush1.msra.mxu0 %v47
    %184 = vmatprep.subr.mxu0 0.0
    %185 = vmatpush1.msra.mxu0 %v48
    %186 = vmatprep.subr.mxu0 0.0
    %187 = vmatpush1.msra.mxu0 %v49
    %188 = vmatprep.subr.mxu0 0.0
    %189 = vmatpush1.msra.mxu0 %v50
    %190 = vmatprep.subr.mxu0 0.0
    %191 = vmatpush1.msra.mxu0 %v51
    %192 = vmatprep.subr.mxu0 0.0
    %193 = vmatpush1.msra.mxu0 %v52
    %194 = vmatprep.subr.mxu0 0.0
    %195 = vmatpush1.msra.mxu0 %v53
    %196 = vmatprep.subr.mxu0 0.0
    %197 = vmatpush1.msra.mxu0 %v54
    %198 = vmatprep.subr.mxu0 0.0
    %199 = vmatpush1.msra.mxu0 %v55
    %200 = vmatprep.subr.mxu0 0.0
    %201 = vmatpush1.msra.mxu0 %v56
    %202 = vmatprep.subr.mxu0 0.0
    %203 = vmatpush1.msra.mxu0 %v57
    %204 = vmatprep.subr.mxu0 0.0
    %205 = vmatpush1.msra.mxu0 %v58
    %206 = vmatprep.subr.mxu0 0.0
    %207 = vmatpush1.msra.mxu0 %v59
    %208 = vmatprep.subr.mxu0 0.0
    %209 = vmatpush1.msra.mxu0 %v60
    %210 = vmatprep.subr.mxu0 0.0
    %211 = vmatpush1.msra.mxu0 %v61
    %212 = vmatprep.subr.mxu0 0.0
    %213 = vmatpush1.msra.mxu0 %v62
    %214 = vmatprep.subr.mxu0 0.0
    %215 = vmatpush1.msra.mxu0 %v63
    %216 = vmatprep.subr.mxu0 0.0
    %217 = vmatpush1.msra.mxu0 %v64
    %218 = vmatprep.subr.mxu0 0.0
    %219 = vmatpush1.msra.mxu0 %v65
    %220 = vmatprep.subr.mxu0 0.0
    %221 = vmatpush1.msra.mxu0 %v66
    %222 = vmatprep.subr.mxu0 0.0
    %223 = vmatpush1.msra.mxu0 %v67
    %224 = vmatprep.subr.mxu0 0.0
    %225 = vmatpush1.msra.mxu0 %v68
    %226 = vmatprep.subr.mxu0 0.0
    %227 = vmatpush1.msra.mxu0 %v69
    %228 = vmatprep.subr.mxu0 0.0
    %229 = vmatpush1.msra.mxu0 %v70
    %230 = vmatprep.subr.mxu0 0.0
    %231 = vmatpush1.msra.mxu0 %v71
    %232 = vmatprep.mubr.f32.mxu0 %v73
    %233 = vmatmul.mubr.f32.gmra.mrb[0].mxu0 %v72
    %v234 = vpop.f32.mrb[0].mxu0
    %v235 = vadd.f32 0.0, %v234
    %v236 = vpop.f32.mrb[0].mxu0
    %237 = vmatprep.mubr.f32.mxu0 %v75
    %238 = vmatmul.mubr.f32.gmra.mrb[0].mxu0 %v74
    %v239 = vpop.f32.mrb[0].mxu0
    %v240 = vadd.f32 0.0, %v239
    %v241 = vpop.f32.mrb[0].mxu0
    %242 = vmatprep.mubr.f32.mxu0 %v77
    %243 = vmatmul.mubr.f32.gmra.mrb[0].mxu0 %v76
    %v244 = vpop.f32.mrb[0].mxu0
    %v245 = vadd.f32 0.0, %v244
    %v246 = vpop.f32.mrb[0].mxu0
    %247 = vmatprep.mubr.f32.mxu0 %v79
    %248 = vmatmul.mubr.f32.gmra.mrb[0].mxu0 %v78
    %v249 = vpop.f32.mrb[0].mxu0
    %v250 = vadd.f32 0.0, %v249
    %v251 = vpop.f32.mrb[0].mxu0
    %252 = vmatprep.mubr.f32.mxu0 %v81
    %253 = vmatmul.mubr.f32.gmra.mrb[0].mxu0 %v80
    %v254 = vpop.f32.mrb[0].mxu0
    %v255 = vadd.f32 0.0, %v254
    %v256 = vpop.f32.mrb[0].mxu0
    %257 = vmatprep.mubr.f32.mxu0 %v83
    %258 = vmatmul.mubr.f32.gmra.mrb[0].mxu0 %v82
    %v259 = vpop.f32.mrb[0].mxu0
    %v260 = vadd.f32 0.0, %v259
    %v261 = vpop.f32.mrb[0].mxu0
    %262 = vmatprep.mubr.f32.mxu0 %v85
    %263 = vmatmul.mubr.f32.gmra.mrb[0].mxu0 %v84
    %v264 = vpop.f32.mrb[0].mxu0
    %v265 = vadd.f32 0.0, %v264
    %v266 = vpop.f32.mrb[0].mxu0
    %267 = vmatprep.mubr.f32.mxu0 %v87
    %268 = vmatmul.mubr.f32.gmra.mrb[0].mxu0 %v86
    %v269 = vpop.f32.mrb[0].mxu0
    %v270 = vadd.f32 0.0, %v269
    %v271 = vpop.f32.mrb[0].mxu0
    %272 = vmatprep.mubr.f32.mxu0 %v89
    %273 = vmatmul.mubr.f32.gmra.mrb[0].mxu0 %v88
    %v274 = vpop.f32.mrb[0].mxu0
    %v275 = vadd.f32 0.0, %v274
    %v276 = vpop.f32.mrb[0].mxu0
    %277 = vmatprep.mubr.f32.mxu0 %v91
    %278 = vmatmul.mubr.f32.gmra.mrb[0].mxu0 %v90
    %v279 = vpop.f32.mrb[0].mxu0
    %v280 = vadd.f32 0.0, %v279
    %v281 = vpop.f32.mrb[0].mxu0
    %282 = vmatprep.mubr.f32.mxu0 %v93
    %283 = vmatmul.mubr.f32.gmra.mrb[0].mxu0 %v92
    %v284 = vpop.f32.mrb[0].mxu0
    %v285 = vadd.f32 0.0, %v284
    %v286 = vpop.f32.mrb[0].mxu0
    %287 = vmatprep.mubr.f32.mxu0 %v95
    %288 = vmatmul.mubr.f32.gmra.mrb[0].mxu0 %v94
    %v289 = vpop.f32.mrb[0].mxu0
    %v290 = vadd.f32 0.0, %v289
    %v291 = vpop.f32.mrb[0].mxu0
    %292 = vmatprep.mubr.f32.mxu0 %v97
    %293 = vmatmul.mubr.f32.gmra.mrb[0].mxu0 %v96
    %v294 = vpop.f32.mrb[0].mxu0
    %v295 = vadd.f32 0.0, %v294
    %v296 = vpop.f32.mrb[0].mxu0
    %297 = vmatprep.mubr.f32.mxu0 %v99
    %298 = vmatmul.mubr.f32.gmra.mrb[0].mxu0 %v98
    %v299 = vpop.f32.mrb[0].mxu0
    %v300 = vadd.f32 0.0, %v299
    %v301 = vpop.f32.mrb[0].mxu0
    %302 = vmatprep.mubr.f32.mxu0 %v101
    %303 = vmatmul.mubr.f32.gmra.mrb[0].mxu0 %v100
    %v304 = vpop.f32.mrb[0].mxu0
    %v305 = vadd.f32 0.0, %v304
    %v306 = vpop.f32.mrb[0].mxu0
    %307 = vmatprep.mubr.f32.mxu0 %v103
    %308 = vmatmul.mubr.f32.gmra.mrb[0].mxu0 %v102
    %v309 = vpop.f32.mrb[0].mxu0
    %v310 = vadd.f32 0.0, %v309
    %v311 = vpop.f32.mrb[0].mxu0
    %312 = vmatprep.mubr.f32.mxu0 %v105
    %313 = vmatmul.mubr.f32.gmra.mrb[0].mxu0 %v104
    %v314 = vpop.f32.mrb[0].mxu0
    %v315 = vadd.f32 0.0, %v314
    %v316 = vpop.f32.mrb[0].mxu0
    %317 = vmatprep.mubr.f32.mxu0 %v107
    %318 = vmatmul.mubr.f32.gmra.mrb[0].mxu0 %v106
    %v319 = vpop.f32.mrb[0].mxu0
    %v320 = vadd.f32 0.0, %v319
    %v321 = vpop.f32.mrb[0].mxu0
    %322 = vmatprep.mubr.f32.mxu0 %v109
    %323 = vmatmul.mubr.f32.gmra.mrb[0].mxu0 %v108
    %v324 = vpop.f32.mrb[0].mxu0
    %v325 = vadd.f32 0.0, %v324
    %v326 = vpop.f32.mrb[0].mxu0
    %327 = vmatprep.mubr.f32.mxu0 %v111
    %328 = vmatmul.mubr.f32.gmra.mrb[0].mxu0 %v110
    %v329 = vpop.f32.mrb[0].mxu0
    %v330 = vadd.f32 0.0, %v329
    %v331 = vpop.f32.mrb[0].mxu0
    %332 = vmatprep.mubr.f32.mxu0 %v113
    %333 = vmatmul.mubr.f32.gmra.mrb[0].mxu0 %v112
    %v334 = vpop.f32.mrb[0].mxu0
    %v335 = vadd.f32 0.0, %v334
    %v336 = vpop.f32.mrb[0].mxu0
    %337 = vmatprep.mubr.f32.mxu0 %v115
    %338 = vmatmul.mubr.f32.gmra.mrb[0].mxu0 %v114
    %v339 = vpop.f32.mrb[0].mxu0
    %v340 = vadd.f32 0.0, %v339
    %v341 = vpop.f32.mrb[0].mxu0
    %342 = vmatprep.mubr.f32.mxu0 %v117
    %343 = vmatmul.mubr.f32.gmra.mrb[0].mxu0 %v116
    %v344 = vpop.f32.mrb[0].mxu0
    %v345 = vadd.f32 0.0, %v344
    %v346 = vpop.f32.mrb[0].mxu0
    %347 = vmatprep.mubr.f32.mxu0 %v119
    %348 = vmatmul.mubr.f32.gmra.mrb[0].mxu0 %v118
    %v349 = vpop.f32.mrb[0].mxu0
    %v350 = vadd.f32 0.0, %v349
    %v351 = vpop.f32.mrb[0].mxu0
    %352 = vmatprep.mubr.f32.mxu0 %v121
    %353 = vmatmul.mubr.f32.gmra.mrb[0].mxu0 %v120
    %v354 = vpop.f32.mrb[0].mxu0
    %v355 = vadd.f32 0.0, %v354
    %v356 = vpop.f32.mrb[0].mxu0
    %357 = vmatprep.mubr.f32.mxu0 %v123
    %358 = vmatmul.mubr.f32.gmra.mrb[0].mxu0 %v122
    %v359 = vpop.f32.mrb[0].mxu0
    %v360 = vadd.f32 0.0, %v359
    %v361 = vpop.f32.mrb[0].mxu0
    %362 = vmatprep.mubr.f32.mxu0 %v125
    %363 = vmatmul.mubr.f32.gmra.mrb[0].mxu0 %v124
    %v364 = vpop.f32.mrb[0].mxu0
    %v365 = vadd.f32 0.0, %v364
    %v366 = vpop.f32.mrb[0].mxu0
    %367 = vmatprep.mubr.f32.mxu0 %v127
    %368 = vmatmul.mubr.f32.gmra.mrb[0].mxu0 %v126
    %v369 = vpop.f32.mrb[0].mxu0
    %v370 = vadd.f32 0.0, %v369
    %v371 = vpop.f32.mrb[0].mxu0
    %372 = vmatprep.mubr.f32.mxu0 %v129
    %373 = vmatmul.mubr.f32.gmra.mrb[0].mxu0 %v128
    %v374 = vpop.f32.mrb[0].mxu0
    %v375 = vadd.f32 0.0, %v374
    %v376 = vpop.f32.mrb[0].mxu0
    %377 = vmatprep.mubr.f32.mxu0 %v131
    %378 = vmatmul.mubr.f32.gmra.mrb[0].mxu0 %v130
    %v379 = vpop.f32.mrb[0].mxu0
    %v380 = vadd.f32 0.0, %v379
    %v381 = vpop.f32.mrb[0].mxu0
    %382 = vmatprep.mubr.f32.mxu0 %v133
    %383 = vmatmul.mubr.f32.gmra.mrb[0].mxu0 %v132
    %v384 = vpop.f32.mrb[0].mxu0
    %v385 = vadd.f32 0.0, %v384
    %v386 = vpop.f32.mrb[0].mxu0
    %387 = vmatprep.mubr.f32.mxu0 %v135
    %388 = vmatmul.mubr.f32.gmra.mrb[0].mxu0 %v134
    %v389 = vpop.f32.mrb[0].mxu0
    %v390 = vadd.f32 0.0, %v389
    %v391 = vpop.f32.mrb[0].mxu0
    %392 = vdwg.mxu0
    %v393 = vmul.f32 %v235, 0.9
    %v394 = vmul.f32 %v240, 0.9
    %v395 = vmul.f32 %v245, 0.9
    %v396 = vmul.f32 %v250, 0.9
    %v397 = vmul.f32 %v255, 0.9
    %v398 = vmul.f32 %v260, 0.9
    %v399 = vmul.f32 %v265, 0.9
    %v400 = vmul.f32 %v270, 0.9
    %v401 = vmul.f32 %v275, 0.9
    %v402 = vmul.f32 %v280, 0.9
    %v403 = vmul.f32 %v285, 0.9
    %v404 = vmul.f32 %v290, 0.9
    %v405 = vmul.f32 %v295, 0.9
    %v406 = vmul.f32 %v300, 0.9
    %v407 = vmul.f32 %v305, 0.9
    %v408 = vmul.f32 %v310, 0.9
    %v409 = vmul.f32 %v315, 0.9
    %v410 = vmul.f32 %v320, 0.9
    %v411 = vmul.f32 %v325, 0.9
    %v412 = vmul.f32 %v330, 0.9
    %v413 = vmul.f32 %v335, 0.9
    %v414 = vmul.f32 %v340, 0.9
    %v415 = vmul.f32 %v345, 0.9
    %v416 = vmul.f32 %v350, 0.9
    %v417 = vmul.f32 %v355, 0.9
    %v418 = vmul.f32 %v360, 0.9
    %v419 = vmul.f32 %v365, 0.9
    %v420 = vmul.f32 %v370, 0.9
    %v421 = vmul.f32 %v375, 0.9
    %v422 = vmul.f32 %v380, 0.9
    %v423 = vmul.f32 %v385, 0.9
    %v424 = vmul.f32 %v390, 0.9
    %v425 = vadd.f32 %v393, %v136
    %v426 = vadd.f32 %v394, %v137
    %v427 = vadd.f32 %v395, %v138
    %v428 = vadd.f32 %v396, %v139
    %v429 = vadd.f32 %v397, %v140
    %v430 = vadd.f32 %v398, %v141
    %v431 = vadd.f32 %v399, %v142
    %v432 = vadd.f32 %v400, %v143
    %v433 = vadd.f32 %v401, %v144
    %v434 = vadd.f32 %v402, %v145
    %v435 = vadd.f32 %v403, %v146
    %v436 = vadd.f32 %v404, %v147
    %v437 = vadd.f32 %v405, %v148
    %v438 = vadd.f32 %v406, %v149
    %v439 = vadd.f32 %v407, %v150
    %v440 = vadd.f32 %v408, %v151
    %v441 = vadd.f32 %v409, %v152
    %v442 = vadd.f32 %v410, %v153
    %v443 = vadd.f32 %v411, %v154
    %v444 = vadd.f32 %v412, %v155
    %v445 = vadd.f32 %v413, %v156
    %v446 = vadd.f32 %v414, %v157
    %v447 = vadd.f32 %v415, %v158
    %v448 = vadd.f32 %v416, %v159
    %v449 = vadd.f32 %v417, %v160
    %v450 = vadd.f32 %v418, %v161
    %v451 = vadd.f32 %v419, %v162
    %v452 = vadd.f32 %v420, %v163
    %v453 = vadd.f32 %v421, %v164
    %v454 = vadd.f32 %v422, %v165
    %v455 = vadd.f32 %v423, %v166
    %v456 = vadd.f32 %v424, %v167
    %457 = vmatprep.subr.mxu0 0.0
    %458 = vmatpush1.msra.mxu0 %v425
    %459 = vmatprep.subr.mxu0 0.0
    %460 = vmatpush1.msra.mxu0 %v426
    %461 = vmatprep.subr.mxu0 0.0
    %462 = vmatpush1.msra.mxu0 %v427
    %463 = vmatprep.subr.mxu0 0.0
    %464 = vmatpush1.msra.mxu0 %v428
    %465 = vmatprep.subr.mxu0 0.0
    %466 = vmatpush1.msra.mxu0 %v429
    %467 = vmatprep.subr.mxu0 0.0
    %468 = vmatpush1.msra.mxu0 %v430
    %469 = vmatprep.subr.mxu0 0.0
    %470 = vmatpush1.msra.mxu0 %v431
    %471 = vmatprep.subr.mxu0 0.0
    %472 = vmatpush1.msra.mxu0 %v432
    %473 = vmatprep.subr.mxu0 0.0
    %474 = vmatpush1.msra.mxu0 %v433
    %475 = vmatprep.subr.mxu0 0.0
    %476 = vmatpush1.msra.mxu0 %v434
    %477 = vmatprep.subr.mxu0 0.0
    %478 = vmatpush1.msra.mxu0 %v435
    %479 = vmatprep.subr.mxu0 0.0
    %480 = vmatpush1.msra.mxu0 %v436
    %481 = vmatprep.subr.mxu0 0.0
    %482 = vmatpush1.msra.mxu0 %v437
    %483 = vmatprep.subr.mxu0 0.0
    %484 = vmatpush1.msra.mxu0 %v438
    %485 = vmatprep.subr.mxu0 0.0
    %486 = vmatpush1.msra.mxu0 %v439
    %487 = vmatprep.subr.mxu0 0.0
    %488 = vmatpush1.msra.mxu0 %v440
    %489 = vmatprep.subr.mxu0 0.0
    %490 = vmatpush1.msra.mxu0 %v441
    %491 = vmatprep.subr.mxu0 0.0
    %492 = vmatpush1.msra.mxu0 %v442
    %493 = vmatprep.subr.mxu0 0.0
    %494 = vmatpush1.msra.mxu0 %v443
    %495 = vmatprep.subr.mxu0 0.0
    %496 = vmatpush1.msra.mxu0 %v444
    %497 = vmatprep.subr.mxu0 0.0
    %498 = vmatpush1.msra.mxu0 %v445
    %499 = vmatprep.subr.mxu0 0.0
    %500 = vmatpush1.msra.mxu0 %v446
    %501 = vmatprep.subr.mxu0 0.0
    %502 = vmatpush1.msra.mxu0 %v447
    %503 = vmatprep.subr.mxu0 0.0
    %504 = vmatpush1.msra.mxu0 %v448
    %505 = vmatprep.subr.mxu0 0.0
    %506 = vmatpush1.msra.mxu0 %v449
    %507 = vmatprep.subr.mxu0 0.0
    %508 = vmatpush1.msra.mxu0 %v450
    %509 = vmatprep.subr.mxu0 0.0
    %510 = vmatpush1.msra.mxu0 %v451
    %511 = vmatprep.subr.mxu0 0.0
    %512 = vmatpush1.msra.mxu0 %v452
    %513 = vmatprep.subr.mxu0 0.0
    %514 = vmatpush1.msra.mxu0 %v453
    %515 = vmatprep.subr.mxu0 0.0
    %516 = vmatpush1.msra.mxu0 %v454
    %517 = vmatprep.subr.mxu0 0.0
    %518 = vmatpush1.msra.mxu0 %v455
    %519 = vmatprep.subr.mxu0 0.0
    %520 = vmatpush1.msra.mxu0 %v456
    %521 = vmatprep.mubr.f32.mxu0 %v73
    %522 = vmatmul.mubr.f32.gmra.mrb[0].mxu0 %v72
    %v523 = vpop.f32.mrb[0].mxu0
    %v524 = vadd.f32 0.0, %v523
    %v525 = vpop.f32.mrb[0].mxu0
    %526 = vmatprep.mubr.f32.mxu0 %v75
    %527 = vmatmul.mubr.f32.gmra.mrb[0].mxu0 %v74
    %v528 = vpop.f32.mrb[0].mxu0
    %v529 = vadd.f32 0.0, %v528
    %v530 = vpop.f32.mrb[0].mxu0
    %531 = vmatprep.mubr.f32.mxu0 %v77
    %532 = vmatmul.mubr.f32.gmra.mrb[0].mxu0 %v76
    %v533 = vpop.f32.mrb[0].mxu0
    %v534 = vadd.f32 0.0, %v533
    %v535 = vpop.f32.mrb[0].mxu0
    %536 = vmatprep.mubr.f32.mxu0 %v79
    %537 = vmatmul.mubr.f32.gmra.mrb[0].mxu0 %v78
    %v538 = vpop.f32.mrb[0].mxu0
    %v539 = vadd.f32 0.0, %v538
    %v540 = vpop.f32.mrb[0].mxu0
    %541 = vmatprep.mubr.f32.mxu0 %v81
    %542 = vmatmul.mubr.f32.gmra.mrb[0].mxu0 %v80
    %v543 = vpop.f32.mrb[0].mxu0
    %v544 = vadd.f32 0.0, %v543
    %v545 = vpop.f32.mrb[0].mxu0
    %546 = vmatprep.mubr.f32.mxu0 %v83
    %547 = vmatmul.mubr.f32.gmra.mrb[0].mxu0 %v82
    %v548 = vpop.f32.mrb[0].mxu0
    %v549 = vadd.f32 0.0, %v548
    %v550 = vpop.f32.mrb[0].mxu0
    %551 = vmatprep.mubr.f32.mxu0 %v85
    %552 = vmatmul.mubr.f32.gmra.mrb[0].mxu0 %v84
    %v553 = vpop.f32.mrb[0].mxu0
    %v554 = vadd.f32 0.0, %v553
    %v555 = vpop.f32.mrb[0].mxu0
    %556 = vmatprep.mubr.f32.mxu0 %v87
    %557 = vmatmul.mubr.f32.gmra.mrb[0].mxu0 %v86
    %v558 = vpop.f32.mrb[0].mxu0
    %v559 = vadd.f32 0.0, %v558
    %v560 = vpop.f32.mrb[0].mxu0
    %561 = vmatprep.mubr.f32.mxu0 %v89
    %562 = vmatmul.mubr.f32.gmra.mrb[0].mxu0 %v88
    %v563 = vpop.f32.mrb[0].mxu0
    %v564 = vadd.f32 0.0, %v563
    %v565 = vpop.f32.mrb[0].mxu0
    %566 = vmatprep.mubr.f32.mxu0 %v91
    %567 = vmatmul.mubr.f32.gmra.mrb[0].mxu0 %v90
    %v568 = vpop.f32.mrb[0].mxu0
    %v569 = vadd.f32 0.0, %v568
    %v570 = vpop.f32.mrb[0].mxu0
    %571 = vmatprep.mubr.f32.mxu0 %v93
    %572 = vmatmul.mubr.f32.gmra.mrb[0].mxu0 %v92
    %v573 = vpop.f32.mrb[0].mxu0
    %v574 = vadd.f32 0.0, %v573
    %v575 = vpop.f32.mrb[0].mxu0
    %576 = vmatprep.mubr.f32.mxu0 %v95
    %577 = vmatmul.mubr.f32.gmra.mrb[0].mxu0 %v94
    %v578 = vpop.f32.mrb[0].mxu0
    %v579 = vadd.f32 0.0, %v578
    %v580 = vpop.f32.mrb[0].mxu0
    %581 = vmatprep.mubr.f32.mxu0 %v97
    %582 = vmatmul.mubr.f32.gmra.mrb[0].mxu0 %v96
    %v583 = vpop.f32.mrb[0].mxu0
    %v584 = vadd.f32 0.0, %v583
    %v585 = vpop.f32.mrb[0].mxu0
    %586 = vmatprep.mubr.f32.mxu0 %v99
    %587 = vmatmul.mubr.f32.gmra.mrb[0].mxu0 %v98
    %v588 = vpop.f32.mrb[0].mxu0
    %v589 = vadd.f32 0.0, %v588
    %v590 = vpop.f32.mrb[0].mxu0
    %591 = vmatprep.mubr.f32.mxu0 %v101
    %592 = vmatmul.mubr.f32.gmra.mrb[0].mxu0 %v100
    %v593 = vpop.f32.mrb[0].mxu0
    %v594 = vadd.f32 0.0, %v593
    %v595 = vpop.f32.mrb[0].mxu0
    %596 = vmatprep.mubr.f32.mxu0 %v103
    %597 = vmatmul.mubr.f32.gmra.mrb[0].mxu0 %v102
    %v598 = vpop.f32.mrb[0].mxu0
    %v599 = vadd.f32 0.0, %v598
    %v600 = vpop.f32.mrb[0].mxu0
    %601 = vmatprep.mubr.f32.mxu0 %v105
    %602 = vmatmul.mubr.f32.gmra.mrb[0].mxu0 %v104
    %v603 = vpop.f32.mrb[0].mxu0
    %v604 = vadd.f32 0.0, %v603
    %v605 = vpop.f32.mrb[0].mxu0
    %606 = vmatprep.mubr.f32.mxu0 %v107
    %607 = vmatmul.mubr.f32.gmra.mrb[0].mxu0 %v106
    %v608 = vpop.f32.mrb[0].mxu0
    %v609 = vadd.f32 0.0, %v608
    %v610 = vpop.f32.mrb[0].mxu0
    %611 = vmatprep.mubr.f32.mxu0 %v109
    %612 = vmatmul.mubr.f32.gmra.mrb[0].mxu0 %v108
    %v613 = vpop.f32.mrb[0].mxu0
    %v614 = vadd.f32 0.0, %v613
    %v615 = vpop.f32.mrb[0].mxu0
    %616 = vmatprep.mubr.f32.mxu0 %v111
    %617 = vmatmul.mubr.f32.gmra.mrb[0].mxu0 %v110
    %v618 = vpop.f32.mrb[0].mxu0
    %v619 = vadd.f32 0.0, %v618
    %v620 = vpop.f32.mrb[0].mxu0
    %621 = vmatprep.mubr.f32.mxu0 %v113
    %622 = vmatmul.mubr.f32.gmra.mrb[0].mxu0 %v112
    %v623 = vpop.f32.mrb[0].mxu0
    %v624 = vadd.f32 0.0, %v623
    %v625 = vpop.f32.mrb[0].mxu0
    %626 = vmatprep.mubr.f32.mxu0 %v115
    %627 = vmatmul.mubr.f32.gmra.mrb[0].mxu0 %v114
    %v628 = vpop.f32.mrb[0].mxu0
    %v629 = vadd.f32 0.0, %v628
    %v630 = vpop.f32.mrb[0].mxu0
    %631 = vmatprep.mubr.f32.mxu0 %v117
    %632 = vmatmul.mubr.f32.gmra.mrb[0].mxu0 %v116
    %v633 = vpop.f32.mrb[0].mxu0
    %v634 = vadd.f32 0.0, %v633
    %v635 = vpop.f32.mrb[0].mxu0
    %636 = vmatprep.mubr.f32.mxu0 %v119
    %637 = vmatmul.mubr.f32.gmra.mrb[0].mxu0 %v118
    %v638 = vpop.f32.mrb[0].mxu0
    %v639 = vadd.f32 0.0, %v638
    %v640 = vpop.f32.mrb[0].mxu0
    %641 = vmatprep.mubr.f32.mxu0 %v121
    %642 = vmatmul.mubr.f32.gmra.mrb[0].mxu0 %v120
    %v643 = vpop.f32.mrb[0].mxu0
    %v644 = vadd.f32 0.0, %v643
    %v645 = vpop.f32.mrb[0].mxu0
    %646 = vmatprep.mubr.f32.mxu0 %v123
    %647 = vmatmul.mubr.f32.gmra.mrb[0].mxu0 %v122
    %v648 = vpop.f32.mrb[0].mxu0
    %v649 = vadd.f32 0.0, %v648
    %v650 = vpop.f32.mrb[0].mxu0
    %651 = vmatprep.mubr.f32.mxu0 %v125
    %652 = vmatmul.mubr.f32.gmra.mrb[0].mxu0 %v124
    %v653 = vpop.f32.mrb[0].mxu0
    %v654 = vadd.f32 0.0, %v653
    %v655 = vpop.f32.mrb[0].mxu0
    %656 = vmatprep.mubr.f32.mxu0 %v127
    %657 = vmatmul.mubr.f32.gmra.mrb[0].mxu0 %v126
    %v658 = vpop.f32.mrb[0].mxu0
    %v659 = vadd.f32 0.0, %v658
    %v660 = vpop.f32.mrb[0].mxu0
    %661 = vmatprep.mubr.f32.mxu0 %v129
    %662 = vmatmul.mubr.f32.gmra.mrb[0].mxu0 %v128
    %v663 = vpop.f32.mrb[0].mxu0
    %v664 = vadd.f32 0.0, %v663
    %v665 = vpop.f32.mrb[0].mxu0
    %666 = vmatprep.mubr.f32.mxu0 %v131
    %667 = vmatmul.mubr.f32.gmra.mrb[0].mxu0 %v130
    %v668 = vpop.f32.mrb[0].mxu0
    %v669 = vadd.f32 0.0, %v668
    %v670 = vpop.f32.mrb[0].mxu0
    %671 = vmatprep.mubr.f32.mxu0 %v133
    %672 = vmatmul.mubr.f32.gmra.mrb[0].mxu0 %v132
    %v673 = vpop.f32.mrb[0].mxu0
    %v674 = vadd.f32 0.0, %v673
    %v675 = vpop.f32.mrb[0].mxu0
    %676 = vmatprep.mubr.f32.mxu0 %v135
    %677 = vmatmul.mubr.f32.gmra.mrb[0].mxu0 %v134
    %v678 = vpop.f32.mrb[0].mxu0
    %v679 = vadd.f32 0.0, %v678
    %v680 = vpop.f32.mrb[0].mxu0
    %681 = vdwg.mxu0
    %v682 = vmul.f32 %v524, 0.9
    %v683 = vmul.f32 %v529, 0.9
    %v684 = vmul.f32 %v534, 0.9
    %v685 = vmul.f32 %v539, 0.9
    %v686 = vmul.f32 %v544, 0.9
    %v687 = vmul.f32 %v549, 0.9
    %v688 = vmul.f32 %v554, 0.9
    %v689 = vmul.f32 %v559, 0.9
    %v690 = vmul.f32 %v564, 0.9
    %v691 = vmul.f32 %v569, 0.9
    %v692 = vmul.f32 %v574, 0.9
    %v693 = vmul.f32 %v579, 0.9
    %v694 = vmul.f32 %v584, 0.9
    %v695 = vmul.f32 %v589, 0.9
    %v696 = vmul.f32 %v594, 0.9
    %v697 = vmul.f32 %v599, 0.9
    %v698 = vmul.f32 %v604, 0.9
    %v699 = vmul.f32 %v609, 0.9
    %v700 = vmul.f32 %v614, 0.9
    %v701 = vmul.f32 %v619, 0.9
    %v702 = vmul.f32 %v624, 0.9
    %v703 = vmul.f32 %v629, 0.9
    %v704 = vmul.f32 %v634, 0.9
    %v705 = vmul.f32 %v639, 0.9
    %v706 = vmul.f32 %v644, 0.9
    %v707 = vmul.f32 %v649, 0.9
    %v708 = vmul.f32 %v654, 0.9
    %v709 = vmul.f32 %v659, 0.9
    %v710 = vmul.f32 %v664, 0.9
    %v711 = vmul.f32 %v669, 0.9
    %v712 = vmul.f32 %v674, 0.9
    %v713 = vmul.f32 %v679, 0.9
    %v714 = vadd.f32 %v682, %v136
    %v715 = vadd.f32 %v683, %v137
    %v716 = vadd.f32 %v684, %v138
    %v717 = vadd.f32 %v685, %v139
    %v718 = vadd.f32 %v686, %v140
    %v719 = vadd.f32 %v687, %v141
    %v720 = vadd.f32 %v688, %v142
    %v721 = vadd.f32 %v689, %v143
    %v722 = vadd.f32 %v690, %v144
    %v723 = vadd.f32 %v691, %v145
    %v724 = vadd.f32 %v692, %v146
    %v725 = vadd.f32 %v693, %v147
    %v726 = vadd.f32 %v694, %v148
    %v727 = vadd.f32 %v695, %v149
    %v728 = vadd.f32 %v696, %v150
    %v729 = vadd.f32 %v697, %v151
    %v730 = vadd.f32 %v698, %v152
    %v731 = vadd.f32 %v699, %v153
    %v732 = vadd.f32 %v700, %v154
    %v733 = vadd.f32 %v701, %v155
    %v734 = vadd.f32 %v702, %v156
    %v735 = vadd.f32 %v703, %v157
    %v736 = vadd.f32 %v704, %v158
    %v737 = vadd.f32 %v705, %v159
    %v738 = vadd.f32 %v706, %v160
    %v739 = vadd.f32 %v707, %v161
    %v740 = vadd.f32 %v708, %v162
    %v741 = vadd.f32 %v709, %v163
    %v742 = vadd.f32 %v710, %v164
    %v743 = vadd.f32 %v711, %v165
    %v744 = vadd.f32 %v712, %v166
    %v745 = vadd.f32 %v713, %v167
    %746 = vmatprep.subr.mxu0 0.0
    %747 = vmatpush1.msra.mxu0 %v714
    %748 = vmatprep.subr.mxu0 0.0
    %749 = vmatpush1.msra.mxu0 %v715
    %750 = vmatprep.subr.mxu0 0.0
    %751 = vmatpush1.msra.mxu0 %v716
    %752 = vmatprep.subr.mxu0 0.0
    %753 = vmatpush1.msra.mxu0 %v717
    %754 = vmatprep.subr.mxu0 0.0
    %755 = vmatpush1.msra.mxu0 %v718
    %756 = vmatprep.subr.mxu0 0.0
    %757 = vmatpush1.msra.mxu0 %v719
    %758 = vmatprep.subr.mxu0 0.0
    %759 = vmatpush1.msra.mxu0 %v720
    %760 = vmatprep.subr.mxu0 0.0
    %761 = vmatpush1.msra.mxu0 %v721
    %762 = vmatprep.subr.mxu0 0.0
    %763 = vmatpush1.msra.mxu0 %v722
    %764 = vmatprep.subr.mxu0 0.0
    %765 = vmatpush1.msra.mxu0 %v723
    %766 = vmatprep.subr.mxu0 0.0
    %767 = vmatpush1.msra.mxu0 %v724
    %768 = vmatprep.subr.mxu0 0.0
    %769 = vmatpush1.msra.mxu0 %v725
    %770 = vmatprep.subr.mxu0 0.0
    %771 = vmatpush1.msra.mxu0 %v726
    %772 = vmatprep.subr.mxu0 0.0
    %773 = vmatpush1.msra.mxu0 %v727
    %774 = vmatprep.subr.mxu0 0.0
    %775 = vmatpush1.msra.mxu0 %v728
    %776 = vmatprep.subr.mxu0 0.0
    %777 = vmatpush1.msra.mxu0 %v729
    %778 = vmatprep.subr.mxu0 0.0
    %779 = vmatpush1.msra.mxu0 %v730
    %780 = vmatprep.subr.mxu0 0.0
    %781 = vmatpush1.msra.mxu0 %v731
    %782 = vmatprep.subr.mxu0 0.0
    %783 = vmatpush1.msra.mxu0 %v732
    %784 = vmatprep.subr.mxu0 0.0
    %785 = vmatpush1.msra.mxu0 %v733
    %786 = vmatprep.subr.mxu0 0.0
    %787 = vmatpush1.msra.mxu0 %v734
    %788 = vmatprep.subr.mxu0 0.0
    %789 = vmatpush1.msra.mxu0 %v735
    %790 = vmatprep.subr.mxu0 0.0
    %791 = vmatpush1.msra.mxu0 %v736
    %792 = vmatprep.subr.mxu0 0.0
    %793 = vmatpush1.msra.mxu0 %v737
    %794 = vmatprep.subr.mxu0 0.0
    %795 = vmatpush1.msra.mxu0 %v738
    %796 = vmatprep.subr.mxu0 0.0
    %797 = vmatpush1.msra.mxu0 %v739
    %798 = vmatprep.subr.mxu0 0.0
    %799 = vmatpush1.msra.mxu0 %v740
    %800 = vmatprep.subr.mxu0 0.0
    %801 = vmatpush1.msra.mxu0 %v741
    %802 = vmatprep.subr.mxu0 0.0
    %803 = vmatpush1.msra.mxu0 %v742
    %804 = vmatprep.subr.mxu0 0.0
    %805 = vmatpush1.msra.mxu0 %v743
    %806 = vmatprep.subr.mxu0 0.0
    %807 = vmatpush1.msra.mxu0 %v744
    %808 = vmatprep.subr.mxu0 0.0
    %809 = vmatpush1.msra.mxu0 %v745
    %810 = vmatprep.mubr.f32.mxu0 %v73
    %811 = vmatmul.mubr.f32.gmra.mrb[0].mxu0 %v72
    %v812 = vpop.f32.mrb[0].mxu0
    %v813 = vadd.f32 0.0, %v812
    %v814 = vpop.f32.mrb[0].mxu0
    %815 = vmatprep.mubr.f32.mxu0 %v75
    %816 = vmatmul.mubr.f32.gmra.mrb[0].mxu0 %v74
    %v817 = vpop.f32.mrb[0].mxu0
    %v818 = vadd.f32 0.0, %v817
    %v819 = vpop.f32.mrb[0].mxu0
    %820 = vmatprep.mubr.f32.mxu0 %v77
    %821 = vmatmul.mubr.f32.gmra.mrb[0].mxu0 %v76
    %v822 = vpop.f32.mrb[0].mxu0
    %v823 = vadd.f32 0.0, %v822
    %v824 = vpop.f32.mrb[0].mxu0
    %825 = vmatprep.mubr.f32.mxu0 %v79
    %826 = vmatmul.mubr.f32.gmra.mrb[0].mxu0 %v78
    %v827 = vpop.f32.mrb[0].mxu0
    %v828 = vadd.f32 0.0, %v827
    %v829 = vpop.f32.mrb[0].mxu0
    %830 = vmatprep.mubr.f32.mxu0 %v81
    %831 = vmatmul.mubr.f32.gmra.mrb[0].mxu0 %v80
    %v832 = vpop.f32.mrb[0].mxu0
    %v833 = vadd.f32 0.0, %v832
    %v834 = vpop.f32.mrb[0].mxu0
    %835 = vmatprep.mubr.f32.mxu0 %v83
    %836 = vmatmul.mubr.f32.gmra.mrb[0].mxu0 %v82
    %v837 = vpop.f32.mrb[0].mxu0
    %v838 = vadd.f32 0.0, %v837
    %v839 = vpop.f32.mrb[0].mxu0
    %840 = vmatprep.mubr.f32.mxu0 %v85
    %841 = vmatmul.mubr.f32.gmra.mrb[0].mxu0 %v84
    %v842 = vpop.f32.mrb[0].mxu0
    %v843 = vadd.f32 0.0, %v842
    %v844 = vpop.f32.mrb[0].mxu0
    %845 = vmatprep.mubr.f32.mxu0 %v87
    %846 = vmatmul.mubr.f32.gmra.mrb[0].mxu0 %v86
    %v847 = vpop.f32.mrb[0].mxu0
    %v848 = vadd.f32 0.0, %v847
    %v849 = vpop.f32.mrb[0].mxu0
    %850 = vmatprep.mubr.f32.mxu0 %v89
    %851 = vmatmul.mubr.f32.gmra.mrb[0].mxu0 %v88
    %v852 = vpop.f32.mrb[0].mxu0
    %v853 = vadd.f32 0.0, %v852
    %v854 = vpop.f32.mrb[0].mxu0
    %855 = vmatprep.mubr.f32.mxu0 %v91
    %856 = vmatmul.mubr.f32.gmra.mrb[0].mxu0 %v90
    %v857 = vpop.f32.mrb[0].mxu0
    %v858 = vadd.f32 0.0, %v857
    %v859 = vpop.f32.mrb[0].mxu0
    %860 = vmatprep.mubr.f32.mxu0 %v93
    %861 = vmatmul.mubr.f32.gmra.mrb[0].mxu0 %v92
    %v862 = vpop.f32.mrb[0].mxu0
    %v863 = vadd.f32 0.0, %v862
    %v864 = vpop.f32.mrb[0].mxu0
    %865 = vmatprep.mubr.f32.mxu0 %v95
    %866 = vmatmul.mubr.f32.gmra.mrb[0].mxu0 %v94
    %v867 = vpop.f32.mrb[0].mxu0
    %v868 = vadd.f32 0.0, %v867
    %v869 = vpop.f32.mrb[0].mxu0
    %870 = vmatprep.mubr.f32.mxu0 %v97
    %871 = vmatmul.mubr.f32.gmra.mrb[0].mxu0 %v96
    %v872 = vpop.f32.mrb[0].mxu0
    %v873 = vadd.f32 0.0, %v872
    %v874 = vpop.f32.mrb[0].mxu0
    %875 = vmatprep.mubr.f32.mxu0 %v99
    %876 = vmatmul.mubr.f32.gmra.mrb[0].mxu0 %v98
    %v877 = vpop.f32.mrb[0].mxu0
    %v878 = vadd.f32 0.0, %v877
    %v879 = vpop.f32.mrb[0].mxu0
    %880 = vmatprep.mubr.f32.mxu0 %v101
    %881 = vmatmul.mubr.f32.gmra.mrb[0].mxu0 %v100
    %v882 = vpop.f32.mrb[0].mxu0
    %v883 = vadd.f32 0.0, %v882
    %v884 = vpop.f32.mrb[0].mxu0
    %885 = vmatprep.mubr.f32.mxu0 %v103
    %886 = vmatmul.mubr.f32.gmra.mrb[0].mxu0 %v102
    %v887 = vpop.f32.mrb[0].mxu0
    %v888 = vadd.f32 0.0, %v887
    %v889 = vpop.f32.mrb[0].mxu0
    %890 = vmatprep.mubr.f32.mxu0 %v105
    %891 = vmatmul.mubr.f32.gmra.mrb[0].mxu0 %v104
    %v892 = vpop.f32.mrb[0].mxu0
    %v893 = vadd.f32 0.0, %v892
    %v894 = vpop.f32.mrb[0].mxu0
    %895 = vmatprep.mubr.f32.mxu0 %v107
    %896 = vmatmul.mubr.f32.gmra.mrb[0].mxu0 %v106
    %v897 = vpop.f32.mrb[0].mxu0
    %v898 = vadd.f32 0.0, %v897
    %v899 = vpop.f32.mrb[0].mxu0
    %900 = vmatprep.mubr.f32.mxu0 %v109
    %901 = vmatmul.mubr.f32.gmra.mrb[0].mxu0 %v108
    %v902 = vpop.f32.mrb[0].mxu0
    %v903 = vadd.f32 0.0, %v902
    %v904 = vpop.f32.mrb[0].mxu0
    %905 = vmatprep.mubr.f32.mxu0 %v111
    %906 = vmatmul.mubr.f32.gmra.mrb[0].mxu0 %v110
    %v907 = vpop.f32.mrb[0].mxu0
    %v908 = vadd.f32 0.0, %v907
    %v909 = vpop.f32.mrb[0].mxu0
    %910 = vmatprep.mubr.f32.mxu0 %v113
    %911 = vmatmul.mubr.f32.gmra.mrb[0].mxu0 %v112
    %v912 = vpop.f32.mrb[0].mxu0
    %v913 = vadd.f32 0.0, %v912
    %v914 = vpop.f32.mrb[0].mxu0
    %915 = vmatprep.mubr.f32.mxu0 %v115
    %916 = vmatmul.mubr.f32.gmra.mrb[0].mxu0 %v114
    %v917 = vpop.f32.mrb[0].mxu0
    %v918 = vadd.f32 0.0, %v917
    %v919 = vpop.f32.mrb[0].mxu0
    %920 = vmatprep.mubr.f32.mxu0 %v117
    %921 = vmatmul.mubr.f32.gmra.mrb[0].mxu0 %v116
    %v922 = vpop.f32.mrb[0].mxu0
    %v923 = vadd.f32 0.0, %v922
    %v924 = vpop.f32.mrb[0].mxu0
    %925 = vmatprep.mubr.f32.mxu0 %v119
    %926 = vmatmul.mubr.f32.gmra.mrb[0].mxu0 %v118
    %v927 = vpop.f32.mrb[0].mxu0
    %v928 = vadd.f32 0.0, %v927
    %v929 = vpop.f32.mrb[0].mxu0
    %930 = vmatprep.mubr.f32.mxu0 %v121
    %931 = vmatmul.mubr.f32.gmra.mrb[0].mxu0 %v120
    %v932 = vpop.f32.mrb[0].mxu0
    %v933 = vadd.f32 0.0, %v932
    %v934 = vpop.f32.mrb[0].mxu0
    %935 = vmatprep.mubr.f32.mxu0 %v123
    %936 = vmatmul.mubr.f32.gmra.mrb[0].mxu0 %v122
    %v937 = vpop.f32.mrb[0].mxu0
    %v938 = vadd.f32 0.0, %v937
    %v939 = vpop.f32.mrb[0].mxu0
    %940 = vmatprep.mubr.f32.mxu0 %v125
    %941 = vmatmul.mubr.f32.gmra.mrb[0].mxu0 %v124
    %v942 = vpop.f32.mrb[0].mxu0
    %v943 = vadd.f32 0.0, %v942
    %v944 = vpop.f32.mrb[0].mxu0
    %945 = vmatprep.mubr.f32.mxu0 %v127
    %946 = vmatmul.mubr.f32.gmra.mrb[0].mxu0 %v126
    %v947 = vpop.f32.mrb[0].mxu0
    %v948 = vadd.f32 0.0, %v947
    %v949 = vpop.f32.mrb[0].mxu0
    %950 = vmatprep.mubr.f32.mxu0 %v129
    %951 = vmatmul.mubr.f32.gmra.mrb[0].mxu0 %v128
    %v952 = vpop.f32.mrb[0].mxu0
    %v953 = vadd.f32 0.0, %v952
    %v954 = vpop.f32.mrb[0].mxu0
    %955 = vmatprep.mubr.f32.mxu0 %v131
    %956 = vmatmul.mubr.f32.gmra.mrb[0].mxu0 %v130
    %v957 = vpop.f32.mrb[0].mxu0
    %v958 = vadd.f32 0.0, %v957
    %v959 = vpop.f32.mrb[0].mxu0
    %960 = vmatprep.mubr.f32.mxu0 %v133
    %961 = vmatmul.mubr.f32.gmra.mrb[0].mxu0 %v132
    %v962 = vpop.f32.mrb[0].mxu0
    %v963 = vadd.f32 0.0, %v962
    %v964 = vpop.f32.mrb[0].mxu0
    %965 = vmatprep.mubr.f32.mxu0 %v135
    %966 = vmatmul.mubr.f32.gmra.mrb[0].mxu0 %v134
    %v967 = vpop.f32.mrb[0].mxu0
    %v968 = vadd.f32 0.0, %v967
    %v969 = vpop.f32.mrb[0].mxu0
    %970 = vdwg.mxu0
    %v971 = vmul.f32 %v813, 0.9
    %v972 = vmul.f32 %v818, 0.9
    %v973 = vmul.f32 %v823, 0.9
    %v974 = vmul.f32 %v828, 0.9
    %v975 = vmul.f32 %v833, 0.9
    %v976 = vmul.f32 %v838, 0.9
    %v977 = vmul.f32 %v843, 0.9
    %v978 = vmul.f32 %v848, 0.9
    %v979 = vmul.f32 %v853, 0.9
    %v980 = vmul.f32 %v858, 0.9
    %v981 = vmul.f32 %v863, 0.9
    %v982 = vmul.f32 %v868, 0.9
    %v983 = vmul.f32 %v873, 0.9
    %v984 = vmul.f32 %v878, 0.9
    %v985 = vmul.f32 %v883, 0.9
    %v986 = vmul.f32 %v888, 0.9
    %v987 = vmul.f32 %v893, 0.9
    %v988 = vmul.f32 %v898, 0.9
    %v989 = vmul.f32 %v903, 0.9
    %v990 = vmul.f32 %v908, 0.9
    %v991 = vmul.f32 %v913, 0.9
    %v992 = vmul.f32 %v918, 0.9
    %v993 = vmul.f32 %v923, 0.9
    %v994 = vmul.f32 %v928, 0.9
    %v995 = vmul.f32 %v933, 0.9
    %v996 = vmul.f32 %v938, 0.9
    %v997 = vmul.f32 %v943, 0.9
    %v998 = vmul.f32 %v948, 0.9
    %v999 = vmul.f32 %v953, 0.9
    %v1000 = vmul.f32 %v958, 0.9
    %v1001 = vmul.f32 %v963, 0.9
    %v1002 = vmul.f32 %v968, 0.9
    %v1003 = vadd.f32 %v971, %v136
    %v1004 = vadd.f32 %v972, %v137
    %v1005 = vadd.f32 %v973, %v138
    %v1006 = vadd.f32 %v974, %v139
    %v1007 = vadd.f32 %v975, %v140
    %v1008 = vadd.f32 %v976, %v141
    %v1009 = vadd.f32 %v977, %v142
    %v1010 = vadd.f32 %v978, %v143
    %v1011 = vadd.f32 %v979, %v144
    %v1012 = vadd.f32 %v980, %v145
    %v1013 = vadd.f32 %v981, %v146
    %v1014 = vadd.f32 %v982, %v147
    %v1015 = vadd.f32 %v983, %v148
    %v1016 = vadd.f32 %v984, %v149
    %v1017 = vadd.f32 %v985, %v150
    %v1018 = vadd.f32 %v986, %v151
    %v1019 = vadd.f32 %v987, %v152
    %v1020 = vadd.f32 %v988, %v153
    %v1021 = vadd.f32 %v989, %v154
    %v1022 = vadd.f32 %v990, %v155
    %v1023 = vadd.f32 %v991, %v156
    %v1024 = vadd.f32 %v992, %v157
    %v1025 = vadd.f32 %v993, %v158
    %v1026 = vadd.f32 %v994, %v159
    %v1027 = vadd.f32 %v995, %v160
    %v1028 = vadd.f32 %v996, %v161
    %v1029 = vadd.f32 %v997, %v162
    %v1030 = vadd.f32 %v998, %v163
    %v1031 = vadd.f32 %v999, %v164
    %v1032 = vadd.f32 %v1000, %v165
    %v1033 = vadd.f32 %v1001, %v166
    %v1034 = vadd.f32 %v1002, %v167
    %1035 = vmatprep.subr.mxu0 0.0
    %1036 = vmatpush1.msra.mxu0 %v1003
    %1037 = vmatprep.subr.mxu0 0.0
    %1038 = vmatpush1.msra.mxu0 %v1004
    %1039 = vmatprep.subr.mxu0 0.0
    %1040 = vmatpush1.msra.mxu0 %v1005
    %1041 = vmatprep.subr.mxu0 0.0
    %1042 = vmatpush1.msra.mxu0 %v1006
    %1043 = vmatprep.subr.mxu0 0.0
    %1044 = vmatpush1.msra.mxu0 %v1007
    %1045 = vmatprep.subr.mxu0 0.0
    %1046 = vmatpush1.msra.mxu0 %v1008
    %1047 = vmatprep.subr.mxu0 0.0
    %1048 = vmatpush1.msra.mxu0 %v1009
    %1049 = vmatprep.subr.mxu0 0.0
    %1050 = vmatpush1.msra.mxu0 %v1010
    %1051 = vmatprep.subr.mxu0 0.0
    %1052 = vmatpush1.msra.mxu0 %v1011
    %1053 = vmatprep.subr.mxu0 0.0
    %1054 = vmatpush1.msra.mxu0 %v1012
    %1055 = vmatprep.subr.mxu0 0.0
    %1056 = vmatpush1.msra.mxu0 %v1013
    %1057 = vmatprep.subr.mxu0 0.0
    %1058 = vmatpush1.msra.mxu0 %v1014
    %1059 = vmatprep.subr.mxu0 0.0
    %1060 = vmatpush1.msra.mxu0 %v1015
    %1061 = vmatprep.subr.mxu0 0.0
    %1062 = vmatpush1.msra.mxu0 %v1016
    %1063 = vmatprep.subr.mxu0 0.0
    %1064 = vmatpush1.msra.mxu0 %v1017
    %1065 = vmatprep.subr.mxu0 0.0
    %1066 = vmatpush1.msra.mxu0 %v1018
    %1067 = vmatprep.subr.mxu0 0.0
    %1068 = vmatpush1.msra.mxu0 %v1019
    %1069 = vmatprep.subr.mxu0 0.0
    %1070 = vmatpush1.msra.mxu0 %v1020
    %1071 = vmatprep.subr.mxu0 0.0
    %1072 = vmatpush1.msra.mxu0 %v1021
    %1073 = vmatprep.subr.mxu0 0.0
    %1074 = vmatpush1.msra.mxu0 %v1022
    %1075 = vmatprep.subr.mxu0 0.0
    %1076 = vmatpush1.msra.mxu0 %v1023
    %1077 = vmatprep.subr.mxu0 0.0
    %1078 = vmatpush1.msra.mxu0 %v1024
    %1079 = vmatprep.subr.mxu0 0.0
    %1080 = vmatpush1.msra.mxu0 %v1025
    %1081 = vmatprep.subr.mxu0 0.0
    %1082 = vmatpush1.msra.mxu0 %v1026
    %1083 = vmatprep.subr.mxu0 0.0
    %1084 = vmatpush1.msra.mxu0 %v1027
    %1085 = vmatprep.subr.mxu0 0.0
    %1086 = vmatpush1.msra.mxu0 %v1028
    %1087 = vmatprep.subr.mxu0 0.0
    %1088 = vmatpush1.msra.mxu0 %v1029
    %1089 = vmatprep.subr.mxu0 0.0
    %1090 = vmatpush1.msra.mxu0 %v1030
    %1091 = vmatprep.subr.mxu0 0.0
    %1092 = vmatpush1.msra.mxu0 %v1031
    %1093 = vmatprep.subr.mxu0 0.0
    %1094 = vmatpush1.msra.mxu0 %v1032
    %1095 = vmatprep.subr.mxu0 0.0
    %1096 = vmatpush1.msra.mxu0 %v1033
    %1097 = vmatprep.subr.mxu0 0.0
    %1098 = vmatpush1.msra.mxu0 %v1034
    %1099 = vmatprep.mubr.f32.mxu0 %v73
    %1100 = vmatmul.mubr.f32.gmra.mrb[0].mxu0 %v72
    %v1101 = vpop.f32.mrb[0].mxu0
    %v1102 = vadd.f32 0.0, %v1101
    %v1103 = vpop.f32.mrb[0].mxu0
    %1104 = vmatprep.mubr.f32.mxu0 %v75
    %1105 = vmatmul.mubr.f32.gmra.mrb[0].mxu0 %v74
    %v1106 = vpop.f32.mrb[0].mxu0
    %v1107 = vadd.f32 0.0, %v1106
    %v1108 = vpop.f32.mrb[0].mxu0
    %1109 = vmatprep.mubr.f32.mxu0 %v77
    %1110 = vmatmul.mubr.f32.gmra.mrb[0].mxu0 %v76
    %v1111 = vpop.f32.mrb[0].mxu0
    %v1112 = vadd.f32 0.0, %v1111
    %v1113 = vpop.f32.mrb[0].mxu0
    %1114 = vmatprep.mubr.f32.mxu0 %v79
    %1115 = vmatmul.mubr.f32.gmra.mrb[0].mxu0 %v78
    %v1116 = vpop.f32.mrb[0].mxu0
    %v1117 = vadd.f32 0.0, %v1116
    %v1118 = vpop.f32.mrb[0].mxu0
    %1119 = vmatprep.mubr.f32.mxu0 %v81
    %1120 = vmatmul.mubr.f32.gmra.mrb[0].mxu0 %v80
    %v1121 = vpop.f32.mrb[0].mxu0
    %v1122 = vadd.f32 0.0, %v1121
    %v1123 = vpop.f32.mrb[0].mxu0
    %1124 = vmatprep.mubr.f32.mxu0 %v83
    %1125 = vmatmul.mubr.f32.gmra.mrb[0].mxu0 %v82
    %v1126 = vpop.f32.mrb[0].mxu0
    %v1127 = vadd.f32 0.0, %v1126
    %v1128 = vpop.f32.mrb[0].mxu0
    %1129 = vmatprep.mubr.f32.mxu0 %v85
    %1130 = vmatmul.mubr.f32.gmra.mrb[0].mxu0 %v84
    %v1131 = vpop.f32.mrb[0].mxu0
    %v1132 = vadd.f32 0.0, %v1131
    %v1133 = vpop.f32.mrb[0].mxu0
    %1134 = vmatprep.mubr.f32.mxu0 %v87
    %1135 = vmatmul.mubr.f32.gmra.mrb[0].mxu0 %v86
    %v1136 = vpop.f32.mrb[0].mxu0
    %v1137 = vadd.f32 0.0, %v1136
    %v1138 = vpop.f32.mrb[0].mxu0
    %1139 = vmatprep.mubr.f32.mxu0 %v89
    %1140 = vmatmul.mubr.f32.gmra.mrb[0].mxu0 %v88
    %v1141 = vpop.f32.mrb[0].mxu0
    %v1142 = vadd.f32 0.0, %v1141
    %v1143 = vpop.f32.mrb[0].mxu0
    %1144 = vmatprep.mubr.f32.mxu0 %v91
    %1145 = vmatmul.mubr.f32.gmra.mrb[0].mxu0 %v90
    %v1146 = vpop.f32.mrb[0].mxu0
    %v1147 = vadd.f32 0.0, %v1146
    %v1148 = vpop.f32.mrb[0].mxu0
    %1149 = vmatprep.mubr.f32.mxu0 %v93
    %1150 = vmatmul.mubr.f32.gmra.mrb[0].mxu0 %v92
    %v1151 = vpop.f32.mrb[0].mxu0
    %v1152 = vadd.f32 0.0, %v1151
    %v1153 = vpop.f32.mrb[0].mxu0
    %1154 = vmatprep.mubr.f32.mxu0 %v95
    %1155 = vmatmul.mubr.f32.gmra.mrb[0].mxu0 %v94
    %v1156 = vpop.f32.mrb[0].mxu0
    %v1157 = vadd.f32 0.0, %v1156
    %v1158 = vpop.f32.mrb[0].mxu0
    %1159 = vmatprep.mubr.f32.mxu0 %v97
    %1160 = vmatmul.mubr.f32.gmra.mrb[0].mxu0 %v96
    %v1161 = vpop.f32.mrb[0].mxu0
    %v1162 = vadd.f32 0.0, %v1161
    %v1163 = vpop.f32.mrb[0].mxu0
    %1164 = vmatprep.mubr.f32.mxu0 %v99
    %1165 = vmatmul.mubr.f32.gmra.mrb[0].mxu0 %v98
    %v1166 = vpop.f32.mrb[0].mxu0
    %v1167 = vadd.f32 0.0, %v1166
    %v1168 = vpop.f32.mrb[0].mxu0
    %1169 = vmatprep.mubr.f32.mxu0 %v101
    %1170 = vmatmul.mubr.f32.gmra.mrb[0].mxu0 %v100
    %v1171 = vpop.f32.mrb[0].mxu0
    %v1172 = vadd.f32 0.0, %v1171
    %v1173 = vpop.f32.mrb[0].mxu0
    %1174 = vmatprep.mubr.f32.mxu0 %v103
    %1175 = vmatmul.mubr.f32.gmra.mrb[0].mxu0 %v102
    %v1176 = vpop.f32.mrb[0].mxu0
    %v1177 = vadd.f32 0.0, %v1176
    %v1178 = vpop.f32.mrb[0].mxu0
    %1179 = vmatprep.mubr.f32.mxu0 %v105
    %1180 = vmatmul.mubr.f32.gmra.mrb[0].mxu0 %v104
    %v1181 = vpop.f32.mrb[0].mxu0
    %v1182 = vadd.f32 0.0, %v1181
    %v1183 = vpop.f32.mrb[0].mxu0
    %1184 = vmatprep.mubr.f32.mxu0 %v107
    %1185 = vmatmul.mubr.f32.gmra.mrb[0].mxu0 %v106
    %v1186 = vpop.f32.mrb[0].mxu0
    %v1187 = vadd.f32 0.0, %v1186
    %v1188 = vpop.f32.mrb[0].mxu0
    %1189 = vmatprep.mubr.f32.mxu0 %v109
    %1190 = vmatmul.mubr.f32.gmra.mrb[0].mxu0 %v108
    %v1191 = vpop.f32.mrb[0].mxu0
    %v1192 = vadd.f32 0.0, %v1191
    %v1193 = vpop.f32.mrb[0].mxu0
    %1194 = vmatprep.mubr.f32.mxu0 %v111
    %1195 = vmatmul.mubr.f32.gmra.mrb[0].mxu0 %v110
    %v1196 = vpop.f32.mrb[0].mxu0
    %v1197 = vadd.f32 0.0, %v1196
    %v1198 = vpop.f32.mrb[0].mxu0
    %1199 = vmatprep.mubr.f32.mxu0 %v113
    %1200 = vmatmul.mubr.f32.gmra.mrb[0].mxu0 %v112
    %v1201 = vpop.f32.mrb[0].mxu0
    %v1202 = vadd.f32 0.0, %v1201
    %v1203 = vpop.f32.mrb[0].mxu0
    %1204 = vmatprep.mubr.f32.mxu0 %v115
    %1205 = vmatmul.mubr.f32.gmra.mrb[0].mxu0 %v114
    %v1206 = vpop.f32.mrb[0].mxu0
    %v1207 = vadd.f32 0.0, %v1206
    %v1208 = vpop.f32.mrb[0].mxu0
    %1209 = vmatprep.mubr.f32.mxu0 %v117
    %1210 = vmatmul.mubr.f32.gmra.mrb[0].mxu0 %v116
    %v1211 = vpop.f32.mrb[0].mxu0
    %v1212 = vadd.f32 0.0, %v1211
    %v1213 = vpop.f32.mrb[0].mxu0
    %1214 = vmatprep.mubr.f32.mxu0 %v119
    %1215 = vmatmul.mubr.f32.gmra.mrb[0].mxu0 %v118
    %v1216 = vpop.f32.mrb[0].mxu0
    %v1217 = vadd.f32 0.0, %v1216
    %v1218 = vpop.f32.mrb[0].mxu0
    %1219 = vmatprep.mubr.f32.mxu0 %v121
    %1220 = vmatmul.mubr.f32.gmra.mrb[0].mxu0 %v120
    %v1221 = vpop.f32.mrb[0].mxu0
    %v1222 = vadd.f32 0.0, %v1221
    %v1223 = vpop.f32.mrb[0].mxu0
    %1224 = vmatprep.mubr.f32.mxu0 %v123
    %1225 = vmatmul.mubr.f32.gmra.mrb[0].mxu0 %v122
    %v1226 = vpop.f32.mrb[0].mxu0
    %v1227 = vadd.f32 0.0, %v1226
    %v1228 = vpop.f32.mrb[0].mxu0
    %1229 = vmatprep.mubr.f32.mxu0 %v125
    %1230 = vmatmul.mubr.f32.gmra.mrb[0].mxu0 %v124
    %v1231 = vpop.f32.mrb[0].mxu0
    %v1232 = vadd.f32 0.0, %v1231
    %v1233 = vpop.f32.mrb[0].mxu0
    %1234 = vmatprep.mubr.f32.mxu0 %v127
    %1235 = vmatmul.mubr.f32.gmra.mrb[0].mxu0 %v126
    %v1236 = vpop.f32.mrb[0].mxu0
    %v1237 = vadd.f32 0.0, %v1236
    %v1238 = vpop.f32.mrb[0].mxu0
    %1239 = vmatprep.mubr.f32.mxu0 %v129
    %1240 = vmatmul.mubr.f32.gmra.mrb[0].mxu0 %v128
    %v1241 = vpop.f32.mrb[0].mxu0
    %v1242 = vadd.f32 0.0, %v1241
    %v1243 = vpop.f32.mrb[0].mxu0
    %1244 = vmatprep.mubr.f32.mxu0 %v131
    %1245 = vmatmul.mubr.f32.gmra.mrb[0].mxu0 %v130
    %v1246 = vpop.f32.mrb[0].mxu0
    %v1247 = vadd.f32 0.0, %v1246
    %v1248 = vpop.f32.mrb[0].mxu0
    %1249 = vmatprep.mubr.f32.mxu0 %v133
    %1250 = vmatmul.mubr.f32.gmra.mrb[0].mxu0 %v132
    %v1251 = vpop.f32.mrb[0].mxu0
    %v1252 = vadd.f32 0.0, %v1251
    %v1253 = vpop.f32.mrb[0].mxu0
    %1254 = vmatprep.mubr.f32.mxu0 %v135
    %1255 = vmatmul.mubr.f32.gmra.mrb[0].mxu0 %v134
    %v1256 = vpop.f32.mrb[0].mxu0
    %v1257 = vadd.f32 0.0, %v1256
    %v1258 = vpop.f32.mrb[0].mxu0
    %1259 = vdwg.mxu0
    %v1260 = vmul.f32 %v1102, 0.9
    %v1261 = vmul.f32 %v1107, 0.9
    %v1262 = vmul.f32 %v1112, 0.9
    %v1263 = vmul.f32 %v1117, 0.9
    %v1264 = vmul.f32 %v1122, 0.9
    %v1265 = vmul.f32 %v1127, 0.9
    %v1266 = vmul.f32 %v1132, 0.9
    %v1267 = vmul.f32 %v1137, 0.9
    %v1268 = vmul.f32 %v1142, 0.9
    %v1269 = vmul.f32 %v1147, 0.9
    %v1270 = vmul.f32 %v1152, 0.9
    %v1271 = vmul.f32 %v1157, 0.9
    %v1272 = vmul.f32 %v1162, 0.9
    %v1273 = vmul.f32 %v1167, 0.9
    %v1274 = vmul.f32 %v1172, 0.9
    %v1275 = vmul.f32 %v1177, 0.9
    %v1276 = vmul.f32 %v1182, 0.9
    %v1277 = vmul.f32 %v1187, 0.9
    %v1278 = vmul.f32 %v1192, 0.9
    %v1279 = vmul.f32 %v1197, 0.9
    %v1280 = vmul.f32 %v1202, 0.9
    %v1281 = vmul.f32 %v1207, 0.9
    %v1282 = vmul.f32 %v1212, 0.9
    %v1283 = vmul.f32 %v1217, 0.9
    %v1284 = vmul.f32 %v1222, 0.9
    %v1285 = vmul.f32 %v1227, 0.9
    %v1286 = vmul.f32 %v1232, 0.9
    %v1287 = vmul.f32 %v1237, 0.9
    %v1288 = vmul.f32 %v1242, 0.9
    %v1289 = vmul.f32 %v1247, 0.9
    %v1290 = vmul.f32 %v1252, 0.9
    %v1291 = vmul.f32 %v1257, 0.9
    %v1292 = vadd.f32 %v1260, %v136
    %v1293 = vadd.f32 %v1261, %v137
    %v1294 = vadd.f32 %v1262, %v138
    %v1295 = vadd.f32 %v1263, %v139
    %v1296 = vadd.f32 %v1264, %v140
    %v1297 = vadd.f32 %v1265, %v141
    %v1298 = vadd.f32 %v1266, %v142
    %v1299 = vadd.f32 %v1267, %v143
    %v1300 = vadd.f32 %v1268, %v144
    %v1301 = vadd.f32 %v1269, %v145
    %v1302 = vadd.f32 %v1270, %v146
    %v1303 = vadd.f32 %v1271, %v147
    %v1304 = vadd.f32 %v1272, %v148
    %v1305 = vadd.f32 %v1273, %v149
    %v1306 = vadd.f32 %v1274, %v150
    %v1307 = vadd.f32 %v1275, %v151
    %v1308 = vadd.f32 %v1276, %v152
    %v1309 = vadd.f32 %v1277, %v153
    %v1310 = vadd.f32 %v1278, %v154
    %v1311 = vadd.f32 %v1279, %v155
    %v1312 = vadd.f32 %v1280, %v156
    %v1313 = vadd.f32 %v1281, %v157
    %v1314 = vadd.f32 %v1282, %v158
    %v1315 = vadd.f32 %v1283, %v159
    %v1316 = vadd.f32 %v1284, %v160
    %v1317 = vadd.f32 %v1285, %v161
    %v1318 = vadd.f32 %v1286, %v162
    %v1319 = vadd.f32 %v1287, %v163
    %v1320 = vadd.f32 %v1288, %v164
    %v1321 = vadd.f32 %v1289, %v165
    %v1322 = vadd.f32 %v1290, %v166
    %v1323 = vadd.f32 %v1291, %v167
    %1324 = vmatprep.subr.mxu0 0.0
    %1325 = vmatpush1.msra.mxu0 %v1292
    %1326 = vmatprep.subr.mxu0 0.0
    %1327 = vmatpush1.msra.mxu0 %v1293
    %1328 = vmatprep.subr.mxu0 0.0
    %1329 = vmatpush1.msra.mxu0 %v1294
    %1330 = vmatprep.subr.mxu0 0.0
    %1331 = vmatpush1.msra.mxu0 %v1295
    %1332 = vmatprep.subr.mxu0 0.0
    %1333 = vmatpush1.msra.mxu0 %v1296
    %1334 = vmatprep.subr.mxu0 0.0
    %1335 = vmatpush1.msra.mxu0 %v1297
    %1336 = vmatprep.subr.mxu0 0.0
    %1337 = vmatpush1.msra.mxu0 %v1298
    %1338 = vmatprep.subr.mxu0 0.0
    %1339 = vmatpush1.msra.mxu0 %v1299
    %1340 = vmatprep.subr.mxu0 0.0
    %1341 = vmatpush1.msra.mxu0 %v1300
    %1342 = vmatprep.subr.mxu0 0.0
    %1343 = vmatpush1.msra.mxu0 %v1301
    %1344 = vmatprep.subr.mxu0 0.0
    %1345 = vmatpush1.msra.mxu0 %v1302
    %1346 = vmatprep.subr.mxu0 0.0
    %1347 = vmatpush1.msra.mxu0 %v1303
    %1348 = vmatprep.subr.mxu0 0.0
    %1349 = vmatpush1.msra.mxu0 %v1304
    %1350 = vmatprep.subr.mxu0 0.0
    %1351 = vmatpush1.msra.mxu0 %v1305
    %1352 = vmatprep.subr.mxu0 0.0
    %1353 = vmatpush1.msra.mxu0 %v1306
    %1354 = vmatprep.subr.mxu0 0.0
    %1355 = vmatpush1.msra.mxu0 %v1307
    %1356 = vmatprep.subr.mxu0 0.0
    %1357 = vmatpush1.msra.mxu0 %v1308
    %1358 = vmatprep.subr.mxu0 0.0
    %1359 = vmatpush1.msra.mxu0 %v1309
    %1360 = vmatprep.subr.mxu0 0.0
    %1361 = vmatpush1.msra.mxu0 %v1310
    %1362 = vmatprep.subr.mxu0 0.0
    %1363 = vmatpush1.msra.mxu0 %v1311
    %1364 = vmatprep.subr.mxu0 0.0
    %1365 = vmatpush1.msra.mxu0 %v1312
    %1366 = vmatprep.subr.mxu0 0.0
    %1367 = vmatpush1.msra.mxu0 %v1313
    %1368 = vmatprep.subr.mxu0 0.0
    %1369 = vmatpush1.msra.mxu0 %v1314
    %1370 = vmatprep.subr.mxu0 0.0
    %1371 = vmatpush1.msra.mxu0 %v1315
    %1372 = vmatprep.subr.mxu0 0.0
    %1373 = vmatpush1.msra.mxu0 %v1316
    %1374 = vmatprep.subr.mxu0 0.0
    %1375 = vmatpush1.msra.mxu0 %v1317
    %1376 = vmatprep.subr.mxu0 0.0
    %1377 = vmatpush1.msra.mxu0 %v1318
    %1378 = vmatprep.subr.mxu0 0.0
    %1379 = vmatpush1.msra.mxu0 %v1319
    %1380 = vmatprep.subr.mxu0 0.0
    %1381 = vmatpush1.msra.mxu0 %v1320
    %1382 = vmatprep.subr.mxu0 0.0
    %1383 = vmatpush1.msra.mxu0 %v1321
    %1384 = vmatprep.subr.mxu0 0.0
    %1385 = vmatpush1.msra.mxu0 %v1322
    %1386 = vmatprep.subr.mxu0 0.0
    %1387 = vmatpush1.msra.mxu0 %v1323
    %1388 = vmatprep.mubr.f32.mxu0 %v73
    %1389 = vmatmul.mubr.f32.gmra.mrb[0].mxu0 %v72
    %v1390 = vpop.f32.mrb[0].mxu0
    %v1391 = vadd.f32 0.0, %v1390
    %v1392 = vpop.f32.mrb[0].mxu0
    %1393 = vmatprep.mubr.f32.mxu0 %v75
    %1394 = vmatmul.mubr.f32.gmra.mrb[0].mxu0 %v74
    %v1395 = vpop.f32.mrb[0].mxu0
    %v1396 = vadd.f32 0.0, %v1395
    %v1397 = vpop.f32.mrb[0].mxu0
    %1398 = vmatprep.mubr.f32.mxu0 %v77
    %1399 = vmatmul.mubr.f32.gmra.mrb[0].mxu0 %v76
    %v1400 = vpop.f32.mrb[0].mxu0
    %v1401 = vadd.f32 0.0, %v1400
    %v1402 = vpop.f32.mrb[0].mxu0
    %1403 = vmatprep.mubr.f32.mxu0 %v79
    %1404 = vmatmul.mubr.f32.gmra.mrb[0].mxu0 %v78
    %v1405 = vpop.f32.mrb[0].mxu0
    %v1406 = vadd.f32 0.0, %v1405
    %v1407 = vpop.f32.mrb[0].mxu0
    %1408 = vmatprep.mubr.f32.mxu0 %v81
    %1409 = vmatmul.mubr.f32.gmra.mrb[0].mxu0 %v80
    %v1410 = vpop.f32.mrb[0].mxu0
    %v1411 = vadd.f32 0.0, %v1410
    %v1412 = vpop.f32.mrb[0].mxu0
    %1413 = vmatprep.mubr.f32.mxu0 %v83
    %1414 = vmatmul.mubr.f32.gmra.mrb[0].mxu0 %v82
    %v1415 = vpop.f32.mrb[0].mxu0
    %v1416 = vadd.f32 0.0, %v1415
    %v1417 = vpop.f32.mrb[0].mxu0
    %1418 = vmatprep.mubr.f32.mxu0 %v85
    %1419 = vmatmul.mubr.f32.gmra.mrb[0].mxu0 %v84
    %v1420 = vpop.f32.mrb[0].mxu0
    %v1421 = vadd.f32 0.0, %v1420
    %v1422 = vpop.f32.mrb[0].mxu0
    %1423 = vmatprep.mubr.f32.mxu0 %v87
    %1424 = vmatmul.mubr.f32.gmra.mrb[0].mxu0 %v86
    %v1425 = vpop.f32.mrb[0].mxu0
    %v1426 = vadd.f32 0.0, %v1425
    %v1427 = vpop.f32.mrb[0].mxu0
    %1428 = vmatprep.mubr.f32.mxu0 %v89
    %1429 = vmatmul.mubr.f32.gmra.mrb[0].mxu0 %v88
    %v1430 = vpop.f32.mrb[0].mxu0
    %v1431 = vadd.f32 0.0, %v1430
    %v1432 = vpop.f32.mrb[0].mxu0
    %1433 = vmatprep.mubr.f32.mxu0 %v91
    %1434 = vmatmul.mubr.f32.gmra.mrb[0].mxu0 %v90
    %v1435 = vpop.f32.mrb[0].mxu0
    %v1436 = vadd.f32 0.0, %v1435
    %v1437 = vpop.f32.mrb[0].mxu0
    %1438 = vmatprep.mubr.f32.mxu0 %v93
    %1439 = vmatmul.mubr.f32.gmra.mrb[0].mxu0 %v92
    %v1440 = vpop.f32.mrb[0].mxu0
    %v1441 = vadd.f32 0.0, %v1440
    %v1442 = vpop.f32.mrb[0].mxu0
    %1443 = vmatprep.mubr.f32.mxu0 %v95
    %1444 = vmatmul.mubr.f32.gmra.mrb[0].mxu0 %v94
    %v1445 = vpop.f32.mrb[0].mxu0
    %v1446 = vadd.f32 0.0, %v1445
    %v1447 = vpop.f32.mrb[0].mxu0
    %1448 = vmatprep.mubr.f32.mxu0 %v97
    %1449 = vmatmul.mubr.f32.gmra.mrb[0].mxu0 %v96
    %v1450 = vpop.f32.mrb[0].mxu0
    %v1451 = vadd.f32 0.0, %v1450
    %v1452 = vpop.f32.mrb[0].mxu0
    %1453 = vmatprep.mubr.f32.mxu0 %v99
    %1454 = vmatmul.mubr.f32.gmra.mrb[0].mxu0 %v98
    %v1455 = vpop.f32.mrb[0].mxu0
    %v1456 = vadd.f32 0.0, %v1455
    %v1457 = vpop.f32.mrb[0].mxu0
    %1458 = vmatprep.mubr.f32.mxu0 %v101
    %1459 = vmatmul.mubr.f32.gmra.mrb[0].mxu0 %v100
    %v1460 = vpop.f32.mrb[0].mxu0
    %v1461 = vadd.f32 0.0, %v1460
    %v1462 = vpop.f32.mrb[0].mxu0
    %1463 = vmatprep.mubr.f32.mxu0 %v103
    %1464 = vmatmul.mubr.f32.gmra.mrb[0].mxu0 %v102
    %v1465 = vpop.f32.mrb[0].mxu0
    %v1466 = vadd.f32 0.0, %v1465
    %v1467 = vpop.f32.mrb[0].mxu0
    %1468 = vmatprep.mubr.f32.mxu0 %v105
    %1469 = vmatmul.mubr.f32.gmra.mrb[0].mxu0 %v104
    %v1470 = vpop.f32.mrb[0].mxu0
    %v1471 = vadd.f32 0.0, %v1470
    %v1472 = vpop.f32.mrb[0].mxu0
    %1473 = vmatprep.mubr.f32.mxu0 %v107
    %1474 = vmatmul.mubr.f32.gmra.mrb[0].mxu0 %v106
    %v1475 = vpop.f32.mrb[0].mxu0
    %v1476 = vadd.f32 0.0, %v1475
    %v1477 = vpop.f32.mrb[0].mxu0
    %1478 = vmatprep.mubr.f32.mxu0 %v109
    %1479 = vmatmul.mubr.f32.gmra.mrb[0].mxu0 %v108
    %v1480 = vpop.f32.mrb[0].mxu0
    %v1481 = vadd.f32 0.0, %v1480
    %v1482 = vpop.f32.mrb[0].mxu0
    %1483 = vmatprep.mubr.f32.mxu0 %v111
    %1484 = vmatmul.mubr.f32.gmra.mrb[0].mxu0 %v110
    %v1485 = vpop.f32.mrb[0].mxu0
    %v1486 = vadd.f32 0.0, %v1485
    %v1487 = vpop.f32.mrb[0].mxu0
    %1488 = vmatprep.mubr.f32.mxu0 %v113
    %1489 = vmatmul.mubr.f32.gmra.mrb[0].mxu0 %v112
    %v1490 = vpop.f32.mrb[0].mxu0
    %v1491 = vadd.f32 0.0, %v1490
    %v1492 = vpop.f32.mrb[0].mxu0
    %1493 = vmatprep.mubr.f32.mxu0 %v115
    %1494 = vmatmul.mubr.f32.gmra.mrb[0].mxu0 %v114
    %v1495 = vpop.f32.mrb[0].mxu0
    %v1496 = vadd.f32 0.0, %v1495
    %v1497 = vpop.f32.mrb[0].mxu0
    %1498 = vmatprep.mubr.f32.mxu0 %v117
    %1499 = vmatmul.mubr.f32.gmra.mrb[0].mxu0 %v116
    %v1500 = vpop.f32.mrb[0].mxu0
    %v1501 = vadd.f32 0.0, %v1500
    %v1502 = vpop.f32.mrb[0].mxu0
    %1503 = vmatprep.mubr.f32.mxu0 %v119
    %1504 = vmatmul.mubr.f32.gmra.mrb[0].mxu0 %v118
    %v1505 = vpop.f32.mrb[0].mxu0
    %v1506 = vadd.f32 0.0, %v1505
    %v1507 = vpop.f32.mrb[0].mxu0
    %1508 = vmatprep.mubr.f32.mxu0 %v121
    %1509 = vmatmul.mubr.f32.gmra.mrb[0].mxu0 %v120
    %v1510 = vpop.f32.mrb[0].mxu0
    %v1511 = vadd.f32 0.0, %v1510
    %v1512 = vpop.f32.mrb[0].mxu0
    %1513 = vmatprep.mubr.f32.mxu0 %v123
    %1514 = vmatmul.mubr.f32.gmra.mrb[0].mxu0 %v122
    %v1515 = vpop.f32.mrb[0].mxu0
    %v1516 = vadd.f32 0.0, %v1515
    %v1517 = vpop.f32.mrb[0].mxu0
    %1518 = vmatprep.mubr.f32.mxu0 %v125
    %1519 = vmatmul.mubr.f32.gmra.mrb[0].mxu0 %v124
    %v1520 = vpop.f32.mrb[0].mxu0
    %v1521 = vadd.f32 0.0, %v1520
    %v1522 = vpop.f32.mrb[0].mxu0
    %1523 = vmatprep.mubr.f32.mxu0 %v127
    %1524 = vmatmul.mubr.f32.gmra.mrb[0].mxu0 %v126
    %v1525 = vpop.f32.mrb[0].mxu0
    %v1526 = vadd.f32 0.0, %v1525
    %v1527 = vpop.f32.mrb[0].mxu0
    %1528 = vmatprep.mubr.f32.mxu0 %v129
    %1529 = vmatmul.mubr.f32.gmra.mrb[0].mxu0 %v128
    %v1530 = vpop.f32.mrb[0].mxu0
    %v1531 = vadd.f32 0.0, %v1530
    %v1532 = vpop.f32.mrb[0].mxu0
    %1533 = vmatprep.mubr.f32.mxu0 %v131
    %1534 = vmatmul.mubr.f32.gmra.mrb[0].mxu0 %v130
    %v1535 = vpop.f32.mrb[0].mxu0
    %v1536 = vadd.f32 0.0, %v1535
    %v1537 = vpop.f32.mrb[0].mxu0
    %1538 = vmatprep.mubr.f32.mxu0 %v133
    %1539 = vmatmul.mubr.f32.gmra.mrb[0].mxu0 %v132
    %v1540 = vpop.f32.mrb[0].mxu0
    %v1541 = vadd.f32 0.0, %v1540
    %v1542 = vpop.f32.mrb[0].mxu0
    %1543 = vmatprep.mubr.f32.mxu0 %v135
    %1544 = vmatmul.mubr.f32.gmra.mrb[0].mxu0 %v134
    %v1545 = vpop.f32.mrb[0].mxu0
    %v1546 = vadd.f32 0.0, %v1545
    %v1547 = vpop.f32.mrb[0].mxu0
    %1548 = vdwg.mxu0
    %v1549 = vmul.f32 %v1391, 0.9
    %v1550 = vmul.f32 %v1396, 0.9
    %v1551 = vmul.f32 %v1401, 0.9
    %v1552 = vmul.f32 %v1406, 0.9
    %v1553 = vmul.f32 %v1411, 0.9
    %v1554 = vmul.f32 %v1416, 0.9
    %v1555 = vmul.f32 %v1421, 0.9
    %v1556 = vmul.f32 %v1426, 0.9
    %v1557 = vmul.f32 %v1431, 0.9
    %v1558 = vmul.f32 %v1436, 0.9
    %v1559 = vmul.f32 %v1441, 0.9
    %v1560 = vmul.f32 %v1446, 0.9
    %v1561 = vmul.f32 %v1451, 0.9
    %v1562 = vmul.f32 %v1456, 0.9
    %v1563 = vmul.f32 %v1461, 0.9
    %v1564 = vmul.f32 %v1466, 0.9
    %v1565 = vmul.f32 %v1471, 0.9
    %v1566 = vmul.f32 %v1476, 0.9
    %v1567 = vmul.f32 %v1481, 0.9
    %v1568 = vmul.f32 %v1486, 0.9
    %v1569 = vmul.f32 %v1491, 0.9
    %v1570 = vmul.f32 %v1496, 0.9
    %v1571 = vmul.f32 %v1501, 0.9
    %v1572 = vmul.f32 %v1506, 0.9
    %v1573 = vmul.f32 %v1511, 0.9
    %v1574 = vmul.f32 %v1516, 0.9
    %v1575 = vmul.f32 %v1521, 0.9
    %v1576 = vmul.f32 %v1526, 0.9
    %v1577 = vmul.f32 %v1531, 0.9
    %v1578 = vmul.f32 %v1536, 0.9
    %v1579 = vmul.f32 %v1541, 0.9
    %v1580 = vmul.f32 %v1546, 0.9
    %v1581 = vadd.f32 %v1549, %v136
    %v1582 = vadd.f32 %v1550, %v137
    %v1583 = vadd.f32 %v1551, %v138
    %v1584 = vadd.f32 %v1552, %v139
    %v1585 = vadd.f32 %v1553, %v140
    %v1586 = vadd.f32 %v1554, %v141
    %v1587 = vadd.f32 %v1555, %v142
    %v1588 = vadd.f32 %v1556, %v143
    %v1589 = vadd.f32 %v1557, %v144
    %v1590 = vadd.f32 %v1558, %v145
    %v1591 = vadd.f32 %v1559, %v146
    %v1592 = vadd.f32 %v1560, %v147
    %v1593 = vadd.f32 %v1561, %v148
    %v1594 = vadd.f32 %v1562, %v149
    %v1595 = vadd.f32 %v1563, %v150
    %v1596 = vadd.f32 %v1564, %v151
    %v1597 = vadd.f32 %v1565, %v152
    %v1598 = vadd.f32 %v1566, %v153
    %v1599 = vadd.f32 %v1567, %v154
    %v1600 = vadd.f32 %v1568, %v155
    %v1601 = vadd.f32 %v1569, %v156
    %v1602 = vadd.f32 %v1570, %v157
    %v1603 = vadd.f32 %v1571, %v158
    %v1604 = vadd.f32 %v1572, %v159
    %v1605 = vadd.f32 %v1573, %v160
    %v1606 = vadd.f32 %v1574, %v161
    %v1607 = vadd.f32 %v1575, %v162
    %v1608 = vadd.f32 %v1576, %v163
    %v1609 = vadd.f32 %v1577, %v164
    %v1610 = vadd.f32 %v1578, %v165
    %v1611 = vadd.f32 %v1579, %v166
    %v1612 = vadd.f32 %v1580, %v167
    %1613 = vmatprep.subr.mxu0 0.0
    %1614 = vmatpush1.msra.mxu0 %v1581
    %1615 = vmatprep.subr.mxu0 0.0
    %1616 = vmatpush1.msra.mxu0 %v1582
    %1617 = vmatprep.subr.mxu0 0.0
    %1618 = vmatpush1.msra.mxu0 %v1583
    %1619 = vmatprep.subr.mxu0 0.0
    %1620 = vmatpush1.msra.mxu0 %v1584
    %1621 = vmatprep.subr.mxu0 0.0
    %1622 = vmatpush1.msra.mxu0 %v1585
    %1623 = vmatprep.subr.mxu0 0.0
    %1624 = vmatpush1.msra.mxu0 %v1586
    %1625 = vmatprep.subr.mxu0 0.0
    %1626 = vmatpush1.msra.mxu0 %v1587
    %1627 = vmatprep.subr.mxu0 0.0
    %1628 = vmatpush1.msra.mxu0 %v1588
    %1629 = vmatprep.subr.mxu0 0.0
    %1630 = vmatpush1.msra.mxu0 %v1589
    %1631 = vmatprep.subr.mxu0 0.0
    %1632 = vmatpush1.msra.mxu0 %v1590
    %1633 = vmatprep.subr.mxu0 0.0
    %1634 = vmatpush1.msra.mxu0 %v1591
    %1635 = vmatprep.subr.mxu0 0.0
    %1636 = vmatpush1.msra.mxu0 %v1592
    %1637 = vmatprep.subr.mxu0 0.0
    %1638 = vmatpush1.msra.mxu0 %v1593
    %1639 = vmatprep.subr.mxu0 0.0
    %1640 = vmatpush1.msra.mxu0 %v1594
    %1641 = vmatprep.subr.mxu0 0.0
    %1642 = vmatpush1.msra.mxu0 %v1595
    %1643 = vmatprep.subr.mxu0 0.0
    %1644 = vmatpush1.msra.mxu0 %v1596
    %1645 = vmatprep.subr.mxu0 0.0
    %1646 = vmatpush1.msra.mxu0 %v1597
    %1647 = vmatprep.subr.mxu0 0.0
    %1648 = vmatpush1.msra.mxu0 %v1598
    %1649 = vmatprep.subr.mxu0 0.0
    %1650 = vmatpush1.msra.mxu0 %v1599
    %1651 = vmatprep.subr.mxu0 0.0
    %1652 = vmatpush1.msra.mxu0 %v1600
    %1653 = vmatprep.subr.mxu0 0.0
    %1654 = vmatpush1.msra.mxu0 %v1601
    %1655 = vmatprep.subr.mxu0 0.0
    %1656 = vmatpush1.msra.mxu0 %v1602
    %1657 = vmatprep.subr.mxu0 0.0
    %1658 = vmatpush1.msra.mxu0 %v1603
    %1659 = vmatprep.subr.mxu0 0.0
    %1660 = vmatpush1.msra.mxu0 %v1604
    %1661 = vmatprep.subr.mxu0 0.0
    %1662 = vmatpush1.msra.mxu0 %v1605
    %1663 = vmatprep.subr.mxu0 0.0
    %1664 = vmatpush1.msra.mxu0 %v1606
    %1665 = vmatprep.subr.mxu0 0.0
    %1666 = vmatpush1.msra.mxu0 %v1607
    %1667 = vmatprep.subr.mxu0 0.0
    %1668 = vmatpush1.msra.mxu0 %v1608
    %1669 = vmatprep.subr.mxu0 0.0
    %1670 = vmatpush1.msra.mxu0 %v1609
    %1671 = vmatprep.subr.mxu0 0.0
    %1672 = vmatpush1.msra.mxu0 %v1610
    %1673 = vmatprep.subr.mxu0 0.0
    %1674 = vmatpush1.msra.mxu0 %v1611
    %1675 = vmatprep.subr.mxu0 0.0
    %1676 = vmatpush1.msra.mxu0 %v1612
    %1677 = vmatprep.mubr.f32.mxu0 %v73
    %1678 = vmatmul.mubr.f32.gmra.mrb[0].mxu0 %v72
    %v1679 = vpop.f32.mrb[0].mxu0
    %v1680 = vadd.f32 0.0, %v1679
    %v1681 = vpop.f32.mrb[0].mxu0
    %1682 = vmatprep.mubr.f32.mxu0 %v75
    %1683 = vmatmul.mubr.f32.gmra.mrb[0].mxu0 %v74
    %v1684 = vpop.f32.mrb[0].mxu0
    %v1685 = vadd.f32 0.0, %v1684
    %v1686 = vpop.f32.mrb[0].mxu0
    %1687 = vmatprep.mubr.f32.mxu0 %v77
    %1688 = vmatmul.mubr.f32.gmra.mrb[0].mxu0 %v76
    %v1689 = vpop.f32.mrb[0].mxu0
    %v1690 = vadd.f32 0.0, %v1689
    %v1691 = vpop.f32.mrb[0].mxu0
    %1692 = vmatprep.mubr.f32.mxu0 %v79
    %1693 = vmatmul.mubr.f32.gmra.mrb[0].mxu0 %v78
    %v1694 = vpop.f32.mrb[0].mxu0
    %v1695 = vadd.f32 0.0, %v1694
    %v1696 = vpop.f32.mrb[0].mxu0
    %1697 = vmatprep.mubr.f32.mxu0 %v81
    %1698 = vmatmul.mubr.f32.gmra.mrb[0].mxu0 %v80
    %v1699 = vpop.f32.mrb[0].mxu0
    %v1700 = vadd.f32 0.0, %v1699
    %v1701 = vpop.f32.mrb[0].mxu0
    %1702 = vmatprep.mubr.f32.mxu0 %v83
    %1703 = vmatmul.mubr.f32.gmra.mrb[0].mxu0 %v82
    %v1704 = vpop.f32.mrb[0].mxu0
    %v1705 = vadd.f32 0.0, %v1704
    %v1706 = vpop.f32.mrb[0].mxu0
    %1707 = vmatprep.mubr.f32.mxu0 %v85
    %1708 = vmatmul.mubr.f32.gmra.mrb[0].mxu0 %v84
    %v1709 = vpop.f32.mrb[0].mxu0
    %v1710 = vadd.f32 0.0, %v1709
    %v1711 = vpop.f32.mrb[0].mxu0
    %1712 = vmatprep.mubr.f32.mxu0 %v87
    %1713 = vmatmul.mubr.f32.gmra.mrb[0].mxu0 %v86
    %v1714 = vpop.f32.mrb[0].mxu0
    %v1715 = vadd.f32 0.0, %v1714
    %v1716 = vpop.f32.mrb[0].mxu0
    %1717 = vmatprep.mubr.f32.mxu0 %v89
    %1718 = vmatmul.mubr.f32.gmra.mrb[0].mxu0 %v88
    %v1719 = vpop.f32.mrb[0].mxu0
    %v1720 = vadd.f32 0.0, %v1719
    %v1721 = vpop.f32.mrb[0].mxu0
    %1722 = vmatprep.mubr.f32.mxu0 %v91
    %1723 = vmatmul.mubr.f32.gmra.mrb[0].mxu0 %v90
    %v1724 = vpop.f32.mrb[0].mxu0
    %v1725 = vadd.f32 0.0, %v1724
    %v1726 = vpop.f32.mrb[0].mxu0
    %1727 = vmatprep.mubr.f32.mxu0 %v93
    %1728 = vmatmul.mubr.f32.gmra.mrb[0].mxu0 %v92
    %v1729 = vpop.f32.mrb[0].mxu0
    %v1730 = vadd.f32 0.0, %v1729
    %v1731 = vpop.f32.mrb[0].mxu0
    %1732 = vmatprep.mubr.f32.mxu0 %v95
    %1733 = vmatmul.mubr.f32.gmra.mrb[0].mxu0 %v94
    %v1734 = vpop.f32.mrb[0].mxu0
    %v1735 = vadd.f32 0.0, %v1734
    %v1736 = vpop.f32.mrb[0].mxu0
    %1737 = vmatprep.mubr.f32.mxu0 %v97
    %1738 = vmatmul.mubr.f32.gmra.mrb[0].mxu0 %v96
    %v1739 = vpop.f32.mrb[0].mxu0
    %v1740 = vadd.f32 0.0, %v1739
    %v1741 = vpop.f32.mrb[0].mxu0
    %1742 = vmatprep.mubr.f32.mxu0 %v99
    %1743 = vmatmul.mubr.f32.gmra.mrb[0].mxu0 %v98
    %v1744 = vpop.f32.mrb[0].mxu0
    %v1745 = vadd.f32 0.0, %v1744
    %v1746 = vpop.f32.mrb[0].mxu0
    %1747 = vmatprep.mubr.f32.mxu0 %v101
    %1748 = vmatmul.mubr.f32.gmra.mrb[0].mxu0 %v100
    %v1749 = vpop.f32.mrb[0].mxu0
    %v1750 = vadd.f32 0.0, %v1749
    %v1751 = vpop.f32.mrb[0].mxu0
    %1752 = vmatprep.mubr.f32.mxu0 %v103
    %1753 = vmatmul.mubr.f32.gmra.mrb[0].mxu0 %v102
    %v1754 = vpop.f32.mrb[0].mxu0
    %v1755 = vadd.f32 0.0, %v1754
    %v1756 = vpop.f32.mrb[0].mxu0
    %1757 = vmatprep.mubr.f32.mxu0 %v105
    %1758 = vmatmul.mubr.f32.gmra.mrb[0].mxu0 %v104
    %v1759 = vpop.f32.mrb[0].mxu0
    %v1760 = vadd.f32 0.0, %v1759
    %v1761 = vpop.f32.mrb[0].mxu0
    %1762 = vmatprep.mubr.f32.mxu0 %v107
    %1763 = vmatmul.mubr.f32.gmra.mrb[0].mxu0 %v106
    %v1764 = vpop.f32.mrb[0].mxu0
    %v1765 = vadd.f32 0.0, %v1764
    %v1766 = vpop.f32.mrb[0].mxu0
    %1767 = vmatprep.mubr.f32.mxu0 %v109
    %1768 = vmatmul.mubr.f32.gmra.mrb[0].mxu0 %v108
    %v1769 = vpop.f32.mrb[0].mxu0
    %v1770 = vadd.f32 0.0, %v1769
    %v1771 = vpop.f32.mrb[0].mxu0
    %1772 = vmatprep.mubr.f32.mxu0 %v111
    %1773 = vmatmul.mubr.f32.gmra.mrb[0].mxu0 %v110
    %v1774 = vpop.f32.mrb[0].mxu0
    %v1775 = vadd.f32 0.0, %v1774
    %v1776 = vpop.f32.mrb[0].mxu0
    %1777 = vmatprep.mubr.f32.mxu0 %v113
    %1778 = vmatmul.mubr.f32.gmra.mrb[0].mxu0 %v112
    %v1779 = vpop.f32.mrb[0].mxu0
    %v1780 = vadd.f32 0.0, %v1779
    %v1781 = vpop.f32.mrb[0].mxu0
    %1782 = vmatprep.mubr.f32.mxu0 %v115
    %1783 = vmatmul.mubr.f32.gmra.mrb[0].mxu0 %v114
    %v1784 = vpop.f32.mrb[0].mxu0
    %v1785 = vadd.f32 0.0, %v1784
    %v1786 = vpop.f32.mrb[0].mxu0
    %1787 = vmatprep.mubr.f32.mxu0 %v117
    %1788 = vmatmul.mubr.f32.gmra.mrb[0].mxu0 %v116
    %v1789 = vpop.f32.mrb[0].mxu0
    %v1790 = vadd.f32 0.0, %v1789
    %v1791 = vpop.f32.mrb[0].mxu0
    %1792 = vmatprep.mubr.f32.mxu0 %v119
    %1793 = vmatmul.mubr.f32.gmra.mrb[0].mxu0 %v118
    %v1794 = vpop.f32.mrb[0].mxu0
    %v1795 = vadd.f32 0.0, %v1794
    %v1796 = vpop.f32.mrb[0].mxu0
    %1797 = vmatprep.mubr.f32.mxu0 %v121
    %1798 = vmatmul.mubr.f32.gmra.mrb[0].mxu0 %v120
    %v1799 = vpop.f32.mrb[0].mxu0
    %v1800 = vadd.f32 0.0, %v1799
    %v1801 = vpop.f32.mrb[0].mxu0
    %1802 = vmatprep.mubr.f32.mxu0 %v123
    %1803 = vmatmul.mubr.f32.gmra.mrb[0].mxu0 %v122
    %v1804 = vpop.f32.mrb[0].mxu0
    %v1805 = vadd.f32 0.0, %v1804
    %v1806 = vpop.f32.mrb[0].mxu0
    %1807 = vmatprep.mubr.f32.mxu0 %v125
    %1808 = vmatmul.mubr.f32.gmra.mrb[0].mxu0 %v124
    %v1809 = vpop.f32.mrb[0].mxu0
    %v1810 = vadd.f32 0.0, %v1809
    %v1811 = vpop.f32.mrb[0].mxu0
    %1812 = vmatprep.mubr.f32.mxu0 %v127
    %1813 = vmatmul.mubr.f32.gmra.mrb[0].mxu0 %v126
    %v1814 = vpop.f32.mrb[0].mxu0
    %v1815 = vadd.f32 0.0, %v1814
    %v1816 = vpop.f32.mrb[0].mxu0
    %1817 = vmatprep.mubr.f32.mxu0 %v129
    %1818 = vmatmul.mubr.f32.gmra.mrb[0].mxu0 %v128
    %v1819 = vpop.f32.mrb[0].mxu0
    %v1820 = vadd.f32 0.0, %v1819
    %v1821 = vpop.f32.mrb[0].mxu0
    %1822 = vmatprep.mubr.f32.mxu0 %v131
    %1823 = vmatmul.mubr.f32.gmra.mrb[0].mxu0 %v130
    %v1824 = vpop.f32.mrb[0].mxu0
    %v1825 = vadd.f32 0.0, %v1824
    %v1826 = vpop.f32.mrb[0].mxu0
    %1827 = vmatprep.mubr.f32.mxu0 %v133
    %1828 = vmatmul.mubr.f32.gmra.mrb[0].mxu0 %v132
    %v1829 = vpop.f32.mrb[0].mxu0
    %v1830 = vadd.f32 0.0, %v1829
    %v1831 = vpop.f32.mrb[0].mxu0
    %1832 = vmatprep.mubr.f32.mxu0 %v135
    %1833 = vmatmul.mubr.f32.gmra.mrb[0].mxu0 %v134
    %v1834 = vpop.f32.mrb[0].mxu0
    %v1835 = vadd.f32 0.0, %v1834
    %v1836 = vpop.f32.mrb[0].mxu0
    %1837 = vdwg.mxu0
    %v1838 = vmul.f32 %v1680, 0.9
    %v1839 = vmul.f32 %v1685, 0.9
    %v1840 = vmul.f32 %v1690, 0.9
    %v1841 = vmul.f32 %v1695, 0.9
    %v1842 = vmul.f32 %v1700, 0.9
    %v1843 = vmul.f32 %v1705, 0.9
    %v1844 = vmul.f32 %v1710, 0.9
    %v1845 = vmul.f32 %v1715, 0.9
    %v1846 = vmul.f32 %v1720, 0.9
    %v1847 = vmul.f32 %v1725, 0.9
    %v1848 = vmul.f32 %v1730, 0.9
    %v1849 = vmul.f32 %v1735, 0.9
    %v1850 = vmul.f32 %v1740, 0.9
    %v1851 = vmul.f32 %v1745, 0.9
    %v1852 = vmul.f32 %v1750, 0.9
    %v1853 = vmul.f32 %v1755, 0.9
    %v1854 = vmul.f32 %v1760, 0.9
    %v1855 = vmul.f32 %v1765, 0.9
    %v1856 = vmul.f32 %v1770, 0.9
    %v1857 = vmul.f32 %v1775, 0.9
    %v1858 = vmul.f32 %v1780, 0.9
    %v1859 = vmul.f32 %v1785, 0.9
    %v1860 = vmul.f32 %v1790, 0.9
    %v1861 = vmul.f32 %v1795, 0.9
    %v1862 = vmul.f32 %v1800, 0.9
    %v1863 = vmul.f32 %v1805, 0.9
    %v1864 = vmul.f32 %v1810, 0.9
    %v1865 = vmul.f32 %v1815, 0.9
    %v1866 = vmul.f32 %v1820, 0.9
    %v1867 = vmul.f32 %v1825, 0.9
    %v1868 = vmul.f32 %v1830, 0.9
    %v1869 = vmul.f32 %v1835, 0.9
    %v1870 = vadd.f32 %v1838, %v136
    %v1871 = vadd.f32 %v1839, %v137
    %v1872 = vadd.f32 %v1840, %v138
    %v1873 = vadd.f32 %v1841, %v139
    %v1874 = vadd.f32 %v1842, %v140
    %v1875 = vadd.f32 %v1843, %v141
    %v1876 = vadd.f32 %v1844, %v142
    %v1877 = vadd.f32 %v1845, %v143
    %v1878 = vadd.f32 %v1846, %v144
    %v1879 = vadd.f32 %v1847, %v145
    %v1880 = vadd.f32 %v1848, %v146
    %v1881 = vadd.f32 %v1849, %v147
    %v1882 = vadd.f32 %v1850, %v148
    %v1883 = vadd.f32 %v1851, %v149
    %v1884 = vadd.f32 %v1852, %v150
    %v1885 = vadd.f32 %v1853, %v151
    %v1886 = vadd.f32 %v1854, %v152
    %v1887 = vadd.f32 %v1855, %v153
    %v1888 = vadd.f32 %v1856, %v154
    %v1889 = vadd.f32 %v1857, %v155
    %v1890 = vadd.f32 %v1858, %v156
    %v1891 = vadd.f32 %v1859, %v157
    %v1892 = vadd.f32 %v1860, %v158
    %v1893 = vadd.f32 %v1861, %v159
    %v1894 = vadd.f32 %v1862, %v160
    %v1895 = vadd.f32 %v1863, %v161
    %v1896 = vadd.f32 %v1864, %v162
    %v1897 = vadd.f32 %v1865, %v163
    %v1898 = vadd.f32 %v1866, %v164
    %v1899 = vadd.f32 %v1867, %v165
    %v1900 = vadd.f32 %v1868, %v166
    %v1901 = vadd.f32 %v1869, %v167
    %1902 = vmatprep.subr.mxu0 0.0
    %1903 = vmatpush1.msra.mxu0 %v1870
    %1904 = vmatprep.subr.mxu0 0.0
    %1905 = vmatpush1.msra.mxu0 %v1871
    %1906 = vmatprep.subr.mxu0 0.0
    %1907 = vmatpush1.msra.mxu0 %v1872
    %1908 = vmatprep.subr.mxu0 0.0
    %1909 = vmatpush1.msra.mxu0 %v1873
    %1910 = vmatprep.subr.mxu0 0.0
    %1911 = vmatpush1.msra.mxu0 %v1874
    %1912 = vmatprep.subr.mxu0 0.0
    %1913 = vmatpush1.msra.mxu0 %v1875
    %1914 = vmatprep.subr.mxu0 0.0
    %1915 = vmatpush1.msra.mxu0 %v1876
    %1916 = vmatprep.subr.mxu0 0.0
    %1917 = vmatpush1.msra.mxu0 %v1877
    %1918 = vmatprep.subr.mxu0 0.0
    %1919 = vmatpush1.msra.mxu0 %v1878
    %1920 = vmatprep.subr.mxu0 0.0
    %1921 = vmatpush1.msra.mxu0 %v1879
    %1922 = vmatprep.subr.mxu0 0.0
    %1923 = vmatpush1.msra.mxu0 %v1880
    %1924 = vmatprep.subr.mxu0 0.0
    %1925 = vmatpush1.msra.mxu0 %v1881
    %1926 = vmatprep.subr.mxu0 0.0
    %1927 = vmatpush1.msra.mxu0 %v1882
    %1928 = vmatprep.subr.mxu0 0.0
    %1929 = vmatpush1.msra.mxu0 %v1883
    %1930 = vmatprep.subr.mxu0 0.0
    %1931 = vmatpush1.msra.mxu0 %v1884
    %1932 = vmatprep.subr.mxu0 0.0
    %1933 = vmatpush1.msra.mxu0 %v1885
    %1934 = vmatprep.subr.mxu0 0.0
    %1935 = vmatpush1.msra.mxu0 %v1886
    %1936 = vmatprep.subr.mxu0 0.0
    %1937 = vmatpush1.msra.mxu0 %v1887
    %1938 = vmatprep.subr.mxu0 0.0
    %1939 = vmatpush1.msra.mxu0 %v1888
    %1940 = vmatprep.subr.mxu0 0.0
    %1941 = vmatpush1.msra.mxu0 %v1889
    %1942 = vmatprep.subr.mxu0 0.0
    %1943 = vmatpush1.msra.mxu0 %v1890
    %1944 = vmatprep.subr.mxu0 0.0
    %1945 = vmatpush1.msra.mxu0 %v1891
    %1946 = vmatprep.subr.mxu0 0.0
    %1947 = vmatpush1.msra.mxu0 %v1892
    %1948 = vmatprep.subr.mxu0 0.0
    %1949 = vmatpush1.msra.mxu0 %v1893
    %1950 = vmatprep.subr.mxu0 0.0
    %1951 = vmatpush1.msra.mxu0 %v1894
    %1952 = vmatprep.subr.mxu0 0.0
    %1953 = vmatpush1.msra.mxu0 %v1895
    %1954 = vmatprep.subr.mxu0 0.0
    %1955 = vmatpush1.msra.mxu0 %v1896
    %1956 = vmatprep.subr.mxu0 0.0
    %1957 = vmatpush1.msra.mxu0 %v1897
    %1958 = vmatprep.subr.mxu0 0.0
    %1959 = vmatpush1.msra.mxu0 %v1898
    %1960 = vmatprep.subr.mxu0 0.0
    %1961 = vmatpush1.msra.mxu0 %v1899
    %1962 = vmatprep.subr.mxu0 0.0
    %1963 = vmatpush1.msra.mxu0 %v1900
    %1964 = vmatprep.subr.mxu0 0.0
    %1965 = vmatpush1.msra.mxu0 %v1901
    %1966 = vmatprep.mubr.f32.mxu0 %v73
    %1967 = vmatmul.mubr.f32.gmra.mrb[0].mxu0 %v72
    %v1968 = vpop.f32.mrb[0].mxu0
    %v1969 = vadd.f32 0.0, %v1968
    %v1970 = vpop.f32.mrb[0].mxu0
    %1971 = vmatprep.mubr.f32.mxu0 %v75
    %1972 = vmatmul.mubr.f32.gmra.mrb[0].mxu0 %v74
    %v1973 = vpop.f32.mrb[0].mxu0
    %v1974 = vadd.f32 0.0, %v1973
    %v1975 = vpop.f32.mrb[0].mxu0
    %1976 = vmatprep.mubr.f32.mxu0 %v77
    %1977 = vmatmul.mubr.f32.gmra.mrb[0].mxu0 %v76
    %v1978 = vpop.f32.mrb[0].mxu0
    %v1979 = vadd.f32 0.0, %v1978
    %v1980 = vpop.f32.mrb[0].mxu0
    %1981 = vmatprep.mubr.f32.mxu0 %v79
    %1982 = vmatmul.mubr.f32.gmra.mrb[0].mxu0 %v78
    %v1983 = vpop.f32.mrb[0].mxu0
    %v1984 = vadd.f32 0.0, %v1983
    %v1985 = vpop.f32.mrb[0].mxu0
    %1986 = vmatprep.mubr.f32.mxu0 %v81
    %1987 = vmatmul.mubr.f32.gmra.mrb[0].mxu0 %v80
    %v1988 = vpop.f32.mrb[0].mxu0
    %v1989 = vadd.f32 0.0, %v1988
    %v1990 = vpop.f32.mrb[0].mxu0
    %1991 = vmatprep.mubr.f32.mxu0 %v83
    %1992 = vmatmul.mubr.f32.gmra.mrb[0].mxu0 %v82
    %v1993 = vpop.f32.mrb[0].mxu0
    %v1994 = vadd.f32 0.0, %v1993
    %v1995 = vpop.f32.mrb[0].mxu0
    %1996 = vmatprep.mubr.f32.mxu0 %v85
    %1997 = vmatmul.mubr.f32.gmra.mrb[0].mxu0 %v84
    %v1998 = vpop.f32.mrb[0].mxu0
    %v1999 = vadd.f32 0.0, %v1998
    %v2000 = vpop.f32.mrb[0].mxu0
    %2001 = vmatprep.mubr.f32.mxu0 %v87
    %2002 = vmatmul.mubr.f32.gmra.mrb[0].mxu0 %v86
    %v2003 = vpop.f32.mrb[0].mxu0
    %v2004 = vadd.f32 0.0, %v2003
    %v2005 = vpop.f32.mrb[0].mxu0
    %2006 = vmatprep.mubr.f32.mxu0 %v89
    %2007 = vmatmul.mubr.f32.gmra.mrb[0].mxu0 %v88
    %v2008 = vpop.f32.mrb[0].mxu0
    %v2009 = vadd.f32 0.0, %v2008
    %v2010 = vpop.f32.mrb[0].mxu0
    %2011 = vmatprep.mubr.f32.mxu0 %v91
    %2012 = vmatmul.mubr.f32.gmra.mrb[0].mxu0 %v90
    %v2013 = vpop.f32.mrb[0].mxu0
    %v2014 = vadd.f32 0.0, %v2013
    %v2015 = vpop.f32.mrb[0].mxu0
    %2016 = vmatprep.mubr.f32.mxu0 %v93
    %2017 = vmatmul.mubr.f32.gmra.mrb[0].mxu0 %v92
    %v2018 = vpop.f32.mrb[0].mxu0
    %v2019 = vadd.f32 0.0, %v2018
    %v2020 = vpop.f32.mrb[0].mxu0
    %2021 = vmatprep.mubr.f32.mxu0 %v95
    %2022 = vmatmul.mubr.f32.gmra.mrb[0].mxu0 %v94
    %v2023 = vpop.f32.mrb[0].mxu0
    %v2024 = vadd.f32 0.0, %v2023
    %v2025 = vpop.f32.mrb[0].mxu0
    %2026 = vmatprep.mubr.f32.mxu0 %v97
    %2027 = vmatmul.mubr.f32.gmra.mrb[0].mxu0 %v96
    %v2028 = vpop.f32.mrb[0].mxu0
    %v2029 = vadd.f32 0.0, %v2028
    %v2030 = vpop.f32.mrb[0].mxu0
    %2031 = vmatprep.mubr.f32.mxu0 %v99
    %2032 = vmatmul.mubr.f32.gmra.mrb[0].mxu0 %v98
    %v2033 = vpop.f32.mrb[0].mxu0
    %v2034 = vadd.f32 0.0, %v2033
    %v2035 = vpop.f32.mrb[0].mxu0
    %2036 = vmatprep.mubr.f32.mxu0 %v101
    %2037 = vmatmul.mubr.f32.gmra.mrb[0].mxu0 %v100
    %v2038 = vpop.f32.mrb[0].mxu0
    %v2039 = vadd.f32 0.0, %v2038
    %v2040 = vpop.f32.mrb[0].mxu0
    %2041 = vmatprep.mubr.f32.mxu0 %v103
    %2042 = vmatmul.mubr.f32.gmra.mrb[0].mxu0 %v102
    %v2043 = vpop.f32.mrb[0].mxu0
    %v2044 = vadd.f32 0.0, %v2043
    %v2045 = vpop.f32.mrb[0].mxu0
    %2046 = vmatprep.mubr.f32.mxu0 %v105
    %2047 = vmatmul.mubr.f32.gmra.mrb[0].mxu0 %v104
    %v2048 = vpop.f32.mrb[0].mxu0
    %v2049 = vadd.f32 0.0, %v2048
    %v2050 = vpop.f32.mrb[0].mxu0
    %2051 = vmatprep.mubr.f32.mxu0 %v107
    %2052 = vmatmul.mubr.f32.gmra.mrb[0].mxu0 %v106
    %v2053 = vpop.f32.mrb[0].mxu0
    %v2054 = vadd.f32 0.0, %v2053
    %v2055 = vpop.f32.mrb[0].mxu0
    %2056 = vmatprep.mubr.f32.mxu0 %v109
    %2057 = vmatmul.mubr.f32.gmra.mrb[0].mxu0 %v108
    %v2058 = vpop.f32.mrb[0].mxu0
    %v2059 = vadd.f32 0.0, %v2058
    %v2060 = vpop.f32.mrb[0].mxu0
    %2061 = vmatprep.mubr.f32.mxu0 %v111
    %2062 = vmatmul.mubr.f32.gmra.mrb[0].mxu0 %v110
    %v2063 = vpop.f32.mrb[0].mxu0
    %v2064 = vadd.f32 0.0, %v2063
    %v2065 = vpop.f32.mrb[0].mxu0
    %2066 = vmatprep.mubr.f32.mxu0 %v113
    %2067 = vmatmul.mubr.f32.gmra.mrb[0].mxu0 %v112
    %v2068 = vpop.f32.mrb[0].mxu0
    %v2069 = vadd.f32 0.0, %v2068
    %v2070 = vpop.f32.mrb[0].mxu0
    %2071 = vmatprep.mubr.f32.mxu0 %v115
    %2072 = vmatmul.mubr.f32.gmra.mrb[0].mxu0 %v114
    %v2073 = vpop.f32.mrb[0].mxu0
    %v2074 = vadd.f32 0.0, %v2073
    %v2075 = vpop.f32.mrb[0].mxu0
    %2076 = vmatprep.mubr.f32.mxu0 %v117
    %2077 = vmatmul.mubr.f32.gmra.mrb[0].mxu0 %v116
    %v2078 = vpop.f32.mrb[0].mxu0
    %v2079 = vadd.f32 0.0, %v2078
    %v2080 = vpop.f32.mrb[0].mxu0
    %2081 = vmatprep.mubr.f32.mxu0 %v119
    %2082 = vmatmul.mubr.f32.gmra.mrb[0].mxu0 %v118
    %v2083 = vpop.f32.mrb[0].mxu0
    %v2084 = vadd.f32 0.0, %v2083
    %v2085 = vpop.f32.mrb[0].mxu0
    %2086 = vmatprep.mubr.f32.mxu0 %v121
    %2087 = vmatmul.mubr.f32.gmra.mrb[0].mxu0 %v120
    %v2088 = vpop.f32.mrb[0].mxu0
    %v2089 = vadd.f32 0.0, %v2088
    %v2090 = vpop.f32.mrb[0].mxu0
    %2091 = vmatprep.mubr.f32.mxu0 %v123
    %2092 = vmatmul.mubr.f32.gmra.mrb[0].mxu0 %v122
    %v2093 = vpop.f32.mrb[0].mxu0
    %v2094 = vadd.f32 0.0, %v2093
    %v2095 = vpop.f32.mrb[0].mxu0
    %2096 = vmatprep.mubr.f32.mxu0 %v125
    %2097 = vmatmul.mubr.f32.gmra.mrb[0].mxu0 %v124
    %v2098 = vpop.f32.mrb[0].mxu0
    %v2099 = vadd.f32 0.0, %v2098
    %v2100 = vpop.f32.mrb[0].mxu0
    %2101 = vmatprep.mubr.f32.mxu0 %v127
    %2102 = vmatmul.mubr.f32.gmra.mrb[0].mxu0 %v126
    %v2103 = vpop.f32.mrb[0].mxu0
    %v2104 = vadd.f32 0.0, %v2103
    %v2105 = vpop.f32.mrb[0].mxu0
    %2106 = vmatprep.mubr.f32.mxu0 %v129
    %2107 = vmatmul.mubr.f32.gmra.mrb[0].mxu0 %v128
    %v2108 = vpop.f32.mrb[0].mxu0
    %v2109 = vadd.f32 0.0, %v2108
    %v2110 = vpop.f32.mrb[0].mxu0
    %2111 = vmatprep.mubr.f32.mxu0 %v131
    %2112 = vmatmul.mubr.f32.gmra.mrb[0].mxu0 %v130
    %v2113 = vpop.f32.mrb[0].mxu0
    %v2114 = vadd.f32 0.0, %v2113
    %v2115 = vpop.f32.mrb[0].mxu0
    %2116 = vmatprep.mubr.f32.mxu0 %v133
    %2117 = vmatmul.mubr.f32.gmra.mrb[0].mxu0 %v132
    %v2118 = vpop.f32.mrb[0].mxu0
    %v2119 = vadd.f32 0.0, %v2118
    %v2120 = vpop.f32.mrb[0].mxu0
    %2121 = vmatprep.mubr.f32.mxu0 %v135
    %2122 = vmatmul.mubr.f32.gmra.mrb[0].mxu0 %v134
    %v2123 = vpop.f32.mrb[0].mxu0
    %v2124 = vadd.f32 0.0, %v2123
    %v2125 = vpop.f32.mrb[0].mxu0
    %2126 = vdwg.mxu0
    %v2127 = vmul.f32 %v1969, 0.9
    %v2128 = vmul.f32 %v1974, 0.9
    %v2129 = vmul.f32 %v1979, 0.9
    %v2130 = vmul.f32 %v1984, 0.9
    %v2131 = vmul.f32 %v1989, 0.9
    %v2132 = vmul.f32 %v1994, 0.9
    %v2133 = vmul.f32 %v1999, 0.9
    %v2134 = vmul.f32 %v2004, 0.9
    %v2135 = vmul.f32 %v2009, 0.9
    %v2136 = vmul.f32 %v2014, 0.9
    %v2137 = vmul.f32 %v2019, 0.9
    %v2138 = vmul.f32 %v2024, 0.9
    %v2139 = vmul.f32 %v2029, 0.9
    %v2140 = vmul.f32 %v2034, 0.9
    %v2141 = vmul.f32 %v2039, 0.9
    %v2142 = vmul.f32 %v2044, 0.9
    %v2143 = vmul.f32 %v2049, 0.9
    %v2144 = vmul.f32 %v2054, 0.9
    %v2145 = vmul.f32 %v2059, 0.9
    %v2146 = vmul.f32 %v2064, 0.9
    %v2147 = vmul.f32 %v2069, 0.9
    %v2148 = vmul.f32 %v2074, 0.9
    %v2149 = vmul.f32 %v2079, 0.9
    %v2150 = vmul.f32 %v2084, 0.9
    %v2151 = vmul.f32 %v2089, 0.9
    %v2152 = vmul.f32 %v2094, 0.9
    %v2153 = vmul.f32 %v2099, 0.9
    %v2154 = vmul.f32 %v2104, 0.9
    %v2155 = vmul.f32 %v2109, 0.9
    %v2156 = vmul.f32 %v2114, 0.9
    %v2157 = vmul.f32 %v2119, 0.9
    %v2158 = vmul.f32 %v2124, 0.9
    %v2159 = vadd.f32 %v2127, %v136
    %v2160 = vadd.f32 %v2128, %v137
    %v2161 = vadd.f32 %v2129, %v138
    %v2162 = vadd.f32 %v2130, %v139
    %v2163 = vadd.f32 %v2131, %v140
    %v2164 = vadd.f32 %v2132, %v141
    %v2165 = vadd.f32 %v2133, %v142
    %v2166 = vadd.f32 %v2134, %v143
    %v2167 = vadd.f32 %v2135, %v144
    %v2168 = vadd.f32 %v2136, %v145
    %v2169 = vadd.f32 %v2137, %v146
    %v2170 = vadd.f32 %v2138, %v147
    %v2171 = vadd.f32 %v2139, %v148
    %v2172 = vadd.f32 %v2140, %v149
    %v2173 = vadd.f32 %v2141, %v150
    %v2174 = vadd.f32 %v2142, %v151
    %v2175 = vadd.f32 %v2143, %v152
    %v2176 = vadd.f32 %v2144, %v153
    %v2177 = vadd.f32 %v2145, %v154
    %v2178 = vadd.f32 %v2146, %v155
    %v2179 = vadd.f32 %v2147, %v156
    %v2180 = vadd.f32 %v2148, %v157
    %v2181 = vadd.f32 %v2149, %v158
    %v2182 = vadd.f32 %v2150, %v159
    %v2183 = vadd.f32 %v2151, %v160
    %v2184 = vadd.f32 %v2152, %v161
    %v2185 = vadd.f32 %v2153, %v162
    %v2186 = vadd.f32 %v2154, %v163
    %v2187 = vadd.f32 %v2155, %v164
    %v2188 = vadd.f32 %v2156, %v165
    %v2189 = vadd.f32 %v2157, %v166
    %v2190 = vadd.f32 %v2158, %v167
    %2191 = vmatprep.subr.mxu0 0.0
    %2192 = vmatpush1.msra.mxu0 %v2159
    %2193 = vmatprep.subr.mxu0 0.0
    %2194 = vmatpush1.msra.mxu0 %v2160
    %2195 = vmatprep.subr.mxu0 0.0
    %2196 = vmatpush1.msra.mxu0 %v2161
    %2197 = vmatprep.subr.mxu0 0.0
    %2198 = vmatpush1.msra.mxu0 %v2162
    %2199 = vmatprep.subr.mxu0 0.0
    %2200 = vmatpush1.msra.mxu0 %v2163
    %2201 = vmatprep.subr.mxu0 0.0
    %2202 = vmatpush1.msra.mxu0 %v2164
    %2203 = vmatprep.subr.mxu0 0.0
    %2204 = vmatpush1.msra.mxu0 %v2165
    %2205 = vmatprep.subr.mxu0 0.0
    %2206 = vmatpush1.msra.mxu0 %v2166
    %2207 = vmatprep.subr.mxu0 0.0
    %2208 = vmatpush1.msra.mxu0 %v2167
    %2209 = vmatprep.subr.mxu0 0.0
    %2210 = vmatpush1.msra.mxu0 %v2168
    %2211 = vmatprep.subr.mxu0 0.0
    %2212 = vmatpush1.msra.mxu0 %v2169
    %2213 = vmatprep.subr.mxu0 0.0
    %2214 = vmatpush1.msra.mxu0 %v2170
    %2215 = vmatprep.subr.mxu0 0.0
    %2216 = vmatpush1.msra.mxu0 %v2171
    %2217 = vmatprep.subr.mxu0 0.0
    %2218 = vmatpush1.msra.mxu0 %v2172
    %2219 = vmatprep.subr.mxu0 0.0
    %2220 = vmatpush1.msra.mxu0 %v2173
    %2221 = vmatprep.subr.mxu0 0.0
    %2222 = vmatpush1.msra.mxu0 %v2174
    %2223 = vmatprep.subr.mxu0 0.0
    %2224 = vmatpush1.msra.mxu0 %v2175
    %2225 = vmatprep.subr.mxu0 0.0
    %2226 = vmatpush1.msra.mxu0 %v2176
    %2227 = vmatprep.subr.mxu0 0.0
    %2228 = vmatpush1.msra.mxu0 %v2177
    %2229 = vmatprep.subr.mxu0 0.0
    %2230 = vmatpush1.msra.mxu0 %v2178
    %2231 = vmatprep.subr.mxu0 0.0
    %2232 = vmatpush1.msra.mxu0 %v2179
    %2233 = vmatprep.subr.mxu0 0.0
    %2234 = vmatpush1.msra.mxu0 %v2180
    %2235 = vmatprep.subr.mxu0 0.0
    %2236 = vmatpush1.msra.mxu0 %v2181
    %2237 = vmatprep.subr.mxu0 0.0
    %2238 = vmatpush1.msra.mxu0 %v2182
    %2239 = vmatprep.subr.mxu0 0.0
    %2240 = vmatpush1.msra.mxu0 %v2183
    %2241 = vmatprep.subr.mxu0 0.0
    %2242 = vmatpush1.msra.mxu0 %v2184
    %2243 = vmatprep.subr.mxu0 0.0
    %2244 = vmatpush1.msra.mxu0 %v2185
    %2245 = vmatprep.subr.mxu0 0.0
    %2246 = vmatpush1.msra.mxu0 %v2186
    %2247 = vmatprep.subr.mxu0 0.0
    %2248 = vmatpush1.msra.mxu0 %v2187
    %2249 = vmatprep.subr.mxu0 0.0
    %2250 = vmatpush1.msra.mxu0 %v2188
    %2251 = vmatprep.subr.mxu0 0.0
    %2252 = vmatpush1.msra.mxu0 %v2189
    %2253 = vmatprep.subr.mxu0 0.0
    %2254 = vmatpush1.msra.mxu0 %v2190
    %2255 = vmatprep.mubr.f32.mxu0 %v73
    %2256 = vmatmul.mubr.f32.gmra.mrb[0].mxu0 %v72
    %v2257 = vpop.f32.mrb[0].mxu0
    %v2258 = vadd.f32 0.0, %v2257
    %v2259 = vpop.f32.mrb[0].mxu0
    %2260 = vmatprep.mubr.f32.mxu0 %v75
    %2261 = vmatmul.mubr.f32.gmra.mrb[0].mxu0 %v74
    %v2262 = vpop.f32.mrb[0].mxu0
    %v2263 = vadd.f32 0.0, %v2262
    %v2264 = vpop.f32.mrb[0].mxu0
    %2265 = vmatprep.mubr.f32.mxu0 %v77
    %2266 = vmatmul.mubr.f32.gmra.mrb[0].mxu0 %v76
    %v2267 = vpop.f32.mrb[0].mxu0
    %v2268 = vadd.f32 0.0, %v2267
    %v2269 = vpop.f32.mrb[0].mxu0
    %2270 = vmatprep.mubr.f32.mxu0 %v79
    %2271 = vmatmul.mubr.f32.gmra.mrb[0].mxu0 %v78
    %v2272 = vpop.f32.mrb[0].mxu0
    %v2273 = vadd.f32 0.0, %v2272
    %v2274 = vpop.f32.mrb[0].mxu0
    %2275 = vmatprep.mubr.f32.mxu0 %v81
    %2276 = vmatmul.mubr.f32.gmra.mrb[0].mxu0 %v80
    %v2277 = vpop.f32.mrb[0].mxu0
    %v2278 = vadd.f32 0.0, %v2277
    %v2279 = vpop.f32.mrb[0].mxu0
    %2280 = vmatprep.mubr.f32.mxu0 %v83
    %2281 = vmatmul.mubr.f32.gmra.mrb[0].mxu0 %v82
    %v2282 = vpop.f32.mrb[0].mxu0
    %v2283 = vadd.f32 0.0, %v2282
    %v2284 = vpop.f32.mrb[0].mxu0
    %2285 = vmatprep.mubr.f32.mxu0 %v85
    %2286 = vmatmul.mubr.f32.gmra.mrb[0].mxu0 %v84
    %v2287 = vpop.f32.mrb[0].mxu0
    %v2288 = vadd.f32 0.0, %v2287
    %v2289 = vpop.f32.mrb[0].mxu0
    %2290 = vmatprep.mubr.f32.mxu0 %v87
    %2291 = vmatmul.mubr.f32.gmra.mrb[0].mxu0 %v86
    %v2292 = vpop.f32.mrb[0].mxu0
    %v2293 = vadd.f32 0.0, %v2292
    %v2294 = vpop.f32.mrb[0].mxu0
    %2295 = vmatprep.mubr.f32.mxu0 %v89
    %2296 = vmatmul.mubr.f32.gmra.mrb[0].mxu0 %v88
    %v2297 = vpop.f32.mrb[0].mxu0
    %v2298 = vadd.f32 0.0, %v2297
    %v2299 = vpop.f32.mrb[0].mxu0
    %2300 = vmatprep.mubr.f32.mxu0 %v91
    %2301 = vmatmul.mubr.f32.gmra.mrb[0].mxu0 %v90
    %v2302 = vpop.f32.mrb[0].mxu0
    %v2303 = vadd.f32 0.0, %v2302
    %v2304 = vpop.f32.mrb[0].mxu0
    %2305 = vmatprep.mubr.f32.mxu0 %v93
    %2306 = vmatmul.mubr.f32.gmra.mrb[0].mxu0 %v92
    %v2307 = vpop.f32.mrb[0].mxu0
    %v2308 = vadd.f32 0.0, %v2307
    %v2309 = vpop.f32.mrb[0].mxu0
    %2310 = vmatprep.mubr.f32.mxu0 %v95
    %2311 = vmatmul.mubr.f32.gmra.mrb[0].mxu0 %v94
    %v2312 = vpop.f32.mrb[0].mxu0
    %v2313 = vadd.f32 0.0, %v2312
    %v2314 = vpop.f32.mrb[0].mxu0
    %2315 = vmatprep.mubr.f32.mxu0 %v97
    %2316 = vmatmul.mubr.f32.gmra.mrb[0].mxu0 %v96
    %v2317 = vpop.f32.mrb[0].mxu0
    %v2318 = vadd.f32 0.0, %v2317
    %v2319 = vpop.f32.mrb[0].mxu0
    %2320 = vmatprep.mubr.f32.mxu0 %v99
    %2321 = vmatmul.mubr.f32.gmra.mrb[0].mxu0 %v98
    %v2322 = vpop.f32.mrb[0].mxu0
    %v2323 = vadd.f32 0.0, %v2322
    %v2324 = vpop.f32.mrb[0].mxu0
    %2325 = vmatprep.mubr.f32.mxu0 %v101
    %2326 = vmatmul.mubr.f32.gmra.mrb[0].mxu0 %v100
    %v2327 = vpop.f32.mrb[0].mxu0
    %v2328 = vadd.f32 0.0, %v2327
    %v2329 = vpop.f32.mrb[0].mxu0
    %2330 = vmatprep.mubr.f32.mxu0 %v103
    %2331 = vmatmul.mubr.f32.gmra.mrb[0].mxu0 %v102
    %v2332 = vpop.f32.mrb[0].mxu0
    %v2333 = vadd.f32 0.0, %v2332
    %v2334 = vpop.f32.mrb[0].mxu0
    %2335 = vmatprep.mubr.f32.mxu0 %v105
    %2336 = vmatmul.mubr.f32.gmra.mrb[0].mxu0 %v104
    %v2337 = vpop.f32.mrb[0].mxu0
    %v2338 = vadd.f32 0.0, %v2337
    %v2339 = vpop.f32.mrb[0].mxu0
    %2340 = vmatprep.mubr.f32.mxu0 %v107
    %2341 = vmatmul.mubr.f32.gmra.mrb[0].mxu0 %v106
    %v2342 = vpop.f32.mrb[0].mxu0
    %v2343 = vadd.f32 0.0, %v2342
    %v2344 = vpop.f32.mrb[0].mxu0
    %2345 = vmatprep.mubr.f32.mxu0 %v109
    %2346 = vmatmul.mubr.f32.gmra.mrb[0].mxu0 %v108
    %v2347 = vpop.f32.mrb[0].mxu0
    %v2348 = vadd.f32 0.0, %v2347
    %v2349 = vpop.f32.mrb[0].mxu0
    %2350 = vmatprep.mubr.f32.mxu0 %v111
    %2351 = vmatmul.mubr.f32.gmra.mrb[0].mxu0 %v110
    %v2352 = vpop.f32.mrb[0].mxu0
    %v2353 = vadd.f32 0.0, %v2352
    %v2354 = vpop.f32.mrb[0].mxu0
    %2355 = vmatprep.mubr.f32.mxu0 %v113
    %2356 = vmatmul.mubr.f32.gmra.mrb[0].mxu0 %v112
    %v2357 = vpop.f32.mrb[0].mxu0
    %v2358 = vadd.f32 0.0, %v2357
    %v2359 = vpop.f32.mrb[0].mxu0
    %2360 = vmatprep.mubr.f32.mxu0 %v115
    %2361 = vmatmul.mubr.f32.gmra.mrb[0].mxu0 %v114
    %v2362 = vpop.f32.mrb[0].mxu0
    %v2363 = vadd.f32 0.0, %v2362
    %v2364 = vpop.f32.mrb[0].mxu0
    %2365 = vmatprep.mubr.f32.mxu0 %v117
    %2366 = vmatmul.mubr.f32.gmra.mrb[0].mxu0 %v116
    %v2367 = vpop.f32.mrb[0].mxu0
    %v2368 = vadd.f32 0.0, %v2367
    %v2369 = vpop.f32.mrb[0].mxu0
    %2370 = vmatprep.mubr.f32.mxu0 %v119
    %2371 = vmatmul.mubr.f32.gmra.mrb[0].mxu0 %v118
    %v2372 = vpop.f32.mrb[0].mxu0
    %v2373 = vadd.f32 0.0, %v2372
    %v2374 = vpop.f32.mrb[0].mxu0
    %2375 = vmatprep.mubr.f32.mxu0 %v121
    %2376 = vmatmul.mubr.f32.gmra.mrb[0].mxu0 %v120
    %v2377 = vpop.f32.mrb[0].mxu0
    %v2378 = vadd.f32 0.0, %v2377
    %v2379 = vpop.f32.mrb[0].mxu0
    %2380 = vmatprep.mubr.f32.mxu0 %v123
    %2381 = vmatmul.mubr.f32.gmra.mrb[0].mxu0 %v122
    %v2382 = vpop.f32.mrb[0].mxu0
    %v2383 = vadd.f32 0.0, %v2382
    %v2384 = vpop.f32.mrb[0].mxu0
    %2385 = vmatprep.mubr.f32.mxu0 %v125
    %2386 = vmatmul.mubr.f32.gmra.mrb[0].mxu0 %v124
    %v2387 = vpop.f32.mrb[0].mxu0
    %v2388 = vadd.f32 0.0, %v2387
    %v2389 = vpop.f32.mrb[0].mxu0
    %2390 = vmatprep.mubr.f32.mxu0 %v127
    %2391 = vmatmul.mubr.f32.gmra.mrb[0].mxu0 %v126
    %v2392 = vpop.f32.mrb[0].mxu0
    %v2393 = vadd.f32 0.0, %v2392
    %v2394 = vpop.f32.mrb[0].mxu0
    %2395 = vmatprep.mubr.f32.mxu0 %v129
    %2396 = vmatmul.mubr.f32.gmra.mrb[0].mxu0 %v128
    %v2397 = vpop.f32.mrb[0].mxu0
    %v2398 = vadd.f32 0.0, %v2397
    %v2399 = vpop.f32.mrb[0].mxu0
    %2400 = vmatprep.mubr.f32.mxu0 %v131
    %2401 = vmatmul.mubr.f32.gmra.mrb[0].mxu0 %v130
    %v2402 = vpop.f32.mrb[0].mxu0
    %v2403 = vadd.f32 0.0, %v2402
    %v2404 = vpop.f32.mrb[0].mxu0
    %2405 = vmatprep.mubr.f32.mxu0 %v133
    %2406 = vmatmul.mubr.f32.gmra.mrb[0].mxu0 %v132
    %v2407 = vpop.f32.mrb[0].mxu0
    %v2408 = vadd.f32 0.0, %v2407
    %v2409 = vpop.f32.mrb[0].mxu0
    %2410 = vmatprep.mubr.f32.mxu0 %v135
    %2411 = vmatmul.mubr.f32.gmra.mrb[0].mxu0 %v134
    %v2412 = vpop.f32.mrb[0].mxu0
    %v2413 = vadd.f32 0.0, %v2412
    %v2414 = vpop.f32.mrb[0].mxu0
    %2415 = vdwg.mxu0
    %v2416 = vmul.f32 %v2258, 0.9
    %v2417 = vmul.f32 %v2263, 0.9
    %v2418 = vmul.f32 %v2268, 0.9
    %v2419 = vmul.f32 %v2273, 0.9
    %v2420 = vmul.f32 %v2278, 0.9
    %v2421 = vmul.f32 %v2283, 0.9
    %v2422 = vmul.f32 %v2288, 0.9
    %v2423 = vmul.f32 %v2293, 0.9
    %v2424 = vmul.f32 %v2298, 0.9
    %v2425 = vmul.f32 %v2303, 0.9
    %v2426 = vmul.f32 %v2308, 0.9
    %v2427 = vmul.f32 %v2313, 0.9
    %v2428 = vmul.f32 %v2318, 0.9
    %v2429 = vmul.f32 %v2323, 0.9
    %v2430 = vmul.f32 %v2328, 0.9
    %v2431 = vmul.f32 %v2333, 0.9
    %v2432 = vmul.f32 %v2338, 0.9
    %v2433 = vmul.f32 %v2343, 0.9
    %v2434 = vmul.f32 %v2348, 0.9
    %v2435 = vmul.f32 %v2353, 0.9
    %v2436 = vmul.f32 %v2358, 0.9
    %v2437 = vmul.f32 %v2363, 0.9
    %v2438 = vmul.f32 %v2368, 0.9
    %v2439 = vmul.f32 %v2373, 0.9
    %v2440 = vmul.f32 %v2378, 0.9
    %v2441 = vmul.f32 %v2383, 0.9
    %v2442 = vmul.f32 %v2388, 0.9
    %v2443 = vmul.f32 %v2393, 0.9
    %v2444 = vmul.f32 %v2398, 0.9
    %v2445 = vmul.f32 %v2403, 0.9
    %v2446 = vmul.f32 %v2408, 0.9
    %v2447 = vmul.f32 %v2413, 0.9
    %v2448 = vadd.f32 %v2416, %v136
    %v2449 = vadd.f32 %v2417, %v137
    %v2450 = vadd.f32 %v2418, %v138
    %v2451 = vadd.f32 %v2419, %v139
    %v2452 = vadd.f32 %v2420, %v140
    %v2453 = vadd.f32 %v2421, %v141
    %v2454 = vadd.f32 %v2422, %v142
    %v2455 = vadd.f32 %v2423, %v143
    %v2456 = vadd.f32 %v2424, %v144
    %v2457 = vadd.f32 %v2425, %v145
    %v2458 = vadd.f32 %v2426, %v146
    %v2459 = vadd.f32 %v2427, %v147
    %v2460 = vadd.f32 %v2428, %v148
    %v2461 = vadd.f32 %v2429, %v149
    %v2462 = vadd.f32 %v2430, %v150
    %v2463 = vadd.f32 %v2431, %v151
    %v2464 = vadd.f32 %v2432, %v152
    %v2465 = vadd.f32 %v2433, %v153
    %v2466 = vadd.f32 %v2434, %v154
    %v2467 = vadd.f32 %v2435, %v155
    %v2468 = vadd.f32 %v2436, %v156
    %v2469 = vadd.f32 %v2437, %v157
    %v2470 = vadd.f32 %v2438, %v158
    %v2471 = vadd.f32 %v2439, %v159
    %v2472 = vadd.f32 %v2440, %v160
    %v2473 = vadd.f32 %v2441, %v161
    %v2474 = vadd.f32 %v2442, %v162
    %v2475 = vadd.f32 %v2443, %v163
    %v2476 = vadd.f32 %v2444, %v164
    %v2477 = vadd.f32 %v2445, %v165
    %v2478 = vadd.f32 %v2446, %v166
    %v2479 = vadd.f32 %v2447, %v167
    %2480 = vmatprep.subr.mxu0 0.0
    %2481 = vmatpush1.msra.mxu0 %v2448
    %2482 = vmatprep.subr.mxu0 0.0
    %2483 = vmatpush1.msra.mxu0 %v2449
    %2484 = vmatprep.subr.mxu0 0.0
    %2485 = vmatpush1.msra.mxu0 %v2450
    %2486 = vmatprep.subr.mxu0 0.0
    %2487 = vmatpush1.msra.mxu0 %v2451
    %2488 = vmatprep.subr.mxu0 0.0
    %2489 = vmatpush1.msra.mxu0 %v2452
    %2490 = vmatprep.subr.mxu0 0.0
    %2491 = vmatpush1.msra.mxu0 %v2453
    %2492 = vmatprep.subr.mxu0 0.0
    %2493 = vmatpush1.msra.mxu0 %v2454
    %2494 = vmatprep.subr.mxu0 0.0
    %2495 = vmatpush1.msra.mxu0 %v2455
    %2496 = vmatprep.subr.mxu0 0.0
    %2497 = vmatpush1.msra.mxu0 %v2456
    %2498 = vmatprep.subr.mxu0 0.0
    %2499 = vmatpush1.msra.mxu0 %v2457
    %2500 = vmatprep.subr.mxu0 0.0
    %2501 = vmatpush1.msra.mxu0 %v2458
    %2502 = vmatprep.subr.mxu0 0.0
    %2503 = vmatpush1.msra.mxu0 %v2459
    %2504 = vmatprep.subr.mxu0 0.0
    %2505 = vmatpush1.msra.mxu0 %v2460
    %2506 = vmatprep.subr.mxu0 0.0
    %2507 = vmatpush1.msra.mxu0 %v2461
    %2508 = vmatprep.subr.mxu0 0.0
    %2509 = vmatpush1.msra.mxu0 %v2462
    %2510 = vmatprep.subr.mxu0 0.0
    %2511 = vmatpush1.msra.mxu0 %v2463
    %2512 = vmatprep.subr.mxu0 0.0
    %2513 = vmatpush1.msra.mxu0 %v2464
    %2514 = vmatprep.subr.mxu0 0.0
    %2515 = vmatpush1.msra.mxu0 %v2465
    %2516 = vmatprep.subr.mxu0 0.0
    %2517 = vmatpush1.msra.mxu0 %v2466
    %2518 = vmatprep.subr.mxu0 0.0
    %2519 = vmatpush1.msra.mxu0 %v2467
    %2520 = vmatprep.subr.mxu0 0.0
    %2521 = vmatpush1.msra.mxu0 %v2468
    %2522 = vmatprep.subr.mxu0 0.0
    %2523 = vmatpush1.msra.mxu0 %v2469
    %2524 = vmatprep.subr.mxu0 0.0
    %2525 = vmatpush1.msra.mxu0 %v2470
    %2526 = vmatprep.subr.mxu0 0.0
    %2527 = vmatpush1.msra.mxu0 %v2471
    %2528 = vmatprep.subr.mxu0 0.0
    %2529 = vmatpush1.msra.mxu0 %v2472
    %2530 = vmatprep.subr.mxu0 0.0
    %2531 = vmatpush1.msra.mxu0 %v2473
    %2532 = vmatprep.subr.mxu0 0.0
    %2533 = vmatpush1.msra.mxu0 %v2474
    %2534 = vmatprep.subr.mxu0 0.0
    %2535 = vmatpush1.msra.mxu0 %v2475
    %2536 = vmatprep.subr.mxu0 0.0
    %2537 = vmatpush1.msra.mxu0 %v2476
    %2538 = vmatprep.subr.mxu0 0.0
    %2539 = vmatpush1.msra.mxu0 %v2477
    %2540 = vmatprep.subr.mxu0 0.0
    %2541 = vmatpush1.msra.mxu0 %v2478
    %2542 = vmatprep.subr.mxu0 0.0
    %2543 = vmatpush1.msra.mxu0 %v2479
    %2544 = vmatprep.mubr.f32.mxu0 %v73
    %2545 = vmatmul.mubr.f32.gmra.mrb[0].mxu0 %v72
    %v2546 = vpop.f32.mrb[0].mxu0
    %v2547 = vadd.f32 0.0, %v2546
    %v2548 = vpop.f32.mrb[0].mxu0
    %2549 = vmatprep.mubr.f32.mxu0 %v75
    %2550 = vmatmul.mubr.f32.gmra.mrb[0].mxu0 %v74
    %v2551 = vpop.f32.mrb[0].mxu0
    %v2552 = vadd.f32 0.0, %v2551
    %v2553 = vpop.f32.mrb[0].mxu0
    %2554 = vmatprep.mubr.f32.mxu0 %v77
    %2555 = vmatmul.mubr.f32.gmra.mrb[0].mxu0 %v76
    %v2556 = vpop.f32.mrb[0].mxu0
    %v2557 = vadd.f32 0.0, %v2556
    %v2558 = vpop.f32.mrb[0].mxu0
    %2559 = vmatprep.mubr.f32.mxu0 %v79
    %2560 = vmatmul.mubr.f32.gmra.mrb[0].mxu0 %v78
    %v2561 = vpop.f32.mrb[0].mxu0
    %v2562 = vadd.f32 0.0, %v2561
    %v2563 = vpop.f32.mrb[0].mxu0
    %2564 = vmatprep.mubr.f32.mxu0 %v81
    %2565 = vmatmul.mubr.f32.gmra.mrb[0].mxu0 %v80
    %v2566 = vpop.f32.mrb[0].mxu0
    %v2567 = vadd.f32 0.0, %v2566
    %v2568 = vpop.f32.mrb[0].mxu0
    %2569 = vmatprep.mubr.f32.mxu0 %v83
    %2570 = vmatmul.mubr.f32.gmra.mrb[0].mxu0 %v82
    %v2571 = vpop.f32.mrb[0].mxu0
    %v2572 = vadd.f32 0.0, %v2571
    %v2573 = vpop.f32.mrb[0].mxu0
    %2574 = vmatprep.mubr.f32.mxu0 %v85
    %2575 = vmatmul.mubr.f32.gmra.mrb[0].mxu0 %v84
    %v2576 = vpop.f32.mrb[0].mxu0
    %v2577 = vadd.f32 0.0, %v2576
    %v2578 = vpop.f32.mrb[0].mxu0
    %2579 = vmatprep.mubr.f32.mxu0 %v87
    %2580 = vmatmul.mubr.f32.gmra.mrb[0].mxu0 %v86
    %v2581 = vpop.f32.mrb[0].mxu0
    %v2582 = vadd.f32 0.0, %v2581
    %v2583 = vpop.f32.mrb[0].mxu0
    %2584 = vmatprep.mubr.f32.mxu0 %v89
    %2585 = vmatmul.mubr.f32.gmra.mrb[0].mxu0 %v88
    %v2586 = vpop.f32.mrb[0].mxu0
    %v2587 = vadd.f32 0.0, %v2586
    %v2588 = vpop.f32.mrb[0].mxu0
    %2589 = vmatprep.mubr.f32.mxu0 %v91
    %2590 = vmatmul.mubr.f32.gmra.mrb[0].mxu0 %v90
    %v2591 = vpop.f32.mrb[0].mxu0
    %v2592 = vadd.f32 0.0, %v2591
    %v2593 = vpop.f32.mrb[0].mxu0
    %2594 = vmatprep.mubr.f32.mxu0 %v93
    %2595 = vmatmul.mubr.f32.gmra.mrb[0].mxu0 %v92
    %v2596 = vpop.f32.mrb[0].mxu0
    %v2597 = vadd.f32 0.0, %v2596
    %v2598 = vpop.f32.mrb[0].mxu0
    %2599 = vmatprep.mubr.f32.mxu0 %v95
    %2600 = vmatmul.mubr.f32.gmra.mrb[0].mxu0 %v94
    %v2601 = vpop.f32.mrb[0].mxu0
    %v2602 = vadd.f32 0.0, %v2601
    %v2603 = vpop.f32.mrb[0].mxu0
    %2604 = vmatprep.mubr.f32.mxu0 %v97
    %2605 = vmatmul.mubr.f32.gmra.mrb[0].mxu0 %v96
    %v2606 = vpop.f32.mrb[0].mxu0
    %v2607 = vadd.f32 0.0, %v2606
    %v2608 = vpop.f32.mrb[0].mxu0
    %2609 = vmatprep.mubr.f32.mxu0 %v99
    %2610 = vmatmul.mubr.f32.gmra.mrb[0].mxu0 %v98
    %v2611 = vpop.f32.mrb[0].mxu0
    %v2612 = vadd.f32 0.0, %v2611
    %v2613 = vpop.f32.mrb[0].mxu0
    %2614 = vmatprep.mubr.f32.mxu0 %v101
    %2615 = vmatmul.mubr.f32.gmra.mrb[0].mxu0 %v100
    %v2616 = vpop.f32.mrb[0].mxu0
    %v2617 = vadd.f32 0.0, %v2616
    %v2618 = vpop.f32.mrb[0].mxu0
    %2619 = vmatprep.mubr.f32.mxu0 %v103
    %2620 = vmatmul.mubr.f32.gmra.mrb[0].mxu0 %v102
    %v2621 = vpop.f32.mrb[0].mxu0
    %v2622 = vadd.f32 0.0, %v2621
    %v2623 = vpop.f32.mrb[0].mxu0
    %2624 = vmatprep.mubr.f32.mxu0 %v105
    %2625 = vmatmul.mubr.f32.gmra.mrb[0].mxu0 %v104
    %v2626 = vpop.f32.mrb[0].mxu0
    %v2627 = vadd.f32 0.0, %v2626
    %v2628 = vpop.f32.mrb[0].mxu0
    %2629 = vmatprep.mubr.f32.mxu0 %v107
    %2630 = vmatmul.mubr.f32.gmra.mrb[0].mxu0 %v106
    %v2631 = vpop.f32.mrb[0].mxu0
    %v2632 = vadd.f32 0.0, %v2631
    %v2633 = vpop.f32.mrb[0].mxu0
    %2634 = vmatprep.mubr.f32.mxu0 %v109
    %2635 = vmatmul.mubr.f32.gmra.mrb[0].mxu0 %v108
    %v2636 = vpop.f32.mrb[0].mxu0
    %v2637 = vadd.f32 0.0, %v2636
    %v2638 = vpop.f32.mrb[0].mxu0
    %2639 = vmatprep.mubr.f32.mxu0 %v111
    %2640 = vmatmul.mubr.f32.gmra.mrb[0].mxu0 %v110
    %v2641 = vpop.f32.mrb[0].mxu0
    %v2642 = vadd.f32 0.0, %v2641
    %v2643 = vpop.f32.mrb[0].mxu0
    %2644 = vmatprep.mubr.f32.mxu0 %v113
    %2645 = vmatmul.mubr.f32.gmra.mrb[0].mxu0 %v112
    %v2646 = vpop.f32.mrb[0].mxu0
    %v2647 = vadd.f32 0.0, %v2646
    %v2648 = vpop.f32.mrb[0].mxu0
    %2649 = vmatprep.mubr.f32.mxu0 %v115
    %2650 = vmatmul.mubr.f32.gmra.mrb[0].mxu0 %v114
    %v2651 = vpop.f32.mrb[0].mxu0
    %v2652 = vadd.f32 0.0, %v2651
    %v2653 = vpop.f32.mrb[0].mxu0
    %2654 = vmatprep.mubr.f32.mxu0 %v117
    %2655 = vmatmul.mubr.f32.gmra.mrb[0].mxu0 %v116
    %v2656 = vpop.f32.mrb[0].mxu0
    %v2657 = vadd.f32 0.0, %v2656
    %v2658 = vpop.f32.mrb[0].mxu0
    %2659 = vmatprep.mubr.f32.mxu0 %v119
    %2660 = vmatmul.mubr.f32.gmra.mrb[0].mxu0 %v118
    %v2661 = vpop.f32.mrb[0].mxu0
    %v2662 = vadd.f32 0.0, %v2661
    %v2663 = vpop.f32.mrb[0].mxu0
    %2664 = vmatprep.mubr.f32.mxu0 %v121
    %2665 = vmatmul.mubr.f32.gmra.mrb[0].mxu0 %v120
    %v2666 = vpop.f32.mrb[0].mxu0
    %v2667 = vadd.f32 0.0, %v2666
    %v2668 = vpop.f32.mrb[0].mxu0
    %2669 = vmatprep.mubr.f32.mxu0 %v123
    %2670 = vmatmul.mubr.f32.gmra.mrb[0].mxu0 %v122
    %v2671 = vpop.f32.mrb[0].mxu0
    %v2672 = vadd.f32 0.0, %v2671
    %v2673 = vpop.f32.mrb[0].mxu0
    %2674 = vmatprep.mubr.f32.mxu0 %v125
    %2675 = vmatmul.mubr.f32.gmra.mrb[0].mxu0 %v124
    %v2676 = vpop.f32.mrb[0].mxu0
    %v2677 = vadd.f32 0.0, %v2676
    %v2678 = vpop.f32.mrb[0].mxu0
    %2679 = vmatprep.mubr.f32.mxu0 %v127
    %2680 = vmatmul.mubr.f32.gmra.mrb[0].mxu0 %v126
    %v2681 = vpop.f32.mrb[0].mxu0
    %v2682 = vadd.f32 0.0, %v2681
    %v2683 = vpop.f32.mrb[0].mxu0
    %2684 = vmatprep.mubr.f32.mxu0 %v129
    %2685 = vmatmul.mubr.f32.gmra.mrb[0].mxu0 %v128
    %v2686 = vpop.f32.mrb[0].mxu0
    %v2687 = vadd.f32 0.0, %v2686
    %v2688 = vpop.f32.mrb[0].mxu0
    %2689 = vmatprep.mubr.f32.mxu0 %v131
    %2690 = vmatmul.mubr.f32.gmra.mrb[0].mxu0 %v130
    %v2691 = vpop.f32.mrb[0].mxu0
    %v2692 = vadd.f32 0.0, %v2691
    %v2693 = vpop.f32.mrb[0].mxu0
    %2694 = vmatprep.mubr.f32.mxu0 %v133
    %2695 = vmatmul.mubr.f32.gmra.mrb[0].mxu0 %v132
    %v2696 = vpop.f32.mrb[0].mxu0
    %v2697 = vadd.f32 0.0, %v2696
    %v2698 = vpop.f32.mrb[0].mxu0
    %2699 = vmatprep.mubr.f32.mxu0 %v135
    %2700 = vmatmul.mubr.f32.gmra.mrb[0].mxu0 %v134
    %v2701 = vpop.f32.mrb[0].mxu0
    %v2702 = vadd.f32 0.0, %v2701
    %v2703 = vpop.f32.mrb[0].mxu0
    %2704 = vdwg.mxu0
    %v2705 = vmul.f32 %v2547, 0.9
    %v2706 = vmul.f32 %v2552, 0.9
    %v2707 = vmul.f32 %v2557, 0.9
    %v2708 = vmul.f32 %v2562, 0.9
    %v2709 = vmul.f32 %v2567, 0.9
    %v2710 = vmul.f32 %v2572, 0.9
    %v2711 = vmul.f32 %v2577, 0.9
    %v2712 = vmul.f32 %v2582, 0.9
    %v2713 = vmul.f32 %v2587, 0.9
    %v2714 = vmul.f32 %v2592, 0.9
    %v2715 = vmul.f32 %v2597, 0.9
    %v2716 = vmul.f32 %v2602, 0.9
    %v2717 = vmul.f32 %v2607, 0.9
    %v2718 = vmul.f32 %v2612, 0.9
    %v2719 = vmul.f32 %v2617, 0.9
    %v2720 = vmul.f32 %v2622, 0.9
    %v2721 = vmul.f32 %v2627, 0.9
    %v2722 = vmul.f32 %v2632, 0.9
    %v2723 = vmul.f32 %v2637, 0.9
    %v2724 = vmul.f32 %v2642, 0.9
    %v2725 = vmul.f32 %v2647, 0.9
    %v2726 = vmul.f32 %v2652, 0.9
    %v2727 = vmul.f32 %v2657, 0.9
    %v2728 = vmul.f32 %v2662, 0.9
    %v2729 = vmul.f32 %v2667, 0.9
    %v2730 = vmul.f32 %v2672, 0.9
    %v2731 = vmul.f32 %v2677, 0.9
    %v2732 = vmul.f32 %v2682, 0.9
    %v2733 = vmul.f32 %v2687, 0.9
    %v2734 = vmul.f32 %v2692, 0.9
    %v2735 = vmul.f32 %v2697, 0.9
    %v2736 = vmul.f32 %v2702, 0.9
    %v2737 = vadd.f32 %v2705, %v136
    %v2738 = vadd.f32 %v2706, %v137
    %v2739 = vadd.f32 %v2707, %v138
    %v2740 = vadd.f32 %v2708, %v139
    %v2741 = vadd.f32 %v2709, %v140
    %v2742 = vadd.f32 %v2710, %v141
    %v2743 = vadd.f32 %v2711, %v142
    %v2744 = vadd.f32 %v2712, %v143
    %v2745 = vadd.f32 %v2713, %v144
    %v2746 = vadd.f32 %v2714, %v145
    %v2747 = vadd.f32 %v2715, %v146
    %v2748 = vadd.f32 %v2716, %v147
    %v2749 = vadd.f32 %v2717, %v148
    %v2750 = vadd.f32 %v2718, %v149
    %v2751 = vadd.f32 %v2719, %v150
    %v2752 = vadd.f32 %v2720, %v151
    %v2753 = vadd.f32 %v2721, %v152
    %v2754 = vadd.f32 %v2722, %v153
    %v2755 = vadd.f32 %v2723, %v154
    %v2756 = vadd.f32 %v2724, %v155
    %v2757 = vadd.f32 %v2725, %v156
    %v2758 = vadd.f32 %v2726, %v157
    %v2759 = vadd.f32 %v2727, %v158
    %v2760 = vadd.f32 %v2728, %v159
    %v2761 = vadd.f32 %v2729, %v160
    %v2762 = vadd.f32 %v2730, %v161
    %v2763 = vadd.f32 %v2731, %v162
    %v2764 = vadd.f32 %v2732, %v163
    %v2765 = vadd.f32 %v2733, %v164
    %v2766 = vadd.f32 %v2734, %v165
    %v2767 = vadd.f32 %v2735, %v166
    %v2768 = vadd.f32 %v2736, %v167
    %2769 = vmatprep.subr.mxu0 0.0
    %2770 = vmatpush1.msra.mxu0 %v2737
    %2771 = vmatprep.subr.mxu0 0.0
    %2772 = vmatpush1.msra.mxu0 %v2738
    %2773 = vmatprep.subr.mxu0 0.0
    %2774 = vmatpush1.msra.mxu0 %v2739
    %2775 = vmatprep.subr.mxu0 0.0
    %2776 = vmatpush1.msra.mxu0 %v2740
    %2777 = vmatprep.subr.mxu0 0.0
    %2778 = vmatpush1.msra.mxu0 %v2741
    %2779 = vmatprep.subr.mxu0 0.0
    %2780 = vmatpush1.msra.mxu0 %v2742
    %2781 = vmatprep.subr.mxu0 0.0
    %2782 = vmatpush1.msra.mxu0 %v2743
    %2783 = vmatprep.subr.mxu0 0.0
    %2784 = vmatpush1.msra.mxu0 %v2744
    %2785 = vmatprep.subr.mxu0 0.0
    %2786 = vmatpush1.msra.mxu0 %v2745
    %2787 = vmatprep.subr.mxu0 0.0
    %2788 = vmatpush1.msra.mxu0 %v2746
    %2789 = vmatprep.subr.mxu0 0.0
    %2790 = vmatpush1.msra.mxu0 %v2747
    %2791 = vmatprep.subr.mxu0 0.0
    %2792 = vmatpush1.msra.mxu0 %v2748
    %2793 = vmatprep.subr.mxu0 0.0
    %2794 = vmatpush1.msra.mxu0 %v2749
    %2795 = vmatprep.subr.mxu0 0.0
    %2796 = vmatpush1.msra.mxu0 %v2750
    %2797 = vmatprep.subr.mxu0 0.0
    %2798 = vmatpush1.msra.mxu0 %v2751
    %2799 = vmatprep.subr.mxu0 0.0
    %2800 = vmatpush1.msra.mxu0 %v2752
    %2801 = vmatprep.subr.mxu0 0.0
    %2802 = vmatpush1.msra.mxu0 %v2753
    %2803 = vmatprep.subr.mxu0 0.0
    %2804 = vmatpush1.msra.mxu0 %v2754
    %2805 = vmatprep.subr.mxu0 0.0
    %2806 = vmatpush1.msra.mxu0 %v2755
    %2807 = vmatprep.subr.mxu0 0.0
    %2808 = vmatpush1.msra.mxu0 %v2756
    %2809 = vmatprep.subr.mxu0 0.0
    %2810 = vmatpush1.msra.mxu0 %v2757
    %2811 = vmatprep.subr.mxu0 0.0
    %2812 = vmatpush1.msra.mxu0 %v2758
    %2813 = vmatprep.subr.mxu0 0.0
    %2814 = vmatpush1.msra.mxu0 %v2759
    %2815 = vmatprep.subr.mxu0 0.0
    %2816 = vmatpush1.msra.mxu0 %v2760
    %2817 = vmatprep.subr.mxu0 0.0
    %2818 = vmatpush1.msra.mxu0 %v2761
    %2819 = vmatprep.subr.mxu0 0.0
    %2820 = vmatpush1.msra.mxu0 %v2762
    %2821 = vmatprep.subr.mxu0 0.0
    %2822 = vmatpush1.msra.mxu0 %v2763
    %2823 = vmatprep.subr.mxu0 0.0
    %2824 = vmatpush1.msra.mxu0 %v2764
    %2825 = vmatprep.subr.mxu0 0.0
    %2826 = vmatpush1.msra.mxu0 %v2765
    %2827 = vmatprep.subr.mxu0 0.0
    %2828 = vmatpush1.msra.mxu0 %v2766
    %2829 = vmatprep.subr.mxu0 0.0
    %2830 = vmatpush1.msra.mxu0 %v2767
    %2831 = vmatprep.subr.mxu0 0.0
    %2832 = vmatpush1.msra.mxu0 %v2768
    %2833 = vmatprep.mubr.f32.mxu0 %v73
    %2834 = vmatmul.mubr.f32.gmra.mrb[0].mxu0 %v72
    %v2835 = vpop.f32.mrb[0].mxu0
    %v2836 = vadd.f32 0.0, %v2835
    %v2837 = vpop.f32.mrb[0].mxu0
    %2838 = vmatprep.mubr.f32.mxu0 %v75
    %2839 = vmatmul.mubr.f32.gmra.mrb[0].mxu0 %v74
    %v2840 = vpop.f32.mrb[0].mxu0
    %v2841 = vadd.f32 0.0, %v2840
    %v2842 = vpop.f32.mrb[0].mxu0
    %2843 = vmatprep.mubr.f32.mxu0 %v77
    %2844 = vmatmul.mubr.f32.gmra.mrb[0].mxu0 %v76
    %v2845 = vpop.f32.mrb[0].mxu0
    %v2846 = vadd.f32 0.0, %v2845
    %v2847 = vpop.f32.mrb[0].mxu0
    %2848 = vmatprep.mubr.f32.mxu0 %v79
    %2849 = vmatmul.mubr.f32.gmra.mrb[0].mxu0 %v78
    %v2850 = vpop.f32.mrb[0].mxu0
    %v2851 = vadd.f32 0.0, %v2850
    %v2852 = vpop.f32.mrb[0].mxu0
    %2853 = vmatprep.mubr.f32.mxu0 %v81
    %2854 = vmatmul.mubr.f32.gmra.mrb[0].mxu0 %v80
    %v2855 = vpop.f32.mrb[0].mxu0
    %v2856 = vadd.f32 0.0, %v2855
    %v2857 = vpop.f32.mrb[0].mxu0
    %2858 = vmatprep.mubr.f32.mxu0 %v83
    %2859 = vmatmul.mubr.f32.gmra.mrb[0].mxu0 %v82
    %v2860 = vpop.f32.mrb[0].mxu0
    %v2861 = vadd.f32 0.0, %v2860
    %v2862 = vpop.f32.mrb[0].mxu0
    %2863 = vmatprep.mubr.f32.mxu0 %v85
    %2864 = vmatmul.mubr.f32.gmra.mrb[0].mxu0 %v84
    %v2865 = vpop.f32.mrb[0].mxu0
    %v2866 = vadd.f32 0.0, %v2865
    %v2867 = vpop.f32.mrb[0].mxu0
    %2868 = vmatprep.mubr.f32.mxu0 %v87
    %2869 = vmatmul.mubr.f32.gmra.mrb[0].mxu0 %v86
    %v2870 = vpop.f32.mrb[0].mxu0
    %v2871 = vadd.f32 0.0, %v2870
    %v2872 = vpop.f32.mrb[0].mxu0
    %2873 = vmatprep.mubr.f32.mxu0 %v89
    %2874 = vmatmul.mubr.f32.gmra.mrb[0].mxu0 %v88
    %v2875 = vpop.f32.mrb[0].mxu0
    %v2876 = vadd.f32 0.0, %v2875
    %v2877 = vpop.f32.mrb[0].mxu0
    %2878 = vmatprep.mubr.f32.mxu0 %v91
    %2879 = vmatmul.mubr.f32.gmra.mrb[0].mxu0 %v90
    %v2880 = vpop.f32.mrb[0].mxu0
    %v2881 = vadd.f32 0.0, %v2880
    %v2882 = vpop.f32.mrb[0].mxu0
    %2883 = vmatprep.mubr.f32.mxu0 %v93
    %2884 = vmatmul.mubr.f32.gmra.mrb[0].mxu0 %v92
    %v2885 = vpop.f32.mrb[0].mxu0
    %v2886 = vadd.f32 0.0, %v2885
    %v2887 = vpop.f32.mrb[0].mxu0
    %2888 = vmatprep.mubr.f32.mxu0 %v95
    %2889 = vmatmul.mubr.f32.gmra.mrb[0].mxu0 %v94
    %v2890 = vpop.f32.mrb[0].mxu0
    %v2891 = vadd.f32 0.0, %v2890
    %v2892 = vpop.f32.mrb[0].mxu0
    %2893 = vmatprep.mubr.f32.mxu0 %v97
    %2894 = vmatmul.mubr.f32.gmra.mrb[0].mxu0 %v96
    %v2895 = vpop.f32.mrb[0].mxu0
    %v2896 = vadd.f32 0.0, %v2895
    %v2897 = vpop.f32.mrb[0].mxu0
    %2898 = vmatprep.mubr.f32.mxu0 %v99
    %2899 = vmatmul.mubr.f32.gmra.mrb[0].mxu0 %v98
    %v2900 = vpop.f32.mrb[0].mxu0
    %v2901 = vadd.f32 0.0, %v2900
    %v2902 = vpop.f32.mrb[0].mxu0
    %2903 = vmatprep.mubr.f32.mxu0 %v101
    %2904 = vmatmul.mubr.f32.gmra.mrb[0].mxu0 %v100
    %v2905 = vpop.f32.mrb[0].mxu0
    %v2906 = vadd.f32 0.0, %v2905
    %v2907 = vpop.f32.mrb[0].mxu0
    %2908 = vmatprep.mubr.f32.mxu0 %v103
    %2909 = vmatmul.mubr.f32.gmra.mrb[0].mxu0 %v102
    %v2910 = vpop.f32.mrb[0].mxu0
    %v2911 = vadd.f32 0.0, %v2910
    %v2912 = vpop.f32.mrb[0].mxu0
    %2913 = vmatprep.mubr.f32.mxu0 %v105
    %2914 = vmatmul.mubr.f32.gmra.mrb[0].mxu0 %v104
    %v2915 = vpop.f32.mrb[0].mxu0
    %v2916 = vadd.f32 0.0, %v2915
    %v2917 = vpop.f32.mrb[0].mxu0
    %2918 = vmatprep.mubr.f32.mxu0 %v107
    %2919 = vmatmul.mubr.f32.gmra.mrb[0].mxu0 %v106
    %v2920 = vpop.f32.mrb[0].mxu0
    %v2921 = vadd.f32 0.0, %v2920
    %v2922 = vpop.f32.mrb[0].mxu0
    %2923 = vmatprep.mubr.f32.mxu0 %v109
    %2924 = vmatmul.mubr.f32.gmra.mrb[0].mxu0 %v108
    %v2925 = vpop.f32.mrb[0].mxu0
    %v2926 = vadd.f32 0.0, %v2925
    %v2927 = vpop.f32.mrb[0].mxu0
    %2928 = vmatprep.mubr.f32.mxu0 %v111
    %2929 = vmatmul.mubr.f32.gmra.mrb[0].mxu0 %v110
    %v2930 = vpop.f32.mrb[0].mxu0
    %v2931 = vadd.f32 0.0, %v2930
    %v2932 = vpop.f32.mrb[0].mxu0
    %2933 = vmatprep.mubr.f32.mxu0 %v113
    %2934 = vmatmul.mubr.f32.gmra.mrb[0].mxu0 %v112
    %v2935 = vpop.f32.mrb[0].mxu0
    %v2936 = vadd.f32 0.0, %v2935
    %v2937 = vpop.f32.mrb[0].mxu0
    %2938 = vmatprep.mubr.f32.mxu0 %v115
    %2939 = vmatmul.mubr.f32.gmra.mrb[0].mxu0 %v114
    %v2940 = vpop.f32.mrb[0].mxu0
    %v2941 = vadd.f32 0.0, %v2940
    %v2942 = vpop.f32.mrb[0].mxu0
    %2943 = vmatprep.mubr.f32.mxu0 %v117
    %2944 = vmatmul.mubr.f32.gmra.mrb[0].mxu0 %v116
    %v2945 = vpop.f32.mrb[0].mxu0
    %v2946 = vadd.f32 0.0, %v2945
    %v2947 = vpop.f32.mrb[0].mxu0
    %2948 = vmatprep.mubr.f32.mxu0 %v119
    %2949 = vmatmul.mubr.f32.gmra.mrb[0].mxu0 %v118
    %v2950 = vpop.f32.mrb[0].mxu0
    %v2951 = vadd.f32 0.0, %v2950
    %v2952 = vpop.f32.mrb[0].mxu0
    %2953 = vmatprep.mubr.f32.mxu0 %v121
    %2954 = vmatmul.mubr.f32.gmra.mrb[0].mxu0 %v120
    %v2955 = vpop.f32.mrb[0].mxu0
    %v2956 = vadd.f32 0.0, %v2955
    %v2957 = vpop.f32.mrb[0].mxu0
    %2958 = vmatprep.mubr.f32.mxu0 %v123
    %2959 = vmatmul.mubr.f32.gmra.mrb[0].mxu0 %v122
    %v2960 = vpop.f32.mrb[0].mxu0
    %v2961 = vadd.f32 0.0, %v2960
    %v2962 = vpop.f32.mrb[0].mxu0
    %2963 = vmatprep.mubr.f32.mxu0 %v125
    %2964 = vmatmul.mubr.f32.gmra.mrb[0].mxu0 %v124
    %v2965 = vpop.f32.mrb[0].mxu0
    %v2966 = vadd.f32 0.0, %v2965
    %v2967 = vpop.f32.mrb[0].mxu0
    %2968 = vmatprep.mubr.f32.mxu0 %v127
    %2969 = vmatmul.mubr.f32.gmra.mrb[0].mxu0 %v126
    %v2970 = vpop.f32.mrb[0].mxu0
    %v2971 = vadd.f32 0.0, %v2970
    %v2972 = vpop.f32.mrb[0].mxu0
    %2973 = vmatprep.mubr.f32.mxu0 %v129
    %2974 = vmatmul.mubr.f32.gmra.mrb[0].mxu0 %v128
    %v2975 = vpop.f32.mrb[0].mxu0
    %v2976 = vadd.f32 0.0, %v2975
    %v2977 = vpop.f32.mrb[0].mxu0
    %2978 = vmatprep.mubr.f32.mxu0 %v131
    %2979 = vmatmul.mubr.f32.gmra.mrb[0].mxu0 %v130
    %v2980 = vpop.f32.mrb[0].mxu0
    %v2981 = vadd.f32 0.0, %v2980
    %v2982 = vpop.f32.mrb[0].mxu0
    %2983 = vmatprep.mubr.f32.mxu0 %v133
    %2984 = vmatmul.mubr.f32.gmra.mrb[0].mxu0 %v132
    %v2985 = vpop.f32.mrb[0].mxu0
    %v2986 = vadd.f32 0.0, %v2985
    %v2987 = vpop.f32.mrb[0].mxu0
    %2988 = vmatprep.mubr.f32.mxu0 %v135
    %2989 = vmatmul.mubr.f32.gmra.mrb[0].mxu0 %v134
    %v2990 = vpop.f32.mrb[0].mxu0
    %v2991 = vadd.f32 0.0, %v2990
    %v2992 = vpop.f32.mrb[0].mxu0
    %2993 = vdwg.mxu0
    %v2994 = vmul.f32 %v2836, 0.9
    %v2995 = vmul.f32 %v2841, 0.9
    %v2996 = vmul.f32 %v2846, 0.9
    %v2997 = vmul.f32 %v2851, 0.9
    %v2998 = vmul.f32 %v2856, 0.9
    %v2999 = vmul.f32 %v2861, 0.9
    %v3000 = vmul.f32 %v2866, 0.9
    %v3001 = vmul.f32 %v2871, 0.9
    %v3002 = vmul.f32 %v2876, 0.9
    %v3003 = vmul.f32 %v2881, 0.9
    %v3004 = vmul.f32 %v2886, 0.9
    %v3005 = vmul.f32 %v2891, 0.9
    %v3006 = vmul.f32 %v2896, 0.9
    %v3007 = vmul.f32 %v2901, 0.9
    %v3008 = vmul.f32 %v2906, 0.9
    %v3009 = vmul.f32 %v2911, 0.9
    %v3010 = vmul.f32 %v2916, 0.9
    %v3011 = vmul.f32 %v2921, 0.9
    %v3012 = vmul.f32 %v2926, 0.9
    %v3013 = vmul.f32 %v2931, 0.9
    %v3014 = vmul.f32 %v2936, 0.9
    %v3015 = vmul.f32 %v2941, 0.9
    %v3016 = vmul.f32 %v2946, 0.9
    %v3017 = vmul.f32 %v2951, 0.9
    %v3018 = vmul.f32 %v2956, 0.9
    %v3019 = vmul.f32 %v2961, 0.9
    %v3020 = vmul.f32 %v2966, 0.9
    %v3021 = vmul.f32 %v2971, 0.9
    %v3022 = vmul.f32 %v2976, 0.9
    %v3023 = vmul.f32 %v2981, 0.9
    %v3024 = vmul.f32 %v2986, 0.9
    %v3025 = vmul.f32 %v2991, 0.9
    %v3026 = vadd.f32 %v2994, %v136
    %v3027 = vadd.f32 %v2995, %v137
    %v3028 = vadd.f32 %v2996, %v138
    %v3029 = vadd.f32 %v2997, %v139
    %v3030 = vadd.f32 %v2998, %v140
    %v3031 = vadd.f32 %v2999, %v141
    %v3032 = vadd.f32 %v3000, %v142
    %v3033 = vadd.f32 %v3001, %v143
    %v3034 = vadd.f32 %v3002, %v144
    %v3035 = vadd.f32 %v3003, %v145
    %v3036 = vadd.f32 %v3004, %v146
    %v3037 = vadd.f32 %v3005, %v147
    %v3038 = vadd.f32 %v3006, %v148
    %v3039 = vadd.f32 %v3007, %v149
    %v3040 = vadd.f32 %v3008, %v150
    %v3041 = vadd.f32 %v3009, %v151
    %v3042 = vadd.f32 %v3010, %v152
    %v3043 = vadd.f32 %v3011, %v153
    %v3044 = vadd.f32 %v3012, %v154
    %v3045 = vadd.f32 %v3013, %v155
    %v3046 = vadd.f32 %v3014, %v156
    %v3047 = vadd.f32 %v3015, %v157
    %v3048 = vadd.f32 %v3016, %v158
    %v3049 = vadd.f32 %v3017, %v159
    %v3050 = vadd.f32 %v3018, %v160
    %v3051 = vadd.f32 %v3019, %v161
    %v3052 = vadd.f32 %v3020, %v162
    %v3053 = vadd.f32 %v3021, %v163
    %v3054 = vadd.f32 %v3022, %v164
    %v3055 = vadd.f32 %v3023, %v165
    %v3056 = vadd.f32 %v3024, %v166
    %v3057 = vadd.f32 %v3025, %v167
    %3058 = vst [vmem:[#allocation7] sm:$0xff] %v3026
    %3059 = vst [vmem:[#allocation7 + $0x8] sm:$0xff] %v3027
    %3060 = vst [vmem:[#allocation7 + $0x10] sm:$0xff] %v3028
    %3061 = vst [vmem:[#allocation7 + $0x18] sm:$0xff] %v3029
    %3062 = vst [vmem:[#allocation7 + $0x20] sm:$0xff] %v3030
    %3063 = vst [vmem:[#allocation7 + $0x28] sm:$0xff] %v3031
    %3064 = vst [vmem:[#allocation7 + $0x30] sm:$0xff] %v3032
    %3065 = vst [vmem:[#allocation7 + $0x38] sm:$0xff] %v3033
    %3066 = vst [vmem:[#allocation7 + $0x40] sm:$0xff] %v3034
    %3067 = vst [vmem:[#allocation7 + $0x48] sm:$0xff] %v3035
    %3068 = vst [vmem:[#allocation7 + $0x50] sm:$0xff] %v3036
    %3069 = vst [vmem:[#allocation7 + $0x58] sm:$0xff] %v3037
    %3070 = vst [vmem:[#allocation7 + $0x60] sm:$0xff] %v3038
    %3071 = vst [vmem:[#allocation7 + $0x68] sm:$0xff] %v3039
    %3072 = vst [vmem:[#allocation7 + $0x70] sm:$0xff] %v3040
    %3073 = vst [vmem:[#allocation7 + $0x78] sm:$0xff] %v3041
    %3074 = vst [vmem:[#allocation7 + $0x80] sm:$0xff] %v3042
    %3075 = vst [vmem:[#allocation7 + $0x88] sm:$0xff] %v3043
    %3076 = vst [vmem:[#allocation7 + $0x90] sm:$0xff] %v3044
    %3077 = vst [vmem:[#allocation7 + $0x98] sm:$0xff] %v3045
    %3078 = vst [vmem:[#allocation7 + $0xa0] sm:$0xff] %v3046
    %3079 = vst [vmem:[#allocation7 + $0xa8] sm:$0xff] %v3047
    %3080 = vst [vmem:[#allocation7 + $0xb0] sm:$0xff] %v3048
    %3081 = vst [vmem:[#allocation7 + $0xb8] sm:$0xff] %v3049
    %3082 = vst [vmem:[#allocation7 + $0xc0] sm:$0xff] %v3050
    %3083 = vst [vmem:[#allocation7 + $0xc8] sm:$0xff] %v3051
    %3084 = vst [vmem:[#allocation7 + $0xd0] sm:$0xff] %v3052
    %3085 = vst [vmem:[#allocation7 + $0xd8] sm:$0xff] %v3053
    %3086 = vst [vmem:[#allocation7 + $0xe0] sm:$0xff] %v3054
    %3087 = vst [vmem:[#allocation7 + $0xe8] sm:$0xff] %v3055
    %3088 = vst [vmem:[#allocation7 + $0xf0] sm:$0xff] %v3056
    %3089 = vst [vmem:[#allocation7 + $0xf8] sm:$0xff] %v3057
    // Predicated region
    $region18: #{tpu_custom_call.1} parent=1 // pred_check
      _
    $region19: #{tpu_custom_call.1} parent=1 // pred_check_branch
      %3091 = sbr.rel (0) target = $region21
    $region20: #{tpu_custom_call.1} parent=1 // pred_region
      %s3093 = ssub.s32 4096, 4096
      %3094 = vsyncadd [#allocation4], %s3093
      %s3095 = sshll.u32 [#allocation7], 4
      %s3096 = int_to_ptr.vmem [resolvable:$true] %s3095
      %3101 = dma.vmem_to_hbm [thread:$0]  %s3096, 4096, %s2, [#allocation4], 128, 128, 8
    $region21: #{tpu_custom_call.1} parent=1 // pred_fallthru
      _
    // Predicated region
    $region22: #{tpu_custom_call.1} parent=1 // pred_check
      _
    $region23: #{tpu_custom_call.1} parent=1 // pred_check_branch
      %3103 = sbr.rel (0) target = $region25
    $region24: #{tpu_custom_call.1} parent=1 // pred_region
      %3104 = dma.done [#allocation4], 4096
    $region25: #{tpu_custom_call.1} parent=1 // pred_fallthru
      _
    %3105 = vsyncpa [#allocation3], 1
    %3106 = vsyncpa [#allocation6], 1
    %3107 = vsyncpa [#allocation4], 1

</llo_original>
